<compile_context>
chip_gen: v7x
topology: tpu7x:2x2x1
jax: 0.10.0
libtpu: 0.0.40
codegen_flags: <defaults>
</compile_context>

<pallas_src>
import jax
import jax.numpy as jnp
import numpy as np
from jax import lax
from jax.experimental import pallas as pl
from jax.experimental.pallas import tpu as pltpu

# ---------------- model hyper-parameters (small, consistent with module) ----
D_MODEL = 32
NHEAD = 4
DIM_FF = 64
HEAD_DIM = D_MODEL // NHEAD
LN_EPS = 1e-5


# ---------------- math helpers usable inside the kernel ---------------------
def _mish(x):
    # mish(x) = x * tanh(softplus(x)), PyTorch-style threshold for stability
    sp = jnp.where(x > 20.0, x, jnp.log1p(jnp.exp(jnp.minimum(x, 20.0))))
    return x * jnp.tanh(sp)


def _layernorm_rows(x, gamma, beta):
    mean = jnp.mean(x, axis=-1, keepdims=True)
    var = jnp.mean((x - mean) ** 2, axis=-1, keepdims=True)   # biased var (PyTorch LN)
    return (x - mean) * lax.rsqrt(var + LN_EPS) * gamma + beta


# ---------------- Pallas kernel: one batch element per grid step ------------
def _film_decoder_kernel(
    x_ref, m_ref, t_ref,
    ln_g_ref, ln_b_ref,
    sa_wqk_ref, sa_bqk_ref, sa_wvo_ref, sa_bo_ref,
    ca_wqk_ref, ca_bqk_ref, ca_wvo_ref, ca_bo_ref,
    w1_ref, b1_ref, w2_ref, b2_ref,
    film_w_ref, film_b_ref,
    out_ref,
):
    D = D_MODEL

    x = x_ref[...]                                      # (S, D) f32 residual stream
    mem_bf = m_ref[...].astype(jnp.bfloat16)            # (M, D) bf16 (MXU operand)

    # ----- fused DenseFiLM for all three blocks: one (1, D) x (D, 6D) matmul -----
    # Computed once per batch element (not per sequence row).
    mish_t = _mish(t_ref[...])                          # (1, D) f32
    film = jnp.dot(mish_t.astype(jnp.bfloat16), film_w_ref[...],
                   preferred_element_type=jnp.float32) + film_b_ref[...]   # (1, 6D) f32

    def attn(q_in_bf, kv_bf, wqk_ref, bqk_ref, wvo_ref, bo_ref):
        # q/k projections (attention scale pre-folded into Wq/bq in the wrapper).
        q = (jnp.dot(q_in_bf, wqk_ref[0], preferred_element_type=jnp.float32)
             + bqk_ref[0]).astype(jnp.bfloat16)                      # (Nq, D)
        k = (jnp.dot(kv_bf, wqk_ref[1], preferred_element_type=jnp.float32)
             + bqk_ref[1]).astype(jnp.bfloat16)                      # (Nk, D)
        # V with the output projection folded in per head: (Nk, NHEAD*D).
        vo = jnp.dot(kv_bf, wvo_ref[...],
                     preferred_element_type=jnp.float32).astype(jnp.bfloat16)
        out = None
        for h in range(NHEAD):                          # static, unrolled head loop
            lo = h * HEAD_DIM
            s = lax.dot_general(q[:, lo:lo + HEAD_DIM], k[:, lo:lo + HEAD_DIM],
                                (((1,), (1,)), ((), ())),
                                preferred_element_type=jnp.float32)   # (Nq, Nk) f32
            smax = jnp.max(s, axis=-1, keepdims=True)
            e = jnp.exp(s - smax)
            p = (e * pl.reciprocal(jnp.sum(e, axis=-1, keepdims=True),
                                   approx=True)).astype(jnp.bfloat16)
            c = jnp.dot(p, vo[:, h * D:(h + 1) * D],
                        preferred_element_type=jnp.float32)           # (Nq, D) f32
            out = c if out is None else out + c
        # bo_ref already contains out-proj bias + folded V biases (rows of p sum to 1).
        return out + bo_ref[...]

    # ----- self-attention block + FiLM residual -----
    h1 = _layernorm_rows(x, ln_g_ref[0], ln_b_ref[0])
    h1_bf = h1.astype(jnp.bfloat16)
    sa = attn(h1_bf, h1_bf, sa_wqk_ref, sa_bqk_ref, sa_wvo_ref, sa_bo_ref)
    x = x + (film[:, 0 * D:1 * D] + 1.0) * sa + film[:, 1 * D:2 * D]

    # ----- cross-attention block + FiLM residual -----
    h2 = _layernorm_rows(x, ln_g_ref[1], ln_b_ref[1])
    ca = attn(h2.astype(jnp.bfloat16), mem_bf,
              ca_wqk_ref, ca_bqk_ref, ca_wvo_ref, ca_bo_ref)
    x = x + (film[:, 2 * D:3 * D] + 1.0) * ca + film[:, 3 * D:4 * D]

    # ----- feed-forward block + FiLM residual -----
    h3 = _layernorm_rows(x, ln_g_ref[2], ln_b_ref[2])
    ff = jnp.maximum(
        jnp.dot(h3.astype(jnp.bfloat16), w1_ref[...],
                preferred_element_type=jnp.float32) + b1_ref[...], 0.0)
    ff = jnp.dot(ff.astype(jnp.bfloat16), w2_ref[...],
                 preferred_element_type=jnp.float32) + b2_ref[...]
    x = x + (film[:, 4 * D:5 * D] + 1.0) * ff + film[:, 5 * D:6 * D]

    # Output lane width D=32 < 128 -> masked store; acceptable micro-cost at this D.
    out_ref[...] = x


# ---------------- wrapper: trace-time weight preprocessing + pallas_call ----
def _prep_attention_params(wqkv, bqkv, wo, bo):
    """Pre-transpose, fold 1/sqrt(head_dim) into Wq/bq, fold Wo into V per head."""
    D = D_MODEL
    scale = 1.0 / float(np.sqrt(HEAD_DIM))
    wq_t = wqkv[0:D, :].T * scale                      # (D, D)
    wk_t = wqkv[D:2 * D, :].T                          # (D, D)
    wv_t = wqkv[2 * D:3 * D, :].T                      # (D, D)
    wo_t = wo.T                                        # (D, D)
    bq = bqkv[:, 0:D] * scale                          # (1, D)
    bk = bqkv[:, D:2 * D]                              # (1, D)
    bv = bqkv[:, 2 * D:3 * D]                          # (1, D)

    wvo_heads = []
    b_total = bo                                       # (1, D)
    for h in range(NHEAD):
        lo, hi = h * HEAD_DIM, (h + 1) * HEAD_DIM
        wvo_heads.append(wv_t[:, lo:hi] @ wo_t[lo:hi, :])        # (D, D)
        # softmax rows sum to 1, so the per-head V bias passes straight through
        # the attention weights and can be folded into the output bias.
        b_total = b_total + bv[:, lo:hi] @ wo_t[lo:hi, :]

    wqk = jnp.stack([wq_t, wk_t], axis=0).astype(jnp.bfloat16)   # (2, D, D)
    bqk = jnp.stack([bq, bk], axis=0).astype(jnp.float32)        # (2, 1, D)
    wvo = jnp.concatenate(wvo_heads, axis=1).astype(jnp.bfloat16)  # (D, NHEAD*D)
    return wqk, bqk, wvo, b_total.astype(jnp.float32)


def film_transformer_decoder_layer(tgt, memory, t, p):
    B, S, D = tgt.shape
    M = memory.shape[1]
    F = DIM_FF

    t3 = t.reshape(B, 1, D)

    sa_wqk, sa_bqk, sa_wvo, sa_bo = _prep_attention_params(
        p["sa_wqkv"], p["sa_bqkv"], p["sa_wo"], p["sa_bo"])
    ca_wqk, ca_bqk, ca_wvo, ca_bo = _prep_attention_params(
        p["ca_wqkv"], p["ca_bqkv"], p["ca_wo"], p["ca_bo"])

    ln_g = p["ln_g"].reshape(3, 1, D)
    ln_b = p["ln_b"].reshape(3, 1, D)

    w1_t = p["w1"].T.astype(jnp.bfloat16)              # (D, F)
    w2_t = p["w2"].T.astype(jnp.bfloat16)              # (F, D)
    b1 = p["b1"].reshape(1, F)
    b2 = p["b2"].reshape(1, D)

    # fuse the 3 DenseFiLM linears into one (D, 6D) weight / (1, 6D) bias
    film_w = jnp.concatenate(
        [p["film_w"][i].T for i in range(3)], axis=1).astype(jnp.bfloat16)   # (D, 6D)
    film_b = p["film_b"].reshape(1, 6 * D)

    args = [tgt, memory, t3, ln_g, ln_b,
            sa_wqk, sa_bqk, sa_wvo, sa_bo,
            ca_wqk, ca_bqk, ca_wvo, ca_bo,
            w1_t, b1, w2_t, b2, film_w, film_b]

    def resident_spec(a):
        # Constant index_map -> block is fetched once and stays VMEM-resident
        # across all grid steps (weights / biases).
        nd = a.ndim
        return pl.BlockSpec(a.shape, lambda b, _nd=nd: (0,) * _nd)

    in_specs = [
        pl.BlockSpec((None, S, D), lambda b: (b, 0, 0)),   # tgt, per-batch tile
        pl.BlockSpec((None, M, D), lambda b: (b, 0, 0)),   # memory, per-batch tile
        pl.BlockSpec((None, 1, D), lambda b: (b, 0, 0)),   # t, per-batch row
    ] + [resident_spec(a) for a in args[3:]]

    out = pl.pallas_call(
        _film_decoder_kernel,
        grid_spec=pl.GridSpec(
            grid=(B,),                                     # per-batch, no masks needed
            in_specs=in_specs,
            out_specs=pl.BlockSpec((None, S, D), lambda b: (b, 0, 0)),
        ),
        out_shape=jax.ShapeDtypeStruct((B, S, D), jnp.float32),
        compiler_params=pltpu.CompilerParams(
            dimension_semantics=("parallel",),             # v7x: split batch over TCs
            vmem_limit_bytes=32 * 1024 * 1024,             # bounded per-batch tiles
        ),
    )(*args)

    return out


# ---------------- pure-JAX reference (independent path, exact f32) ----------
def _linear(x, w, b):
    y = lax.dot_general(x, w, (((1,), (1,)), ((), ())),
                        preferred_element_type=jnp.float32)
    return y + b


def _softmax(x):
    m = jnp.max(x, axis=-1, keepdims=True)
    e = jnp.exp(x - m)
    return e / jnp.sum(e, axis=-1, keepdims=True)


def _mha_ref(q_in, kv_in, wqkv, bqkv, wo, bo):
    D = D_MODEL
    wq, wk, wv = wqkv[0:D], wqkv[D:2 * D], wqkv[2 * D:3 * D]
    bq, bk, bv = bqkv[:, 0:D], bqkv[:, D:2 * D], bqkv[:, 2 * D:3 * D]
    q = _linear(q_in, wq, bq)
    k = _linear(kv_in, wk, bk)
    v = _linear(kv_in, wv, bv)
    scale = 1.0 / float(np.sqrt(HEAD_DIM))
    heads = []
    for h in range(NHEAD):
        lo, hi = h * HEAD_DIM, (h + 1) * HEAD_DIM
        s = jnp.dot(q[:, lo:hi] * scale, k[:, lo:hi].T,
                    preferred_element_type=jnp.float32)
        heads.append(jnp.dot(_softmax(s), v[:, lo:hi],
                             preferred_element_type=jnp.float32))
    return _linear(jnp.concatenate(heads, axis=-1), wo, bo)


def reference(tgt, memory, t, p):
    def per_batch(x, mem, tb):
        tb = tb[None, :]
        mish_t = _mish(tb)

        def film(i):
            out = _linear(mish_t, p["film_w"][i], p["film_b"][i:i + 1])
            return out[:, :D_MODEL], out[:, D_MODEL:]

        h1 = _layernorm_rows(x, p["ln_g"][0:1], p["ln_b"][0:1])
        sa = _mha_ref(h1, h1, p["sa_wqkv"], p["sa_bqkv"], p["sa_wo"], p["sa_bo"])
        s, sh = film(0)
        x = x + (s + 1.0) * sa + sh

        h2 = _layernorm_rows(x, p["ln_g"][1:2], p["ln_b"][1:2])
        ca = _mha_ref(h2, mem, p["ca_wqkv"], p["ca_bqkv"], p["ca_wo"], p["ca_bo"])
        s, sh = film(1)
        x = x + (s + 1.0) * ca + sh

        h3 = _layernorm_rows(x, p["ln_g"][2:3], p["ln_b"][2:3])
        ff = jnp.maximum(_linear(h3, p["w1"], p["b1"]), 0.0)
        ff = _linear(ff, p["w2"], p["b2"])
        s, sh = film(2)
        x = x + (s + 1.0) * ff + sh
        return x

    return jax.vmap(per_batch)(tgt, memory, t)


# ---------------- parameter init (deterministic, synthetic) ------------------
def init_params(key):
    D, F = D_MODEL, DIM_FF
    ks = jax.random.split(key, 16)

    def w(k, shape, scale=0.08):
        return jax.random.normal(k, shape, jnp.float32) * scale

    return {
        "ln_g": 1.0 + 0.05 * jax.random.normal(ks[0], (3, D), jnp.float32),
        "ln_b": 0.05 * jax.random.normal(ks[1], (3, D), jnp.float32),
        # self-attention (nn.MultiheadAttention packed qkv)
        "sa_wqkv": w(ks[2], (3 * D, D)),
        "sa_bqkv": w(ks[3], (1, 3 * D), 0.02),
        "sa_wo": w(ks[4], (D, D)),
        "sa_bo": w(ks[5], (1, D), 0.02),
        # cross-attention
        "ca_wqkv": w(ks[6], (3 * D, D)),
        "ca_bqkv": w(ks[7], (1, 3 * D), 0.02),
        "ca_wo": w(ks[8], (D, D)),
        "ca_bo": w(ks[9], (1, D), 0.02),
        # feed-forward
        "w1": w(ks[10], (F, D)),
        "b1": w(ks[11], (1, F), 0.02),
        "w2": w(ks[12], (D, F)),
        "b2": w(ks[13], (1, D), 0.02),
        # DenseFiLM 1/2/3: Linear(D -> 2D)
        "film_w": w(ks[14], (3, 2 * D, D)),
        "film_b": w(ks[15], (3, 2 * D), 0.02),
    }


# TODO(synk): dropout layers (dropout, dropout1/2/3) are identity here (eval mode);
# the rotary branch is not implemented since the module is configured with rotary=None.

if __name__ == "__main__":
    key = jax.random.PRNGKey(0)
    k_tgt, k_mem, k_t, k_p = jax.random.split(key, 4)

    B, S, M = 2, 8, 8
    tgt = jax.random.normal(k_tgt, (B, S, D_MODEL), jnp.float32)
    memory = jax.random.normal(k_mem, (B, M, D_MODEL), jnp.float32)
    t = jax.random.normal(k_t, (B, D_MODEL), jnp.float32)
    params = init_params(k_p)

    out = film_transformer_decoder_layer(tgt, memory, t, params)
    out = jax.block_until_ready(out)

    ref = jax.block_until_ready(reference(tgt, memory, t, params))
    # Tolerance covers the two intended numeric deviations: bf16 MXU operands
    # (score/softmax/LayerNorm/residual math stays f32) and the approximate
    # (EUP) reciprocal in the softmax denominator.
    np.testing.assert_allclose(np.asarray(out), np.asarray(ref),
                               rtol=2e-2, atol=2e-2)
    print("KERNEL_OK")
</pallas_src>

<mosaic_0001>
module attributes {stable_mosaic.version = 11 : i64} {
  func.func @_film_decoder_kernel(%arg0: i32, %arg1: memref<1x8x32xf32, #tpu.memory_space<vmem>>, %arg2: memref<1x8x32xf32, #tpu.memory_space<vmem>>, %arg3: memref<1x1x32xf32, #tpu.memory_space<vmem>>, %arg4: memref<3x1x32xf32, #tpu.memory_space<vmem>>, %arg5: memref<3x1x32xf32, #tpu.memory_space<vmem>>, %arg6: memref<2x32x32xbf16, #tpu.memory_space<vmem>>, %arg7: memref<2x1x32xf32, #tpu.memory_space<vmem>>, %arg8: memref<32x128xbf16, #tpu.memory_space<vmem>>, %arg9: memref<1x32xf32, #tpu.memory_space<vmem>>, %arg10: memref<2x32x32xbf16, #tpu.memory_space<vmem>>, %arg11: memref<2x1x32xf32, #tpu.memory_space<vmem>>, %arg12: memref<32x128xbf16, #tpu.memory_space<vmem>>, %arg13: memref<1x32xf32, #tpu.memory_space<vmem>>, %arg14: memref<32x64xbf16, #tpu.memory_space<vmem>>, %arg15: memref<1x64xf32, #tpu.memory_space<vmem>>, %arg16: memref<64x32xbf16, #tpu.memory_space<vmem>>, %arg17: memref<1x32xf32, #tpu.memory_space<vmem>>, %arg18: memref<32x192xbf16, #tpu.memory_space<vmem>>, %arg19: memref<1x192xf32, #tpu.memory_space<vmem>>, %arg20: memref<1x8x32xf32, #tpu.memory_space<vmem>>) attributes {dimension_semantics = [#tpu.dimension_semantics<parallel>], iteration_bounds = array<i64: 2>, scalar_prefetch = 0 : i64, scratch_operands = 0 : i64, tpu.core_type = #tpu.core_type<tc>, window_params = [{transform_indices = @transform_0, window_bounds = array<i64: 1, 8, 32>}, {transform_indices = @transform_1, window_bounds = array<i64: 1, 8, 32>}, {transform_indices = @transform_2, window_bounds = array<i64: 1, 1, 32>}, {pipeline_mode = #tpu.pipeline_mode<synchronous>, transform_indices = @transform_3, window_bounds = array<i64: 3, 1, 32>}, {pipeline_mode = #tpu.pipeline_mode<synchronous>, transform_indices = @transform_4, window_bounds = array<i64: 3, 1, 32>}, {pipeline_mode = #tpu.pipeline_mode<synchronous>, transform_indices = @transform_5, window_bounds = array<i64: 2, 32, 32>}, {pipeline_mode = #tpu.pipeline_mode<synchronous>, transform_indices = @transform_6, window_bounds = array<i64: 2, 1, 32>}, {pipeline_mode = #tpu.pipeline_mode<synchronous>, transform_indices = @transform_7, window_bounds = array<i64: 32, 128>}, {pipeline_mode = #tpu.pipeline_mode<synchronous>, transform_indices = @transform_8, window_bounds = array<i64: 1, 32>}, {pipeline_mode = #tpu.pipeline_mode<synchronous>, transform_indices = @transform_9, window_bounds = array<i64: 2, 32, 32>}, {pipeline_mode = #tpu.pipeline_mode<synchronous>, transform_indices = @transform_10, window_bounds = array<i64: 2, 1, 32>}, {pipeline_mode = #tpu.pipeline_mode<synchronous>, transform_indices = @transform_11, window_bounds = array<i64: 32, 128>}, {pipeline_mode = #tpu.pipeline_mode<synchronous>, transform_indices = @transform_12, window_bounds = array<i64: 1, 32>}, {pipeline_mode = #tpu.pipeline_mode<synchronous>, transform_indices = @transform_13, window_bounds = array<i64: 32, 64>}, {pipeline_mode = #tpu.pipeline_mode<synchronous>, transform_indices = @transform_14, window_bounds = array<i64: 1, 64>}, {pipeline_mode = #tpu.pipeline_mode<synchronous>, transform_indices = @transform_15, window_bounds = array<i64: 64, 32>}, {pipeline_mode = #tpu.pipeline_mode<synchronous>, transform_indices = @transform_16, window_bounds = array<i64: 1, 32>}, {pipeline_mode = #tpu.pipeline_mode<synchronous>, transform_indices = @transform_17, window_bounds = array<i64: 32, 192>}, {pipeline_mode = #tpu.pipeline_mode<synchronous>, transform_indices = @transform_18, window_bounds = array<i64: 1, 192>}, {transform_indices = @transform_19, window_bounds = array<i64: 1, 8, 32>}]} {
    %c0 = arith.constant 0 : index
    %c0_0 = arith.constant 0 : index
    %c0_1 = arith.constant 0 : index
    %0 = vector.load %arg1[%c0, %c0_0, %c0_1] : memref<1x8x32xf32, #tpu.memory_space<vmem>>, vector<1x8x32xf32>
    %1 = vector.shape_cast %0 : vector<1x8x32xf32> to vector<8x32xf32>
    %c0_2 = arith.constant 0 : index
    %c0_3 = arith.constant 0 : index
    %c0_4 = arith.constant 0 : index
    %2 = vector.load %arg2[%c0_2, %c0_3, %c0_4] : memref<1x8x32xf32, #tpu.memory_space<vmem>>, vector<1x8x32xf32>
    %3 = vector.shape_cast %2 : vector<1x8x32xf32> to vector<8x32xf32>
    %4 = arith.truncf %3 : vector<8x32xf32> to vector<8x32xbf16>
    %c0_5 = arith.constant 0 : index
    %c0_6 = arith.constant 0 : index
    %c0_7 = arith.constant 0 : index
    %5 = vector.load %arg3[%c0_5, %c0_6, %c0_7] : memref<1x1x32xf32, #tpu.memory_space<vmem>>, vector<1x1x32xf32>
    %6 = vector.shape_cast %5 : vector<1x1x32xf32> to vector<1x32xf32>
    %cst = arith.constant 2.000000e+01 : f32
    %7 = vector.broadcast %cst : f32 to vector<1x32xf32>
    %8 = arith.cmpf ogt, %6, %7 : vector<1x32xf32>
    %cst_8 = arith.constant 2.000000e+01 : f32
    %9 = vector.broadcast %cst_8 : f32 to vector<1x32xf32>
    %10 = arith.minimumf %6, %9 : vector<1x32xf32>
    %11 = math.exp %10 : vector<1x32xf32>
    %12 = math.log1p %11 : vector<1x32xf32>
    %13 = arith.select %8, %6, %12 : vector<1x32xi1>, vector<1x32xf32>
    %14 = math.tanh %13 : vector<1x32xf32>
    %15 = arith.mulf %6, %14 : vector<1x32xf32>
    %16 = arith.truncf %15 : vector<1x32xf32> to vector<1x32xbf16>
    %c0_9 = arith.constant 0 : index
    %c0_10 = arith.constant 0 : index
    %17 = vector.load %arg18[%c0_9, %c0_10] : memref<32x192xbf16, #tpu.memory_space<vmem>>, vector<32x192xbf16>
    %cst_11 = arith.constant dense<0.000000e+00> : vector<1x192xf32>
    %18 = tpu.matmul %16, %17, %cst_11 {dimension_numbers = #tpu.dot_dimension_numbers<[1], [0], [0], [1], [0, 0, 1, 1], [], []>} : vector<1x32xbf16>, vector<32x192xbf16>, vector<1x192xf32> -> vector<1x192xf32>
    %c0_12 = arith.constant 0 : index
    %c0_13 = arith.constant 0 : index
    %19 = vector.load %arg19[%c0_12, %c0_13] : memref<1x192xf32, #tpu.memory_space<vmem>>, vector<1x192xf32>
    %20 = arith.addf %18, %19 : vector<1x192xf32>
    %c0_14 = arith.constant 0 : index
    %c0_15 = arith.constant 0 : index
    %c0_16 = arith.constant 0 : index
    %21 = vector.load %arg4[%c0_14, %c0_15, %c0_16] : memref<3x1x32xf32, #tpu.memory_space<vmem>>, vector<1x1x32xf32>
    %22 = vector.shape_cast %21 : vector<1x1x32xf32> to vector<1x32xf32>
    %c0_17 = arith.constant 0 : index
    %c0_18 = arith.constant 0 : index
    %c0_19 = arith.constant 0 : index
    %23 = vector.load %arg5[%c0_17, %c0_18, %c0_19] : memref<3x1x32xf32, #tpu.memory_space<vmem>>, vector<1x1x32xf32>
    %24 = vector.shape_cast %23 : vector<1x1x32xf32> to vector<1x32xf32>
    %cst_20 = arith.constant dense<0.000000e+00> : vector<8xf32>
    %25 = vector.multi_reduction <add>, %1, %cst_20 [1] : vector<8x32xf32> to vector<8xf32>
    %26 = vector.shape_cast %25 : vector<8xf32> to vector<8x1xf32>
    %cst_21 = arith.constant 3.200000e+01 : f32
    %27 = vector.broadcast %cst_21 : f32 to vector<8x1xf32>
    %28 = arith.divf %26, %27 : vector<8x1xf32>
    %29 = vector.broadcast %28 : vector<8x1xf32> to vector<8x32xf32>
    %30 = arith.subf %1, %29 : vector<8x32xf32>
    %31 = arith.mulf %30, %30 : vector<8x32xf32>
    %cst_22 = arith.constant dense<0.000000e+00> : vector<8xf32>
    %32 = vector.multi_reduction <add>, %31, %cst_22 [1] : vector<8x32xf32> to vector<8xf32>
    %33 = vector.shape_cast %32 : vector<8xf32> to vector<8x1xf32>
    %cst_23 = arith.constant 3.200000e+01 : f32
    %34 = vector.broadcast %cst_23 : f32 to vector<8x1xf32>
    %35 = arith.divf %33, %34 : vector<8x1xf32>
    %36 = vector.broadcast %28 : vector<8x1xf32> to vector<8x32xf32>
    %37 = arith.subf %1, %36 : vector<8x32xf32>
    %cst_24 = arith.constant 9.99999974E-6 : f32
    %38 = vector.broadcast %cst_24 : f32 to vector<8x1xf32>
    %39 = arith.addf %35, %38 : vector<8x1xf32>
    %40 = math.rsqrt %39 : vector<8x1xf32>
    %41 = vector.broadcast %40 : vector<8x1xf32> to vector<8x32xf32>
    %42 = arith.mulf %37, %41 : vector<8x32xf32>
    %43 = vector.broadcast %22 : vector<1x32xf32> to vector<8x32xf32>
    %44 = arith.mulf %42, %43 : vector<8x32xf32>
    %45 = vector.broadcast %24 : vector<1x32xf32> to vector<8x32xf32>
    %46 = arith.addf %44, %45 : vector<8x32xf32>
    %47 = arith.truncf %46 : vector<8x32xf32> to vector<8x32xbf16>
    %c0_25 = arith.constant 0 : index
    %c0_26 = arith.constant 0 : index
    %c0_27 = arith.constant 0 : index
    %48 = vector.load %arg6[%c0_25, %c0_26, %c0_27] : memref<2x32x32xbf16, #tpu.memory_space<vmem>>, vector<1x32x32xbf16>
    %49 = vector.shape_cast %48 : vector<1x32x32xbf16> to vector<32x32xbf16>
    %cst_28 = arith.constant dense<0.000000e+00> : vector<8x32xf32>
    %50 = tpu.matmul %47, %49, %cst_28 {dimension_numbers = #tpu.dot_dimension_numbers<[1], [0], [0], [1], [0, 0, 1, 1], [], []>} : vector<8x32xbf16>, vector<32x32xbf16>, vector<8x32xf32> -> vector<8x32xf32>
    %c0_29 = arith.constant 0 : index
    %c0_30 = arith.constant 0 : index
    %c0_31 = arith.constant 0 : index
    %51 = vector.load %arg7[%c0_29, %c0_30, %c0_31] : memref<2x1x32xf32, #tpu.memory_space<vmem>>, vector<1x1x32xf32>
    %52 = vector.shape_cast %51 : vector<1x1x32xf32> to vector<1x32xf32>
    %53 = vector.broadcast %52 : vector<1x32xf32> to vector<8x32xf32>
    %54 = arith.addf %50, %53 : vector<8x32xf32>
    %55 = arith.truncf %54 : vector<8x32xf32> to vector<8x32xbf16>
    %c1 = arith.constant 1 : index
    %c0_32 = arith.constant 0 : index
    %c0_33 = arith.constant 0 : index
    %56 = vector.load %arg6[%c1, %c0_32, %c0_33] : memref<2x32x32xbf16, #tpu.memory_space<vmem>>, vector<1x32x32xbf16>
    %57 = vector.shape_cast %56 : vector<1x32x32xbf16> to vector<32x32xbf16>
    %cst_34 = arith.constant dense<0.000000e+00> : vector<8x32xf32>
    %58 = tpu.matmul %47, %57, %cst_34 {dimension_numbers = #tpu.dot_dimension_numbers<[1], [0], [0], [1], [0, 0, 1, 1], [], []>} : vector<8x32xbf16>, vector<32x32xbf16>, vector<8x32xf32> -> vector<8x32xf32>
    %c1_35 = arith.constant 1 : index
    %c0_36 = arith.constant 0 : index
    %c0_37 = arith.constant 0 : index
    %59 = vector.load %arg7[%c1_35, %c0_36, %c0_37] : memref<2x1x32xf32, #tpu.memory_space<vmem>>, vector<1x1x32xf32>
    %60 = vector.shape_cast %59 : vector<1x1x32xf32> to vector<1x32xf32>
    %61 = vector.broadcast %60 : vector<1x32xf32> to vector<8x32xf32>
    %62 = arith.addf %58, %61 : vector<8x32xf32>
    %63 = arith.truncf %62 : vector<8x32xf32> to vector<8x32xbf16>
    %c0_38 = arith.constant 0 : index
    %c0_39 = arith.constant 0 : index
    %64 = vector.load %arg8[%c0_38, %c0_39] : memref<32x128xbf16, #tpu.memory_space<vmem>>, vector<32x128xbf16>
    %cst_40 = arith.constant dense<0.000000e+00> : vector<8x128xf32>
    %65 = tpu.matmul %47, %64, %cst_40 {dimension_numbers = #tpu.dot_dimension_numbers<[1], [0], [0], [1], [0, 0, 1, 1], [], []>} : vector<8x32xbf16>, vector<32x128xbf16>, vector<8x128xf32> -> vector<8x128xf32>
    %66 = arith.truncf %65 : vector<8x128xf32> to vector<8x128xbf16>
    %67 = vector.extract_strided_slice %55 {offsets = [0, 0], sizes = [8, 8], strides = [1, 1]} : vector<8x32xbf16> to vector<8x8xbf16>
    %68 = vector.extract_strided_slice %63 {offsets = [0, 0], sizes = [8, 8], strides = [1, 1]} : vector<8x32xbf16> to vector<8x8xbf16>
    %cst_41 = arith.constant dense<0.000000e+00> : vector<8x8xf32>
    %69 = tpu.matmul %67, %68, %cst_41 {dimension_numbers = #tpu.dot_dimension_numbers<[1], [1], [0], [0], [0, 0, 1, 0], [], []>} : vector<8x8xbf16>, vector<8x8xbf16>, vector<8x8xf32> -> vector<8x8xf32>
    %cst_42 = arith.constant dense<0xFF800000> : vector<8xf32>
    %70 = vector.multi_reduction <maximumf>, %69, %cst_42 [1] : vector<8x8xf32> to vector<8xf32>
    %71 = vector.shape_cast %70 : vector<8xf32> to vector<8x1xf32>
    %72 = vector.broadcast %71 : vector<8x1xf32> to vector<8x8xf32>
    %73 = arith.subf %69, %72 : vector<8x8xf32>
    %74 = math.exp %73 : vector<8x8xf32>
    %cst_43 = arith.constant dense<0.000000e+00> : vector<8xf32>
    %75 = vector.multi_reduction <add>, %74, %cst_43 [1] : vector<8x8xf32> to vector<8xf32>
    %76 = vector.shape_cast %75 : vector<8xf32> to vector<8x1xf32>
    %77 = tpu.reciprocal %76 {approx = true} : vector<8x1xf32> -> vector<8x1xf32>
    %78 = vector.broadcast %77 : vector<8x1xf32> to vector<8x8xf32>
    %79 = arith.mulf %74, %78 : vector<8x8xf32>
    %80 = arith.truncf %79 : vector<8x8xf32> to vector<8x8xbf16>
    %81 = vector.extract_strided_slice %66 {offsets = [0, 0], sizes = [8, 32], strides = [1, 1]} : vector<8x128xbf16> to vector<8x32xbf16>
    %cst_44 = arith.constant dense<0.000000e+00> : vector<8x32xf32>
    %82 = tpu.matmul %80, %81, %cst_44 {dimension_numbers = #tpu.dot_dimension_numbers<[1], [0], [0], [1], [0, 0, 1, 1], [], []>} : vector<8x8xbf16>, vector<8x32xbf16>, vector<8x32xf32> -> vector<8x32xf32>
    %83 = vector.extract_strided_slice %55 {offsets = [0, 8], sizes = [8, 8], strides = [1, 1]} : vector<8x32xbf16> to vector<8x8xbf16>
    %84 = vector.extract_strided_slice %63 {offsets = [0, 8], sizes = [8, 8], strides = [1, 1]} : vector<8x32xbf16> to vector<8x8xbf16>
    %cst_45 = arith.constant dense<0.000000e+00> : vector<8x8xf32>
    %85 = tpu.matmul %83, %84, %cst_45 {dimension_numbers = #tpu.dot_dimension_numbers<[1], [1], [0], [0], [0, 0, 1, 0], [], []>} : vector<8x8xbf16>, vector<8x8xbf16>, vector<8x8xf32> -> vector<8x8xf32>
    %cst_46 = arith.constant dense<0xFF800000> : vector<8xf32>
    %86 = vector.multi_reduction <maximumf>, %85, %cst_46 [1] : vector<8x8xf32> to vector<8xf32>
    %87 = vector.shape_cast %86 : vector<8xf32> to vector<8x1xf32>
    %88 = vector.broadcast %87 : vector<8x1xf32> to vector<8x8xf32>
    %89 = arith.subf %85, %88 : vector<8x8xf32>
    %90 = math.exp %89 : vector<8x8xf32>
    %cst_47 = arith.constant dense<0.000000e+00> : vector<8xf32>
    %91 = vector.multi_reduction <add>, %90, %cst_47 [1] : vector<8x8xf32> to vector<8xf32>
    %92 = vector.shape_cast %91 : vector<8xf32> to vector<8x1xf32>
    %93 = tpu.reciprocal %92 {approx = true} : vector<8x1xf32> -> vector<8x1xf32>
    %94 = vector.broadcast %93 : vector<8x1xf32> to vector<8x8xf32>
    %95 = arith.mulf %90, %94 : vector<8x8xf32>
    %96 = arith.truncf %95 : vector<8x8xf32> to vector<8x8xbf16>
    %97 = vector.extract_strided_slice %66 {offsets = [0, 32], sizes = [8, 32], strides = [1, 1]} : vector<8x128xbf16> to vector<8x32xbf16>
    %cst_48 = arith.constant dense<0.000000e+00> : vector<8x32xf32>
    %98 = tpu.matmul %96, %97, %cst_48 {dimension_numbers = #tpu.dot_dimension_numbers<[1], [0], [0], [1], [0, 0, 1, 1], [], []>} : vector<8x8xbf16>, vector<8x32xbf16>, vector<8x32xf32> -> vector<8x32xf32>
    %99 = arith.addf %82, %98 : vector<8x32xf32>
    %100 = vector.extract_strided_slice %55 {offsets = [0, 16], sizes = [8, 8], strides = [1, 1]} : vector<8x32xbf16> to vector<8x8xbf16>
    %101 = vector.extract_strided_slice %63 {offsets = [0, 16], sizes = [8, 8], strides = [1, 1]} : vector<8x32xbf16> to vector<8x8xbf16>
    %cst_49 = arith.constant dense<0.000000e+00> : vector<8x8xf32>
    %102 = tpu.matmul %100, %101, %cst_49 {dimension_numbers = #tpu.dot_dimension_numbers<[1], [1], [0], [0], [0, 0, 1, 0], [], []>} : vector<8x8xbf16>, vector<8x8xbf16>, vector<8x8xf32> -> vector<8x8xf32>
    %cst_50 = arith.constant dense<0xFF800000> : vector<8xf32>
    %103 = vector.multi_reduction <maximumf>, %102, %cst_50 [1] : vector<8x8xf32> to vector<8xf32>
    %104 = vector.shape_cast %103 : vector<8xf32> to vector<8x1xf32>
    %105 = vector.broadcast %104 : vector<8x1xf32> to vector<8x8xf32>
    %106 = arith.subf %102, %105 : vector<8x8xf32>
    %107 = math.exp %106 : vector<8x8xf32>
    %cst_51 = arith.constant dense<0.000000e+00> : vector<8xf32>
    %108 = vector.multi_reduction <add>, %107, %cst_51 [1] : vector<8x8xf32> to vector<8xf32>
    %109 = vector.shape_cast %108 : vector<8xf32> to vector<8x1xf32>
    %110 = tpu.reciprocal %109 {approx = true} : vector<8x1xf32> -> vector<8x1xf32>
    %111 = vector.broadcast %110 : vector<8x1xf32> to vector<8x8xf32>
    %112 = arith.mulf %107, %111 : vector<8x8xf32>
    %113 = arith.truncf %112 : vector<8x8xf32> to vector<8x8xbf16>
    %114 = vector.extract_strided_slice %66 {offsets = [0, 64], sizes = [8, 32], strides = [1, 1]} : vector<8x128xbf16> to vector<8x32xbf16>
    %cst_52 = arith.constant dense<0.000000e+00> : vector<8x32xf32>
    %115 = tpu.matmul %113, %114, %cst_52 {dimension_numbers = #tpu.dot_dimension_numbers<[1], [0], [0], [1], [0, 0, 1, 1], [], []>} : vector<8x8xbf16>, vector<8x32xbf16>, vector<8x32xf32> -> vector<8x32xf32>
    %116 = arith.addf %99, %115 : vector<8x32xf32>
    %117 = vector.extract_strided_slice %55 {offsets = [0, 24], sizes = [8, 8], strides = [1, 1]} : vector<8x32xbf16> to vector<8x8xbf16>
    %118 = vector.extract_strided_slice %63 {offsets = [0, 24], sizes = [8, 8], strides = [1, 1]} : vector<8x32xbf16> to vector<8x8xbf16>
    %cst_53 = arith.constant dense<0.000000e+00> : vector<8x8xf32>
    %119 = tpu.matmul %117, %118, %cst_53 {dimension_numbers = #tpu.dot_dimension_numbers<[1], [1], [0], [0], [0, 0, 1, 0], [], []>} : vector<8x8xbf16>, vector<8x8xbf16>, vector<8x8xf32> -> vector<8x8xf32>
    %cst_54 = arith.constant dense<0xFF800000> : vector<8xf32>
    %120 = vector.multi_reduction <maximumf>, %119, %cst_54 [1] : vector<8x8xf32> to vector<8xf32>
    %121 = vector.shape_cast %120 : vector<8xf32> to vector<8x1xf32>
    %122 = vector.broadcast %121 : vector<8x1xf32> to vector<8x8xf32>
    %123 = arith.subf %119, %122 : vector<8x8xf32>
    %124 = math.exp %123 : vector<8x8xf32>
    %cst_55 = arith.constant dense<0.000000e+00> : vector<8xf32>
    %125 = vector.multi_reduction <add>, %124, %cst_55 [1] : vector<8x8xf32> to vector<8xf32>
    %126 = vector.shape_cast %125 : vector<8xf32> to vector<8x1xf32>
    %127 = tpu.reciprocal %126 {approx = true} : vector<8x1xf32> -> vector<8x1xf32>
    %128 = vector.broadcast %127 : vector<8x1xf32> to vector<8x8xf32>
    %129 = arith.mulf %124, %128 : vector<8x8xf32>
    %130 = arith.truncf %129 : vector<8x8xf32> to vector<8x8xbf16>
    %131 = vector.extract_strided_slice %66 {offsets = [0, 96], sizes = [8, 32], strides = [1, 1]} : vector<8x128xbf16> to vector<8x32xbf16>
    %cst_56 = arith.constant dense<0.000000e+00> : vector<8x32xf32>
    %132 = tpu.matmul %130, %131, %cst_56 {dimension_numbers = #tpu.dot_dimension_numbers<[1], [0], [0], [1], [0, 0, 1, 1], [], []>} : vector<8x8xbf16>, vector<8x32xbf16>, vector<8x32xf32> -> vector<8x32xf32>
    %133 = arith.addf %116, %132 : vector<8x32xf32>
    %c0_57 = arith.constant 0 : index
    %c0_58 = arith.constant 0 : index
    %134 = vector.load %arg9[%c0_57, %c0_58] : memref<1x32xf32, #tpu.memory_space<vmem>>, vector<1x32xf32>
    %135 = vector.broadcast %134 : vector<1x32xf32> to vector<8x32xf32>
    %136 = arith.addf %133, %135 : vector<8x32xf32>
    %137 = vector.extract_strided_slice %20 {offsets = [0, 0], sizes = [1, 32], strides = [1, 1]} : vector<1x192xf32> to vector<1x32xf32>
    %cst_59 = arith.constant 1.000000e+00 : f32
    %138 = vector.broadcast %cst_59 : f32 to vector<1x32xf32>
    %139 = arith.addf %137, %138 : vector<1x32xf32>
    %140 = vector.broadcast %139 : vector<1x32xf32> to vector<8x32xf32>
    %141 = arith.mulf %140, %136 : vector<8x32xf32>
    %142 = arith.addf %1, %141 : vector<8x32xf32>
    %143 = vector.extract_strided_slice %20 {offsets = [0, 32], sizes = [1, 32], strides = [1, 1]} : vector<1x192xf32> to vector<1x32xf32>
    %144 = vector.broadcast %143 : vector<1x32xf32> to vector<8x32xf32>
    %145 = arith.addf %142, %144 : vector<8x32xf32>
    %c1_60 = arith.constant 1 : index
    %c0_61 = arith.constant 0 : index
    %c0_62 = arith.constant 0 : index
    %146 = vector.load %arg4[%c1_60, %c0_61, %c0_62] : memref<3x1x32xf32, #tpu.memory_space<vmem>>, vector<1x1x32xf32>
    %147 = vector.shape_cast %146 : vector<1x1x32xf32> to vector<1x32xf32>
    %c1_63 = arith.constant 1 : index
    %c0_64 = arith.constant 0 : index
    %c0_65 = arith.constant 0 : index
    %148 = vector.load %arg5[%c1_63, %c0_64, %c0_65] : memref<3x1x32xf32, #tpu.memory_space<vmem>>, vector<1x1x32xf32>
    %149 = vector.shape_cast %148 : vector<1x1x32xf32> to vector<1x32xf32>
    %cst_66 = arith.constant dense<0.000000e+00> : vector<8xf32>
    %150 = vector.multi_reduction <add>, %145, %cst_66 [1] : vector<8x32xf32> to vector<8xf32>
    %151 = vector.shape_cast %150 : vector<8xf32> to vector<8x1xf32>
    %cst_67 = arith.constant 3.200000e+01 : f32
    %152 = vector.broadcast %cst_67 : f32 to vector<8x1xf32>
    %153 = arith.divf %151, %152 : vector<8x1xf32>
    %154 = vector.broadcast %153 : vector<8x1xf32> to vector<8x32xf32>
    %155 = arith.subf %145, %154 : vector<8x32xf32>
    %156 = arith.mulf %155, %155 : vector<8x32xf32>
    %cst_68 = arith.constant dense<0.000000e+00> : vector<8xf32>
    %157 = vector.multi_reduction <add>, %156, %cst_68 [1] : vector<8x32xf32> to vector<8xf32>
    %158 = vector.shape_cast %157 : vector<8xf32> to vector<8x1xf32>
    %cst_69 = arith.constant 3.200000e+01 : f32
    %159 = vector.broadcast %cst_69 : f32 to vector<8x1xf32>
    %160 = arith.divf %158, %159 : vector<8x1xf32>
    %161 = vector.broadcast %153 : vector<8x1xf32> to vector<8x32xf32>
    %162 = arith.subf %145, %161 : vector<8x32xf32>
    %cst_70 = arith.constant 9.99999974E-6 : f32
    %163 = vector.broadcast %cst_70 : f32 to vector<8x1xf32>
    %164 = arith.addf %160, %163 : vector<8x1xf32>
    %165 = math.rsqrt %164 : vector<8x1xf32>
    %166 = vector.broadcast %165 : vector<8x1xf32> to vector<8x32xf32>
    %167 = arith.mulf %162, %166 : vector<8x32xf32>
    %168 = vector.broadcast %147 : vector<1x32xf32> to vector<8x32xf32>
    %169 = arith.mulf %167, %168 : vector<8x32xf32>
    %170 = vector.broadcast %149 : vector<1x32xf32> to vector<8x32xf32>
    %171 = arith.addf %169, %170 : vector<8x32xf32>
    %172 = arith.truncf %171 : vector<8x32xf32> to vector<8x32xbf16>
    %c0_71 = arith.constant 0 : index
    %c0_72 = arith.constant 0 : index
    %c0_73 = arith.constant 0 : index
    %173 = vector.load %arg10[%c0_71, %c0_72, %c0_73] : memref<2x32x32xbf16, #tpu.memory_space<vmem>>, vector<1x32x32xbf16>
    %174 = vector.shape_cast %173 : vector<1x32x32xbf16> to vector<32x32xbf16>
    %cst_74 = arith.constant dense<0.000000e+00> : vector<8x32xf32>
    %175 = tpu.matmul %172, %174, %cst_74 {dimension_numbers = #tpu.dot_dimension_numbers<[1], [0], [0], [1], [0, 0, 1, 1], [], []>} : vector<8x32xbf16>, vector<32x32xbf16>, vector<8x32xf32> -> vector<8x32xf32>
    %c0_75 = arith.constant 0 : index
    %c0_76 = arith.constant 0 : index
    %c0_77 = arith.constant 0 : index
    %176 = vector.load %arg11[%c0_75, %c0_76, %c0_77] : memref<2x1x32xf32, #tpu.memory_space<vmem>>, vector<1x1x32xf32>
    %177 = vector.shape_cast %176 : vector<1x1x32xf32> to vector<1x32xf32>
    %178 = vector.broadcast %177 : vector<1x32xf32> to vector<8x32xf32>
    %179 = arith.addf %175, %178 : vector<8x32xf32>
    %180 = arith.truncf %179 : vector<8x32xf32> to vector<8x32xbf16>
    %c1_78 = arith.constant 1 : index
    %c0_79 = arith.constant 0 : index
    %c0_80 = arith.constant 0 : index
    %181 = vector.load %arg10[%c1_78, %c0_79, %c0_80] : memref<2x32x32xbf16, #tpu.memory_space<vmem>>, vector<1x32x32xbf16>
    %182 = vector.shape_cast %181 : vector<1x32x32xbf16> to vector<32x32xbf16>
    %cst_81 = arith.constant dense<0.000000e+00> : vector<8x32xf32>
    %183 = tpu.matmul %4, %182, %cst_81 {dimension_numbers = #tpu.dot_dimension_numbers<[1], [0], [0], [1], [0, 0, 1, 1], [], []>} : vector<8x32xbf16>, vector<32x32xbf16>, vector<8x32xf32> -> vector<8x32xf32>
    %c1_82 = arith.constant 1 : index
    %c0_83 = arith.constant 0 : index
    %c0_84 = arith.constant 0 : index
    %184 = vector.load %arg11[%c1_82, %c0_83, %c0_84] : memref<2x1x32xf32, #tpu.memory_space<vmem>>, vector<1x1x32xf32>
    %185 = vector.shape_cast %184 : vector<1x1x32xf32> to vector<1x32xf32>
    %186 = vector.broadcast %185 : vector<1x32xf32> to vector<8x32xf32>
    %187 = arith.addf %183, %186 : vector<8x32xf32>
    %188 = arith.truncf %187 : vector<8x32xf32> to vector<8x32xbf16>
    %c0_85 = arith.constant 0 : index
    %c0_86 = arith.constant 0 : index
    %189 = vector.load %arg12[%c0_85, %c0_86] : memref<32x128xbf16, #tpu.memory_space<vmem>>, vector<32x128xbf16>
    %cst_87 = arith.constant dense<0.000000e+00> : vector<8x128xf32>
    %190 = tpu.matmul %4, %189, %cst_87 {dimension_numbers = #tpu.dot_dimension_numbers<[1], [0], [0], [1], [0, 0, 1, 1], [], []>} : vector<8x32xbf16>, vector<32x128xbf16>, vector<8x128xf32> -> vector<8x128xf32>
    %191 = arith.truncf %190 : vector<8x128xf32> to vector<8x128xbf16>
    %192 = vector.extract_strided_slice %180 {offsets = [0, 0], sizes = [8, 8], strides = [1, 1]} : vector<8x32xbf16> to vector<8x8xbf16>
    %193 = vector.extract_strided_slice %188 {offsets = [0, 0], sizes = [8, 8], strides = [1, 1]} : vector<8x32xbf16> to vector<8x8xbf16>
    %cst_88 = arith.constant dense<0.000000e+00> : vector<8x8xf32>
    %194 = tpu.matmul %192, %193, %cst_88 {dimension_numbers = #tpu.dot_dimension_numbers<[1], [1], [0], [0], [0, 0, 1, 0], [], []>} : vector<8x8xbf16>, vector<8x8xbf16>, vector<8x8xf32> -> vector<8x8xf32>
    %cst_89 = arith.constant dense<0xFF800000> : vector<8xf32>
    %195 = vector.multi_reduction <maximumf>, %194, %cst_89 [1] : vector<8x8xf32> to vector<8xf32>
    %196 = vector.shape_cast %195 : vector<8xf32> to vector<8x1xf32>
    %197 = vector.broadcast %196 : vector<8x1xf32> to vector<8x8xf32>
    %198 = arith.subf %194, %197 : vector<8x8xf32>
    %199 = math.exp %198 : vector<8x8xf32>
    %cst_90 = arith.constant dense<0.000000e+00> : vector<8xf32>
    %200 = vector.multi_reduction <add>, %199, %cst_90 [1] : vector<8x8xf32> to vector<8xf32>
    %201 = vector.shape_cast %200 : vector<8xf32> to vector<8x1xf32>
    %202 = tpu.reciprocal %201 {approx = true} : vector<8x1xf32> -> vector<8x1xf32>
    %203 = vector.broadcast %202 : vector<8x1xf32> to vector<8x8xf32>
    %204 = arith.mulf %199, %203 : vector<8x8xf32>
    %205 = arith.truncf %204 : vector<8x8xf32> to vector<8x8xbf16>
    %206 = vector.extract_strided_slice %191 {offsets = [0, 0], sizes = [8, 32], strides = [1, 1]} : vector<8x128xbf16> to vector<8x32xbf16>
    %cst_91 = arith.constant dense<0.000000e+00> : vector<8x32xf32>
    %207 = tpu.matmul %205, %206, %cst_91 {dimension_numbers = #tpu.dot_dimension_numbers<[1], [0], [0], [1], [0, 0, 1, 1], [], []>} : vector<8x8xbf16>, vector<8x32xbf16>, vector<8x32xf32> -> vector<8x32xf32>
    %208 = vector.extract_strided_slice %180 {offsets = [0, 8], sizes = [8, 8], strides = [1, 1]} : vector<8x32xbf16> to vector<8x8xbf16>
    %209 = vector.extract_strided_slice %188 {offsets = [0, 8], sizes = [8, 8], strides = [1, 1]} : vector<8x32xbf16> to vector<8x8xbf16>
    %cst_92 = arith.constant dense<0.000000e+00> : vector<8x8xf32>
    %210 = tpu.matmul %208, %209, %cst_92 {dimension_numbers = #tpu.dot_dimension_numbers<[1], [1], [0], [0], [0, 0, 1, 0], [], []>} : vector<8x8xbf16>, vector<8x8xbf16>, vector<8x8xf32> -> vector<8x8xf32>
    %cst_93 = arith.constant dense<0xFF800000> : vector<8xf32>
    %211 = vector.multi_reduction <maximumf>, %210, %cst_93 [1] : vector<8x8xf32> to vector<8xf32>
    %212 = vector.shape_cast %211 : vector<8xf32> to vector<8x1xf32>
    %213 = vector.broadcast %212 : vector<8x1xf32> to vector<8x8xf32>
    %214 = arith.subf %210, %213 : vector<8x8xf32>
    %215 = math.exp %214 : vector<8x8xf32>
    %cst_94 = arith.constant dense<0.000000e+00> : vector<8xf32>
    %216 = vector.multi_reduction <add>, %215, %cst_94 [1] : vector<8x8xf32> to vector<8xf32>
    %217 = vector.shape_cast %216 : vector<8xf32> to vector<8x1xf32>
    %218 = tpu.reciprocal %217 {approx = true} : vector<8x1xf32> -> vector<8x1xf32>
    %219 = vector.broadcast %218 : vector<8x1xf32> to vector<8x8xf32>
    %220 = arith.mulf %215, %219 : vector<8x8xf32>
    %221 = arith.truncf %220 : vector<8x8xf32> to vector<8x8xbf16>
    %222 = vector.extract_strided_slice %191 {offsets = [0, 32], sizes = [8, 32], strides = [1, 1]} : vector<8x128xbf16> to vector<8x32xbf16>
    %cst_95 = arith.constant dense<0.000000e+00> : vector<8x32xf32>
    %223 = tpu.matmul %221, %222, %cst_95 {dimension_numbers = #tpu.dot_dimension_numbers<[1], [0], [0], [1], [0, 0, 1, 1], [], []>} : vector<8x8xbf16>, vector<8x32xbf16>, vector<8x32xf32> -> vector<8x32xf32>
    %224 = arith.addf %207, %223 : vector<8x32xf32>
    %225 = vector.extract_strided_slice %180 {offsets = [0, 16], sizes = [8, 8], strides = [1, 1]} : vector<8x32xbf16> to vector<8x8xbf16>
    %226 = vector.extract_strided_slice %188 {offsets = [0, 16], sizes = [8, 8], strides = [1, 1]} : vector<8x32xbf16> to vector<8x8xbf16>
    %cst_96 = arith.constant dense<0.000000e+00> : vector<8x8xf32>
    %227 = tpu.matmul %225, %226, %cst_96 {dimension_numbers = #tpu.dot_dimension_numbers<[1], [1], [0], [0], [0, 0, 1, 0], [], []>} : vector<8x8xbf16>, vector<8x8xbf16>, vector<8x8xf32> -> vector<8x8xf32>
    %cst_97 = arith.constant dense<0xFF800000> : vector<8xf32>
    %228 = vector.multi_reduction <maximumf>, %227, %cst_97 [1] : vector<8x8xf32> to vector<8xf32>
    %229 = vector.shape_cast %228 : vector<8xf32> to vector<8x1xf32>
    %230 = vector.broadcast %229 : vector<8x1xf32> to vector<8x8xf32>
    %231 = arith.subf %227, %230 : vector<8x8xf32>
    %232 = math.exp %231 : vector<8x8xf32>
    %cst_98 = arith.constant dense<0.000000e+00> : vector<8xf32>
    %233 = vector.multi_reduction <add>, %232, %cst_98 [1] : vector<8x8xf32> to vector<8xf32>
    %234 = vector.shape_cast %233 : vector<8xf32> to vector<8x1xf32>
    %235 = tpu.reciprocal %234 {approx = true} : vector<8x1xf32> -> vector<8x1xf32>
    %236 = vector.broadcast %235 : vector<8x1xf32> to vector<8x8xf32>
    %237 = arith.mulf %232, %236 : vector<8x8xf32>
    %238 = arith.truncf %237 : vector<8x8xf32> to vector<8x8xbf16>
    %239 = vector.extract_strided_slice %191 {offsets = [0, 64], sizes = [8, 32], strides = [1, 1]} : vector<8x128xbf16> to vector<8x32xbf16>
    %cst_99 = arith.constant dense<0.000000e+00> : vector<8x32xf32>
    %240 = tpu.matmul %238, %239, %cst_99 {dimension_numbers = #tpu.dot_dimension_numbers<[1], [0], [0], [1], [0, 0, 1, 1], [], []>} : vector<8x8xbf16>, vector<8x32xbf16>, vector<8x32xf32> -> vector<8x32xf32>
    %241 = arith.addf %224, %240 : vector<8x32xf32>
    %242 = vector.extract_strided_slice %180 {offsets = [0, 24], sizes = [8, 8], strides = [1, 1]} : vector<8x32xbf16> to vector<8x8xbf16>
    %243 = vector.extract_strided_slice %188 {offsets = [0, 24], sizes = [8, 8], strides = [1, 1]} : vector<8x32xbf16> to vector<8x8xbf16>
    %cst_100 = arith.constant dense<0.000000e+00> : vector<8x8xf32>
    %244 = tpu.matmul %242, %243, %cst_100 {dimension_numbers = #tpu.dot_dimension_numbers<[1], [1], [0], [0], [0, 0, 1, 0], [], []>} : vector<8x8xbf16>, vector<8x8xbf16>, vector<8x8xf32> -> vector<8x8xf32>
    %cst_101 = arith.constant dense<0xFF800000> : vector<8xf32>
    %245 = vector.multi_reduction <maximumf>, %244, %cst_101 [1] : vector<8x8xf32> to vector<8xf32>
    %246 = vector.shape_cast %245 : vector<8xf32> to vector<8x1xf32>
    %247 = vector.broadcast %246 : vector<8x1xf32> to vector<8x8xf32>
    %248 = arith.subf %244, %247 : vector<8x8xf32>
    %249 = math.exp %248 : vector<8x8xf32>
    %cst_102 = arith.constant dense<0.000000e+00> : vector<8xf32>
    %250 = vector.multi_reduction <add>, %249, %cst_102 [1] : vector<8x8xf32> to vector<8xf32>
    %251 = vector.shape_cast %250 : vector<8xf32> to vector<8x1xf32>
    %252 = tpu.reciprocal %251 {approx = true} : vector<8x1xf32> -> vector<8x1xf32>
    %253 = vector.broadcast %252 : vector<8x1xf32> to vector<8x8xf32>
    %254 = arith.mulf %249, %253 : vector<8x8xf32>
    %255 = arith.truncf %254 : vector<8x8xf32> to vector<8x8xbf16>
    %256 = vector.extract_strided_slice %191 {offsets = [0, 96], sizes = [8, 32], strides = [1, 1]} : vector<8x128xbf16> to vector<8x32xbf16>
    %cst_103 = arith.constant dense<0.000000e+00> : vector<8x32xf32>
    %257 = tpu.matmul %255, %256, %cst_103 {dimension_numbers = #tpu.dot_dimension_numbers<[1], [0], [0], [1], [0, 0, 1, 1], [], []>} : vector<8x8xbf16>, vector<8x32xbf16>, vector<8x32xf32> -> vector<8x32xf32>
    %258 = arith.addf %241, %257 : vector<8x32xf32>
    %c0_104 = arith.constant 0 : index
    %c0_105 = arith.constant 0 : index
    %259 = vector.load %arg13[%c0_104, %c0_105] : memref<1x32xf32, #tpu.memory_space<vmem>>, vector<1x32xf32>
    %260 = vector.broadcast %259 : vector<1x32xf32> to vector<8x32xf32>
    %261 = arith.addf %258, %260 : vector<8x32xf32>
    %262 = vector.extract_strided_slice %20 {offsets = [0, 64], sizes = [1, 32], strides = [1, 1]} : vector<1x192xf32> to vector<1x32xf32>
    %cst_106 = arith.constant 1.000000e+00 : f32
    %263 = vector.broadcast %cst_106 : f32 to vector<1x32xf32>
    %264 = arith.addf %262, %263 : vector<1x32xf32>
    %265 = vector.broadcast %264 : vector<1x32xf32> to vector<8x32xf32>
    %266 = arith.mulf %265, %261 : vector<8x32xf32>
    %267 = arith.addf %145, %266 : vector<8x32xf32>
    %268 = vector.extract_strided_slice %20 {offsets = [0, 96], sizes = [1, 32], strides = [1, 1]} : vector<1x192xf32> to vector<1x32xf32>
    %269 = vector.broadcast %268 : vector<1x32xf32> to vector<8x32xf32>
    %270 = arith.addf %267, %269 : vector<8x32xf32>
    %c2 = arith.constant 2 : index
    %c0_107 = arith.constant 0 : index
    %c0_108 = arith.constant 0 : index
    %271 = vector.load %arg4[%c2, %c0_107, %c0_108] : memref<3x1x32xf32, #tpu.memory_space<vmem>>, vector<1x1x32xf32>
    %272 = vector.shape_cast %271 : vector<1x1x32xf32> to vector<1x32xf32>
    %c2_109 = arith.constant 2 : index
    %c0_110 = arith.constant 0 : index
    %c0_111 = arith.constant 0 : index
    %273 = vector.load %arg5[%c2_109, %c0_110, %c0_111] : memref<3x1x32xf32, #tpu.memory_space<vmem>>, vector<1x1x32xf32>
    %274 = vector.shape_cast %273 : vector<1x1x32xf32> to vector<1x32xf32>
    %cst_112 = arith.constant dense<0.000000e+00> : vector<8xf32>
    %275 = vector.multi_reduction <add>, %270, %cst_112 [1] : vector<8x32xf32> to vector<8xf32>
    %276 = vector.shape_cast %275 : vector<8xf32> to vector<8x1xf32>
    %cst_113 = arith.constant 3.200000e+01 : f32
    %277 = vector.broadcast %cst_113 : f32 to vector<8x1xf32>
    %278 = arith.divf %276, %277 : vector<8x1xf32>
    %279 = vector.broadcast %278 : vector<8x1xf32> to vector<8x32xf32>
    %280 = arith.subf %270, %279 : vector<8x32xf32>
    %281 = arith.mulf %280, %280 : vector<8x32xf32>
    %cst_114 = arith.constant dense<0.000000e+00> : vector<8xf32>
    %282 = vector.multi_reduction <add>, %281, %cst_114 [1] : vector<8x32xf32> to vector<8xf32>
    %283 = vector.shape_cast %282 : vector<8xf32> to vector<8x1xf32>
    %cst_115 = arith.constant 3.200000e+01 : f32
    %284 = vector.broadcast %cst_115 : f32 to vector<8x1xf32>
    %285 = arith.divf %283, %284 : vector<8x1xf32>
    %286 = vector.broadcast %278 : vector<8x1xf32> to vector<8x32xf32>
    %287 = arith.subf %270, %286 : vector<8x32xf32>
    %cst_116 = arith.constant 9.99999974E-6 : f32
    %288 = vector.broadcast %cst_116 : f32 to vector<8x1xf32>
    %289 = arith.addf %285, %288 : vector<8x1xf32>
    %290 = math.rsqrt %289 : vector<8x1xf32>
    %291 = vector.broadcast %290 : vector<8x1xf32> to vector<8x32xf32>
    %292 = arith.mulf %287, %291 : vector<8x32xf32>
    %293 = vector.broadcast %272 : vector<1x32xf32> to vector<8x32xf32>
    %294 = arith.mulf %292, %293 : vector<8x32xf32>
    %295 = vector.broadcast %274 : vector<1x32xf32> to vector<8x32xf32>
    %296 = arith.addf %294, %295 : vector<8x32xf32>
    %297 = arith.truncf %296 : vector<8x32xf32> to vector<8x32xbf16>
    %c0_117 = arith.constant 0 : index
    %c0_118 = arith.constant 0 : index
    %298 = vector.load %arg14[%c0_117, %c0_118] : memref<32x64xbf16, #tpu.memory_space<vmem>>, vector<32x64xbf16>
    %cst_119 = arith.constant dense<0.000000e+00> : vector<8x64xf32>
    %299 = tpu.matmul %297, %298, %cst_119 {dimension_numbers = #tpu.dot_dimension_numbers<[1], [0], [0], [1], [0, 0, 1, 1], [], []>} : vector<8x32xbf16>, vector<32x64xbf16>, vector<8x64xf32> -> vector<8x64xf32>
    %c0_120 = arith.constant 0 : index
    %c0_121 = arith.constant 0 : index
    %300 = vector.load %arg15[%c0_120, %c0_121] : memref<1x64xf32, #tpu.memory_space<vmem>>, vector<1x64xf32>
    %301 = vector.broadcast %300 : vector<1x64xf32> to vector<8x64xf32>
    %302 = arith.addf %299, %301 : vector<8x64xf32>
    %cst_122 = arith.constant 0.000000e+00 : f32
    %303 = vector.broadcast %cst_122 : f32 to vector<8x64xf32>
    %304 = arith.maximumf %302, %303 : vector<8x64xf32>
    %305 = arith.truncf %304 : vector<8x64xf32> to vector<8x64xbf16>
    %c0_123 = arith.constant 0 : index
    %c0_124 = arith.constant 0 : index
    %306 = vector.load %arg16[%c0_123, %c0_124] : memref<64x32xbf16, #tpu.memory_space<vmem>>, vector<64x32xbf16>
    %cst_125 = arith.constant dense<0.000000e+00> : vector<8x32xf32>
    %307 = tpu.matmul %305, %306, %cst_125 {dimension_numbers = #tpu.dot_dimension_numbers<[1], [0], [0], [1], [0, 0, 1, 1], [], []>} : vector<8x64xbf16>, vector<64x32xbf16>, vector<8x32xf32> -> vector<8x32xf32>
    %c0_126 = arith.constant 0 : index
    %c0_127 = arith.constant 0 : index
    %308 = vector.load %arg17[%c0_126, %c0_127] : memref<1x32xf32, #tpu.memory_space<vmem>>, vector<1x32xf32>
    %309 = vector.broadcast %308 : vector<1x32xf32> to vector<8x32xf32>
    %310 = arith.addf %307, %309 : vector<8x32xf32>
    %311 = vector.extract_strided_slice %20 {offsets = [0, 128], sizes = [1, 32], strides = [1, 1]} : vector<1x192xf32> to vector<1x32xf32>
    %cst_128 = arith.constant 1.000000e+00 : f32
    %312 = vector.broadcast %cst_128 : f32 to vector<1x32xf32>
    %313 = arith.addf %311, %312 : vector<1x32xf32>
    %314 = vector.broadcast %313 : vector<1x32xf32> to vector<8x32xf32>
    %315 = arith.mulf %314, %310 : vector<8x32xf32>
    %316 = arith.addf %270, %315 : vector<8x32xf32>
    %317 = vector.extract_strided_slice %20 {offsets = [0, 160], sizes = [1, 32], strides = [1, 1]} : vector<1x192xf32> to vector<1x32xf32>
    %318 = vector.broadcast %317 : vector<1x32xf32> to vector<8x32xf32>
    %319 = arith.addf %316, %318 : vector<8x32xf32>
    %c0_129 = arith.constant 0 : index
    %c0_130 = arith.constant 0 : index
    %c0_131 = arith.constant 0 : index
    %320 = vector.load %arg20[%c0_129, %c0_130, %c0_131] : memref<1x8x32xf32, #tpu.memory_space<vmem>>, vector<1x8x32xf32>
    %321 = vector.shape_cast %320 : vector<1x8x32xf32> to vector<8x32xf32>
    %322 = vector.shape_cast %319 : vector<8x32xf32> to vector<1x8x32xf32>
    tpu.vector_store %arg20[%c0_129, %c0_130, %c0_131], %322 {strides = array<i32>} : memref<1x8x32xf32, #tpu.memory_space<vmem>>, vector<1x8x32xf32>,
    return
  }
  func.func @transform_0(%arg0: i32) -> (i32, i32, i32) {
    %c0_i32 = arith.constant 0 : i32
    %c0_i32_0 = arith.constant 0 : i32
    %c0_i32_1 = arith.constant 0 : i32
    return %arg0, %c0_i32, %c0_i32_0 : i32, i32, i32
  }
  func.func @transform_1(%arg0: i32) -> (i32, i32, i32) {
    %c0_i32 = arith.constant 0 : i32
    %c0_i32_0 = arith.constant 0 : i32
    %c0_i32_1 = arith.constant 0 : i32
    return %arg0, %c0_i32, %c0_i32_0 : i32, i32, i32
  }
  func.func @transform_2(%arg0: i32) -> (i32, i32, i32) {
    %c0_i32 = arith.constant 0 : i32
    %c0_i32_0 = arith.constant 0 : i32
    %c0_i32_1 = arith.constant 0 : i32
    return %arg0, %c0_i32, %c0_i32_0 : i32, i32, i32
  }
  func.func @transform_3(%arg0: i32) -> (i32, i32, i32) {
    %c0_i32 = arith.constant 0 : i32
    %c0_i32_0 = arith.constant 0 : i32
    %c0_i32_1 = arith.constant 0 : i32
    %c0_i32_2 = arith.constant 0 : i32
    return %c0_i32, %c0_i32_0, %c0_i32_1 : i32, i32, i32
  }
  func.func @transform_4(%arg0: i32) -> (i32, i32, i32) {
    %c0_i32 = arith.constant 0 : i32
    %c0_i32_0 = arith.constant 0 : i32
    %c0_i32_1 = arith.constant 0 : i32
    %c0_i32_2 = arith.constant 0 : i32
    return %c0_i32, %c0_i32_0, %c0_i32_1 : i32, i32, i32
  }
  func.func @transform_5(%arg0: i32) -> (i32, i32, i32) {
    %c0_i32 = arith.constant 0 : i32
    %c0_i32_0 = arith.constant 0 : i32
    %c0_i32_1 = arith.constant 0 : i32
    %c0_i32_2 = arith.constant 0 : i32
    return %c0_i32, %c0_i32_0, %c0_i32_1 : i32, i32, i32
  }
  func.func @transform_6(%arg0: i32) -> (i32, i32, i32) {
    %c0_i32 = arith.constant 0 : i32
    %c0_i32_0 = arith.constant 0 : i32
    %c0_i32_1 = arith.constant 0 : i32
    %c0_i32_2 = arith.constant 0 : i32
    return %c0_i32, %c0_i32_0, %c0_i32_1 : i32, i32, i32
  }
  func.func @transform_7(%arg0: i32) -> (i32, i32) {
    %c0_i32 = arith.constant 0 : i32
    %c0_i32_0 = arith.constant 0 : i32
    %c0_i32_1 = arith.constant 0 : i32
    return %c0_i32, %c0_i32_0 : i32, i32
  }
  func.func @transform_8(%arg0: i32) -> (i32, i32) {
    %c0_i32 = arith.constant 0 : i32
    %c0_i32_0 = arith.constant 0 : i32
    %c0_i32_1 = arith.constant 0 : i32
    return %c0_i32, %c0_i32_0 : i32, i32
  }
  func.func @transform_9(%arg0: i32) -> (i32, i32, i32) {
    %c0_i32 = arith.constant 0 : i32
    %c0_i32_0 = arith.constant 0 : i32
    %c0_i32_1 = arith.constant 0 : i32
    %c0_i32_2 = arith.constant 0 : i32
    return %c0_i32, %c0_i32_0, %c0_i32_1 : i32, i32, i32
  }
  func.func @transform_10(%arg0: i32) -> (i32, i32, i32) {
    %c0_i32 = arith.constant 0 : i32
    %c0_i32_0 = arith.constant 0 : i32
    %c0_i32_1 = arith.constant 0 : i32
    %c0_i32_2 = arith.constant 0 : i32
    return %c0_i32, %c0_i32_0, %c0_i32_1 : i32, i32, i32
  }
  func.func @transform_11(%arg0: i32) -> (i32, i32) {
    %c0_i32 = arith.constant 0 : i32
    %c0_i32_0 = arith.constant 0 : i32
    %c0_i32_1 = arith.constant 0 : i32
    return %c0_i32, %c0_i32_0 : i32, i32
  }
  func.func @transform_12(%arg0: i32) -> (i32, i32) {
    %c0_i32 = arith.constant 0 : i32
    %c0_i32_0 = arith.constant 0 : i32
    %c0_i32_1 = arith.constant 0 : i32
    return %c0_i32, %c0_i32_0 : i32, i32
  }
  func.func @transform_13(%arg0: i32) -> (i32, i32) {
    %c0_i32 = arith.constant 0 : i32
    %c0_i32_0 = arith.constant 0 : i32
    %c0_i32_1 = arith.constant 0 : i32
    return %c0_i32, %c0_i32_0 : i32, i32
  }
  func.func @transform_14(%arg0: i32) -> (i32, i32) {
    %c0_i32 = arith.constant 0 : i32
    %c0_i32_0 = arith.constant 0 : i32
    %c0_i32_1 = arith.constant 0 : i32
    return %c0_i32, %c0_i32_0 : i32, i32
  }
  func.func @transform_15(%arg0: i32) -> (i32, i32) {
    %c0_i32 = arith.constant 0 : i32
    %c0_i32_0 = arith.constant 0 : i32
    %c0_i32_1 = arith.constant 0 : i32
    return %c0_i32, %c0_i32_0 : i32, i32
  }
  func.func @transform_16(%arg0: i32) -> (i32, i32) {
    %c0_i32 = arith.constant 0 : i32
    %c0_i32_0 = arith.constant 0 : i32
    %c0_i32_1 = arith.constant 0 : i32
    return %c0_i32, %c0_i32_0 : i32, i32
  }
  func.func @transform_17(%arg0: i32) -> (i32, i32) {
    %c0_i32 = arith.constant 0 : i32
    %c0_i32_0 = arith.constant 0 : i32
    %c0_i32_1 = arith.constant 0 : i32
    return %c0_i32, %c0_i32_0 : i32, i32
  }
  func.func @transform_18(%arg0: i32) -> (i32, i32) {
    %c0_i32 = arith.constant 0 : i32
    %c0_i32_0 = arith.constant 0 : i32
    %c0_i32_1 = arith.constant 0 : i32
    return %c0_i32, %c0_i32_0 : i32, i32
  }
  func.func @transform_19(%arg0: i32) -> (i32, i32, i32) {
    %c0_i32 = arith.constant 0 : i32
    %c0_i32_0 = arith.constant 0 : i32
    %c0_i32_1 = arith.constant 0 : i32
    return %arg0, %c0_i32, %c0_i32_0 : i32, i32, i32
  }
}

</mosaic_0001>

<llo_original>
// kernel: tpu_custom_call.1
$region0: #{tpu_custom_call.1}
  #allocation0 [shape = 'u32[]', space=smem, size = 0x4, offset = 0x4, fixed_abs, tag = 'smem constant byte address 0x4 - core index']
  #allocation1 [shape = 'u32[144,128]{1,0:T(1,128)}', space=vmem, size = 0x12000, scoped, tag = 'internal scratch']
  %s0 = inlined_call_operand.hbm [shape: f32[2,8,32], index: 0, kind: input, shape index: {}]
  %s1 = inlined_call_operand.hbm [shape: f32[2,8,32], index: 1, kind: input, shape index: {}]
  %s2 = inlined_call_operand.hbm [shape: f32[2,1,32], index: 2, kind: input, shape index: {}]
  %s3 = inlined_call_operand.hbm [shape: f32[3,1,32], index: 3, kind: input, shape index: {}]
  %s4 = inlined_call_operand.hbm [shape: f32[3,1,32], index: 4, kind: input, shape index: {}]
  %s5 = inlined_call_operand.vmem [shape: bf16[2,32,32], index: 5, kind: input, shape index: {}]
  %s6 = inlined_call_operand.hbm [shape: f32[2,1,32], index: 6, kind: input, shape index: {}]
  %s7 = inlined_call_operand.hbm [shape: bf16[32,128], index: 7, kind: input, shape index: {}]
  %s8 = inlined_call_operand.vmem [shape: f32[1,32], index: 8, kind: input, shape index: {}]
  %s9 = inlined_call_operand.vmem [shape: bf16[2,32,32], index: 9, kind: input, shape index: {}]
  %s10 = inlined_call_operand.hbm [shape: f32[2,1,32], index: 10, kind: input, shape index: {}]
  %s11 = inlined_call_operand.hbm [shape: bf16[32,128], index: 11, kind: input, shape index: {}]
  %s12 = inlined_call_operand.hbm [shape: f32[1,32], index: 12, kind: input, shape index: {}]
  %s13 = inlined_call_operand.hbm [shape: bf16[32,64], index: 13, kind: input, shape index: {}]
  %s14 = inlined_call_operand.vmem [shape: f32[1,64], index: 14, kind: input, shape index: {}]
  %s15 = inlined_call_operand.vmem [shape: bf16[64,32], index: 15, kind: input, shape index: {}]
  %s16 = inlined_call_operand.vmem [shape: f32[1,32], index: 16, kind: input, shape index: {}]
  %s17 = inlined_call_operand.vmem [shape: bf16[32,192], index: 17, kind: input, shape index: {}]
  %s18 = inlined_call_operand.vmem [shape: f32[1,192], index: 18, kind: input, shape index: {}]
  %s19 = inlined_call_operand.hbm [shape: f32[2,8,32], index: 19, kind: output, shape index: {}]
  %s20 = sld [smem:[#allocation0]]
  $region153: #{tpu_custom_call.1} parent=0
    _
  %s22 = ssub.s32 1, %s20
  %s23 = scalar_select 0, %s22, %s20
  $region1: #{tpu_custom_call.1} parent=0
    #allocation2 [shape = 'u8[8192]{0}', space=vmem, size = 0x2000, scoped, tag = 'input window, operand 0']
    #allocation3 [shape = 's32[2]{0}', space=sflag, size = 0x8, scoped, tag = 'scoped memory for tpu_custom_call.1']
    #allocation4 [shape = 's32[2]{0}', space=sflag, size = 0x8, scoped, tag = 'scoped memory for tpu_custom_call.1']
    #allocation5 [shape = 'u8[8192]{0}', space=vmem, size = 0x2000, scoped, tag = 'input window, operand 1']
    #allocation6 [shape = 's32[2]{0}', space=sflag, size = 0x8, scoped, tag = 'scoped memory for tpu_custom_call.1']
    #allocation7 [shape = 'u8[1024]{0}', space=vmem, size = 0x400, scoped, tag = 'input window, operand 2']
    #allocation8 [shape = 'u8[1536]{0}', space=vmem, size = 0x800, scoped, tag = 'input window, operand 3, single buffered']
    #allocation9 [shape = 's32[1]{0}', space=sflag, size = 0x4, scoped, tag = 'scoped memory for tpu_custom_call.1']
    #allocation10 [shape = 'u8[1536]{0}', space=vmem, size = 0x800, scoped, tag = 'input window, operand 4, single buffered']
    #allocation11 [shape = 'u8[1024]{0}', space=vmem, size = 0x400, scoped, tag = 'input window, operand 6, single buffered']
    #allocation12 [shape = 's32[1]{0}', space=sflag, size = 0x4, scoped, tag = 'scoped memory for tpu_custom_call.1']
    #allocation13 [shape = 'u8[8192]{0}', space=vmem, size = 0x2000, scoped, tag = 'input window, operand 7, single buffered']
    #allocation14 [shape = 'u8[1024]{0}', space=vmem, size = 0x400, scoped, tag = 'input window, operand 10, single buffered']
    #allocation15 [shape = 's32[1]{0}', space=sflag, size = 0x4, scoped, tag = 'scoped memory for tpu_custom_call.1']
    #allocation16 [shape = 'u8[8192]{0}', space=vmem, size = 0x2000, scoped, tag = 'input window, operand 11, single buffered']
    #allocation17 [shape = 'u8[512]{0}', space=vmem, size = 0x400, scoped, tag = 'input window, operand 12, single buffered']
    #allocation18 [shape = 's32[1]{0}', space=sflag, size = 0x4, scoped, tag = 'scoped memory for tpu_custom_call.1']
    #allocation19 [shape = 'u8[8192]{0}', space=vmem, size = 0x2000, scoped, tag = 'input window, operand 13, single buffered']
    #allocation20 [shape = 'u8[8192]{0}', space=vmem, size = 0x2000, scoped, tag = 'output window, operand 0']
    %24 = vsyncpa [#allocation3], 0
    %s25 = scalar_lea.sflag [#allocation3], 1
    %26 = vsyncpa %s25, 0
    %27 = vsyncpa [#allocation6], 0
    %s28 = scalar_lea.sflag [#allocation6], 1
    %29 = vsyncpa %s28, 0
    %30 = vsyncpa [#allocation9], 0
    %31 = vsyncpa [#allocation12], 0
    %32 = vsyncpa [#allocation15], 0
    %33 = vsyncpa [#allocation18], 0
    %34 = vsyncpa [#allocation4], 0
    %s35 = scalar_lea.sflag [#allocation4], 1
    %36 = vsyncpa %s35, 0
    loop: start=0, step=1, limit=4
    $region2: #{tpu_custom_call.1} parent=1 // loop_pre_header
      _
    $region3: #{tpu_custom_call.1} parent=1 // loop_header
      %s38 = sphi 0, %s42
      %p39 = scmp.ge.s32.totalorder %s38, 4
      %s48 = sphi 0, %s50
      %s51 = sphi 0, %s48
      %s52 = sphi 0, %s51
      %s68 = sphi 0, %s52
      %s74 = sphi 0, %s76
      %s77 = sphi 0, %s74
      %s78 = sphi 0, %s77
      %s94 = sphi 0, %s78
      %s100 = sphi 0, %s102
      %s103 = sphi 0, %s100
      %s104 = sphi 0, %s103
      %s120 = sphi 0, %s104
      %s124 = sphi 0, %s124
      %s126 = sphi 0, %s124
      %s127 = sphi 0, %s126
      %s141 = sphi 0, %s127
      %s145 = sphi 0, %s145
      %s147 = sphi 0, %s145
      %s148 = sphi 0, %s147
      %s162 = sphi 0, %s148
      %s166 = sphi 0, %s166
      %s168 = sphi 0, %s166
      %s169 = sphi 0, %s168
      %s183 = sphi 0, %s169
      %s187 = sphi 0, %s187
      %s189 = sphi 0, %s187
      %s190 = sphi 0, %s189
      %s204 = sphi 0, %s190
      %s208 = sphi 0, %s208
      %s210 = sphi 0, %s208
      %s211 = sphi 0, %s210
      %s225 = sphi 0, %s211
      %s229 = sphi 0, %s229
      %s231 = sphi 0, %s229
      %s232 = sphi 0, %s231
      %s246 = sphi 0, %s232
      %s250 = sphi 0, %s250
      %s252 = sphi 0, %s250
      %s253 = sphi 0, %s252
      %s267 = sphi 0, %s253
      %s271 = sphi 0, %s271
      %s273 = sphi 0, %s271
      %s274 = sphi 0, %s273
      %s288 = sphi 0, %s274
      %s292 = sphi 0, %s292
      %s294 = sphi 0, %s292
      %s295 = sphi 0, %s294
      %s309 = sphi 0, %s295
      %s313 = sphi 0, %s313
      %s315 = sphi 0, %s313
      %s316 = sphi 0, %s315
      %s330 = sphi 0, %s316
      %s334 = sphi 0, %s334
      %s336 = sphi 0, %s334
      %s337 = sphi 0, %s336
      %s351 = sphi 0, %s337
      %s355 = sphi 0, %s355
      %s357 = sphi 0, %s355
      %s358 = sphi 0, %s357
      %s372 = sphi 0, %s358
      %s376 = sphi 0, %s376
      %s378 = sphi 0, %s376
      %s379 = sphi 0, %s378
      %s393 = sphi 0, %s379
      %s397 = sphi 0, %s397
      %s399 = sphi 0, %s397
      %s400 = sphi 0, %s399
      %s414 = sphi 0, %s400
      %s418 = sphi 0, %s418
      %s420 = sphi 0, %s418
      %s421 = sphi 0, %s420
      %s435 = sphi 0, %s421
      %s439 = sphi 0, %s439
      %s441 = sphi 0, %s439
      %s442 = sphi 0, %s441
      %s456 = sphi 0, %s442
      %s462 = sphi 0, %s464
      %s465 = sphi 0, %s462
      %s466 = sphi 0, %s465
      %s482 = sphi 0, %s466
    $region4: #{tpu_custom_call.1} parent=1 // loop_header_branch
      %41 = sbr.rel (%p39) target = $region8
    $region5: #{tpu_custom_call.1} parent=1 // loop_body
      %s43 = ssub.s32 %s38, 1
      %s44 = ssub.s32 %s38, 2
      %s45 = sadd.s32 %s38, 1
      %s46 = ssub.s32 %s38, %s45
      %p47 = scmp.eq.s32.totalorder %s46, 0
      %s49 = sadd.s32 %s48, 1
      %s50 = scalar_select %p47, %s48, %s49
      %p53 = pneg %p47
      %p54 = scmp.eq.s32.totalorder %s38, 1
      %p55 = por %p53, %p54
      %p56 = scmp.ne.s32.totalorder %s48, %s51
      %p57 = scmp.eq.s32.totalorder %s38, 0
      %p58 = por %p56, %p57
      %p59 = scmp.ne.s32.totalorder %s48, %s51
      %p60 = scmp.eq.s32.totalorder %s43, 1
      %p61 = por %p59, %p60
      %p62 = scmp.ne.s32.totalorder %s51, %s52
      %p63 = scmp.eq.s32.totalorder %s43, 0
      %p64 = por %p62, %p63
      %p65 = scmp.ne.s32.totalorder %s51, %s52
      %p66 = scmp.eq.s32.totalorder %s44, 1
      %p67 = por %p65, %p66
      %p69 = scmp.ne.s32.totalorder %s52, %s68
      %p70 = scmp.eq.s32.totalorder %s44, 0
      %p71 = por %p69, %p70
      %s72 = ssub.s32 %s38, %s45
      %p73 = scmp.eq.s32.totalorder %s72, 0
      %s75 = sadd.s32 %s74, 1
      %s76 = scalar_select %p73, %s74, %s75
      %p79 = pneg %p73
      %p80 = scmp.eq.s32.totalorder %s38, 1
      %p81 = por %p79, %p80
      %p82 = scmp.ne.s32.totalorder %s74, %s77
      %p83 = scmp.eq.s32.totalorder %s38, 0
      %p84 = por %p82, %p83
      %p85 = scmp.ne.s32.totalorder %s74, %s77
      %p86 = scmp.eq.s32.totalorder %s43, 1
      %p87 = por %p85, %p86
      %p88 = scmp.ne.s32.totalorder %s77, %s78
      %p89 = scmp.eq.s32.totalorder %s43, 0
      %p90 = por %p88, %p89
      %p91 = scmp.ne.s32.totalorder %s77, %s78
      %p92 = scmp.eq.s32.totalorder %s44, 1
      %p93 = por %p91, %p92
      %p95 = scmp.ne.s32.totalorder %s78, %s94
      %p96 = scmp.eq.s32.totalorder %s44, 0
      %p97 = por %p95, %p96
      %s98 = ssub.s32 %s38, %s45
      %p99 = scmp.eq.s32.totalorder %s98, 0
      %s101 = sadd.s32 %s100, 1
      %s102 = scalar_select %p99, %s100, %s101
      %p105 = pneg %p99
      %p106 = scmp.eq.s32.totalorder %s38, 1
      %p107 = por %p105, %p106
      %p108 = scmp.ne.s32.totalorder %s100, %s103
      %p109 = scmp.eq.s32.totalorder %s38, 0
      %p110 = por %p108, %p109
      %p111 = scmp.ne.s32.totalorder %s100, %s103
      %p112 = scmp.eq.s32.totalorder %s43, 1
      %p113 = por %p111, %p112
      %p114 = scmp.ne.s32.totalorder %s103, %s104
      %p115 = scmp.eq.s32.totalorder %s43, 0
      %p116 = por %p114, %p115
      %p117 = scmp.ne.s32.totalorder %s103, %s104
      %p118 = scmp.eq.s32.totalorder %s44, 1
      %p119 = por %p117, %p118
      %p121 = scmp.ne.s32.totalorder %s104, %s120
      %p122 = scmp.eq.s32.totalorder %s44, 0
      %p123 = por %p121, %p122
      %s125 = sadd.s32 %s124, 1
      %p128 = scmp.eq.s32.totalorder %s38, 1
      %p129 = scmp.ne.s32.totalorder %s124, %s126
      %p130 = scmp.eq.s32.totalorder %s38, 0
      %p131 = por %p129, %p130
      %p132 = scmp.ne.s32.totalorder %s124, %s126
      %p133 = scmp.eq.s32.totalorder %s43, 1
      %p134 = por %p132, %p133
      %p135 = scmp.ne.s32.totalorder %s126, %s127
      %p136 = scmp.eq.s32.totalorder %s43, 0
      %p137 = por %p135, %p136
      %p138 = scmp.ne.s32.totalorder %s126, %s127
      %p139 = scmp.eq.s32.totalorder %s44, 1
      %p140 = por %p138, %p139
      %p142 = scmp.ne.s32.totalorder %s127, %s141
      %p143 = scmp.eq.s32.totalorder %s44, 0
      %p144 = por %p142, %p143
      %s146 = sadd.s32 %s145, 1
      %p149 = scmp.eq.s32.totalorder %s38, 1
      %p150 = scmp.ne.s32.totalorder %s145, %s147
      %p151 = scmp.eq.s32.totalorder %s38, 0
      %p152 = por %p150, %p151
      %p153 = scmp.ne.s32.totalorder %s145, %s147
      %p154 = scmp.eq.s32.totalorder %s43, 1
      %p155 = por %p153, %p154
      %p156 = scmp.ne.s32.totalorder %s147, %s148
      %p157 = scmp.eq.s32.totalorder %s43, 0
      %p158 = por %p156, %p157
      %p159 = scmp.ne.s32.totalorder %s147, %s148
      %p160 = scmp.eq.s32.totalorder %s44, 1
      %p161 = por %p159, %p160
      %p163 = scmp.ne.s32.totalorder %s148, %s162
      %p164 = scmp.eq.s32.totalorder %s44, 0
      %p165 = por %p163, %p164
      %s167 = sadd.s32 %s166, 1
      %p170 = scmp.eq.s32.totalorder %s38, 1
      %p171 = scmp.ne.s32.totalorder %s166, %s168
      %p172 = scmp.eq.s32.totalorder %s38, 0
      %p173 = por %p171, %p172
      %p174 = scmp.ne.s32.totalorder %s166, %s168
      %p175 = scmp.eq.s32.totalorder %s43, 1
      %p176 = por %p174, %p175
      %p177 = scmp.ne.s32.totalorder %s168, %s169
      %p178 = scmp.eq.s32.totalorder %s43, 0
      %p179 = por %p177, %p178
      %p180 = scmp.ne.s32.totalorder %s168, %s169
      %p181 = scmp.eq.s32.totalorder %s44, 1
      %p182 = por %p180, %p181
      %p184 = scmp.ne.s32.totalorder %s169, %s183
      %p185 = scmp.eq.s32.totalorder %s44, 0
      %p186 = por %p184, %p185
      %s188 = sadd.s32 %s187, 1
      %p191 = scmp.eq.s32.totalorder %s38, 1
      %p192 = scmp.ne.s32.totalorder %s187, %s189
      %p193 = scmp.eq.s32.totalorder %s38, 0
      %p194 = por %p192, %p193
      %p195 = scmp.ne.s32.totalorder %s187, %s189
      %p196 = scmp.eq.s32.totalorder %s43, 1
      %p197 = por %p195, %p196
      %p198 = scmp.ne.s32.totalorder %s189, %s190
      %p199 = scmp.eq.s32.totalorder %s43, 0
      %p200 = por %p198, %p199
      %p201 = scmp.ne.s32.totalorder %s189, %s190
      %p202 = scmp.eq.s32.totalorder %s44, 1
      %p203 = por %p201, %p202
      %p205 = scmp.ne.s32.totalorder %s190, %s204
      %p206 = scmp.eq.s32.totalorder %s44, 0
      %p207 = por %p205, %p206
      %s209 = sadd.s32 %s208, 1
      %p212 = scmp.eq.s32.totalorder %s38, 1
      %p213 = scmp.ne.s32.totalorder %s208, %s210
      %p214 = scmp.eq.s32.totalorder %s38, 0
      %p215 = por %p213, %p214
      %p216 = scmp.ne.s32.totalorder %s208, %s210
      %p217 = scmp.eq.s32.totalorder %s43, 1
      %p218 = por %p216, %p217
      %p219 = scmp.ne.s32.totalorder %s210, %s211
      %p220 = scmp.eq.s32.totalorder %s43, 0
      %p221 = por %p219, %p220
      %p222 = scmp.ne.s32.totalorder %s210, %s211
      %p223 = scmp.eq.s32.totalorder %s44, 1
      %p224 = por %p222, %p223
      %p226 = scmp.ne.s32.totalorder %s211, %s225
      %p227 = scmp.eq.s32.totalorder %s44, 0
      %p228 = por %p226, %p227
      %s230 = sadd.s32 %s229, 1
      %p233 = scmp.eq.s32.totalorder %s38, 1
      %p234 = scmp.ne.s32.totalorder %s229, %s231
      %p235 = scmp.eq.s32.totalorder %s38, 0
      %p236 = por %p234, %p235
      %p237 = scmp.ne.s32.totalorder %s229, %s231
      %p238 = scmp.eq.s32.totalorder %s43, 1
      %p239 = por %p237, %p238
      %p240 = scmp.ne.s32.totalorder %s231, %s232
      %p241 = scmp.eq.s32.totalorder %s43, 0
      %p242 = por %p240, %p241
      %p243 = scmp.ne.s32.totalorder %s231, %s232
      %p244 = scmp.eq.s32.totalorder %s44, 1
      %p245 = por %p243, %p244
      %p247 = scmp.ne.s32.totalorder %s232, %s246
      %p248 = scmp.eq.s32.totalorder %s44, 0
      %p249 = por %p247, %p248
      %s251 = sadd.s32 %s250, 1
      %p254 = scmp.eq.s32.totalorder %s38, 1
      %p255 = scmp.ne.s32.totalorder %s250, %s252
      %p256 = scmp.eq.s32.totalorder %s38, 0
      %p257 = por %p255, %p256
      %p258 = scmp.ne.s32.totalorder %s250, %s252
      %p259 = scmp.eq.s32.totalorder %s43, 1
      %p260 = por %p258, %p259
      %p261 = scmp.ne.s32.totalorder %s252, %s253
      %p262 = scmp.eq.s32.totalorder %s43, 0
      %p263 = por %p261, %p262
      %p264 = scmp.ne.s32.totalorder %s252, %s253
      %p265 = scmp.eq.s32.totalorder %s44, 1
      %p266 = por %p264, %p265
      %p268 = scmp.ne.s32.totalorder %s253, %s267
      %p269 = scmp.eq.s32.totalorder %s44, 0
      %p270 = por %p268, %p269
      %s272 = sadd.s32 %s271, 1
      %p275 = scmp.eq.s32.totalorder %s38, 1
      %p276 = scmp.ne.s32.totalorder %s271, %s273
      %p277 = scmp.eq.s32.totalorder %s38, 0
      %p278 = por %p276, %p277
      %p279 = scmp.ne.s32.totalorder %s271, %s273
      %p280 = scmp.eq.s32.totalorder %s43, 1
      %p281 = por %p279, %p280
      %p282 = scmp.ne.s32.totalorder %s273, %s274
      %p283 = scmp.eq.s32.totalorder %s43, 0
      %p284 = por %p282, %p283
      %p285 = scmp.ne.s32.totalorder %s273, %s274
      %p286 = scmp.eq.s32.totalorder %s44, 1
      %p287 = por %p285, %p286
      %p289 = scmp.ne.s32.totalorder %s274, %s288
      %p290 = scmp.eq.s32.totalorder %s44, 0
      %p291 = por %p289, %p290
      %s293 = sadd.s32 %s292, 1
      %p296 = scmp.eq.s32.totalorder %s38, 1
      %p297 = scmp.ne.s32.totalorder %s292, %s294
      %p298 = scmp.eq.s32.totalorder %s38, 0
      %p299 = por %p297, %p298
      %p300 = scmp.ne.s32.totalorder %s292, %s294
      %p301 = scmp.eq.s32.totalorder %s43, 1
      %p302 = por %p300, %p301
      %p303 = scmp.ne.s32.totalorder %s294, %s295
      %p304 = scmp.eq.s32.totalorder %s43, 0
      %p305 = por %p303, %p304
      %p306 = scmp.ne.s32.totalorder %s294, %s295
      %p307 = scmp.eq.s32.totalorder %s44, 1
      %p308 = por %p306, %p307
      %p310 = scmp.ne.s32.totalorder %s295, %s309
      %p311 = scmp.eq.s32.totalorder %s44, 0
      %p312 = por %p310, %p311
      %s314 = sadd.s32 %s313, 1
      %p317 = scmp.eq.s32.totalorder %s38, 1
      %p318 = scmp.ne.s32.totalorder %s313, %s315
      %p319 = scmp.eq.s32.totalorder %s38, 0
      %p320 = por %p318, %p319
      %p321 = scmp.ne.s32.totalorder %s313, %s315
      %p322 = scmp.eq.s32.totalorder %s43, 1
      %p323 = por %p321, %p322
      %p324 = scmp.ne.s32.totalorder %s315, %s316
      %p325 = scmp.eq.s32.totalorder %s43, 0
      %p326 = por %p324, %p325
      %p327 = scmp.ne.s32.totalorder %s315, %s316
      %p328 = scmp.eq.s32.totalorder %s44, 1
      %p329 = por %p327, %p328
      %p331 = scmp.ne.s32.totalorder %s316, %s330
      %p332 = scmp.eq.s32.totalorder %s44, 0
      %p333 = por %p331, %p332
      %s335 = sadd.s32 %s334, 1
      %p338 = scmp.eq.s32.totalorder %s38, 1
      %p339 = scmp.ne.s32.totalorder %s334, %s336
      %p340 = scmp.eq.s32.totalorder %s38, 0
      %p341 = por %p339, %p340
      %p342 = scmp.ne.s32.totalorder %s334, %s336
      %p343 = scmp.eq.s32.totalorder %s43, 1
      %p344 = por %p342, %p343
      %p345 = scmp.ne.s32.totalorder %s336, %s337
      %p346 = scmp.eq.s32.totalorder %s43, 0
      %p347 = por %p345, %p346
      %p348 = scmp.ne.s32.totalorder %s336, %s337
      %p349 = scmp.eq.s32.totalorder %s44, 1
      %p350 = por %p348, %p349
      %p352 = scmp.ne.s32.totalorder %s337, %s351
      %p353 = scmp.eq.s32.totalorder %s44, 0
      %p354 = por %p352, %p353
      %s356 = sadd.s32 %s355, 1
      %p359 = scmp.eq.s32.totalorder %s38, 1
      %p360 = scmp.ne.s32.totalorder %s355, %s357
      %p361 = scmp.eq.s32.totalorder %s38, 0
      %p362 = por %p360, %p361
      %p363 = scmp.ne.s32.totalorder %s355, %s357
      %p364 = scmp.eq.s32.totalorder %s43, 1
      %p365 = por %p363, %p364
      %p366 = scmp.ne.s32.totalorder %s357, %s358
      %p367 = scmp.eq.s32.totalorder %s43, 0
      %p368 = por %p366, %p367
      %p369 = scmp.ne.s32.totalorder %s357, %s358
      %p370 = scmp.eq.s32.totalorder %s44, 1
      %p371 = por %p369, %p370
      %p373 = scmp.ne.s32.totalorder %s358, %s372
      %p374 = scmp.eq.s32.totalorder %s44, 0
      %p375 = por %p373, %p374
      %s377 = sadd.s32 %s376, 1
      %p380 = scmp.eq.s32.totalorder %s38, 1
      %p381 = scmp.ne.s32.totalorder %s376, %s378
      %p382 = scmp.eq.s32.totalorder %s38, 0
      %p383 = por %p381, %p382
      %p384 = scmp.ne.s32.totalorder %s376, %s378
      %p385 = scmp.eq.s32.totalorder %s43, 1
      %p386 = por %p384, %p385
      %p387 = scmp.ne.s32.totalorder %s378, %s379
      %p388 = scmp.eq.s32.totalorder %s43, 0
      %p389 = por %p387, %p388
      %p390 = scmp.ne.s32.totalorder %s378, %s379
      %p391 = scmp.eq.s32.totalorder %s44, 1
      %p392 = por %p390, %p391
      %p394 = scmp.ne.s32.totalorder %s379, %s393
      %p395 = scmp.eq.s32.totalorder %s44, 0
      %p396 = por %p394, %p395
      %s398 = sadd.s32 %s397, 1
      %p401 = scmp.eq.s32.totalorder %s38, 1
      %p402 = scmp.ne.s32.totalorder %s397, %s399
      %p403 = scmp.eq.s32.totalorder %s38, 0
      %p404 = por %p402, %p403
      %p405 = scmp.ne.s32.totalorder %s397, %s399
      %p406 = scmp.eq.s32.totalorder %s43, 1
      %p407 = por %p405, %p406
      %p408 = scmp.ne.s32.totalorder %s399, %s400
      %p409 = scmp.eq.s32.totalorder %s43, 0
      %p410 = por %p408, %p409
      %p411 = scmp.ne.s32.totalorder %s399, %s400
      %p412 = scmp.eq.s32.totalorder %s44, 1
      %p413 = por %p411, %p412
      %p415 = scmp.ne.s32.totalorder %s400, %s414
      %p416 = scmp.eq.s32.totalorder %s44, 0
      %p417 = por %p415, %p416
      %s419 = sadd.s32 %s418, 1
      %p422 = scmp.eq.s32.totalorder %s38, 1
      %p423 = scmp.ne.s32.totalorder %s418, %s420
      %p424 = scmp.eq.s32.totalorder %s38, 0
      %p425 = por %p423, %p424
      %p426 = scmp.ne.s32.totalorder %s418, %s420
      %p427 = scmp.eq.s32.totalorder %s43, 1
      %p428 = por %p426, %p427
      %p429 = scmp.ne.s32.totalorder %s420, %s421
      %p430 = scmp.eq.s32.totalorder %s43, 0
      %p431 = por %p429, %p430
      %p432 = scmp.ne.s32.totalorder %s420, %s421
      %p433 = scmp.eq.s32.totalorder %s44, 1
      %p434 = por %p432, %p433
      %p436 = scmp.ne.s32.totalorder %s421, %s435
      %p437 = scmp.eq.s32.totalorder %s44, 0
      %p438 = por %p436, %p437
      %s440 = sadd.s32 %s439, 1
      %p443 = scmp.eq.s32.totalorder %s38, 1
      %p444 = scmp.ne.s32.totalorder %s439, %s441
      %p445 = scmp.eq.s32.totalorder %s38, 0
      %p446 = por %p444, %p445
      %p447 = scmp.ne.s32.totalorder %s439, %s441
      %p448 = scmp.eq.s32.totalorder %s43, 1
      %p449 = por %p447, %p448
      %p450 = scmp.ne.s32.totalorder %s441, %s442
      %p451 = scmp.eq.s32.totalorder %s43, 0
      %p452 = por %p450, %p451
      %p453 = scmp.ne.s32.totalorder %s441, %s442
      %p454 = scmp.eq.s32.totalorder %s44, 1
      %p455 = por %p453, %p454
      %p457 = scmp.ne.s32.totalorder %s442, %s456
      %p458 = scmp.eq.s32.totalorder %s44, 0
      %p459 = por %p457, %p458
      %s460 = ssub.s32 %s38, %s45
      %p461 = scmp.eq.s32.totalorder %s460, 0
      %s463 = sadd.s32 %s462, 1
      %s464 = scalar_select %p461, %s462, %s463
      %p467 = pneg %p461
      %p468 = scmp.eq.s32.totalorder %s38, 1
      %p469 = por %p467, %p468
      %p470 = scmp.ne.s32.totalorder %s462, %s465
      %p471 = scmp.eq.s32.totalorder %s38, 0
      %p472 = por %p470, %p471
      %p473 = scmp.ne.s32.totalorder %s462, %s465
      %p474 = scmp.eq.s32.totalorder %s43, 1
      %p475 = por %p473, %p474
      %p476 = scmp.ne.s32.totalorder %s465, %s466
      %p477 = scmp.eq.s32.totalorder %s43, 0
      %p478 = por %p476, %p477
      %p479 = scmp.ne.s32.totalorder %s465, %s466
      %p480 = scmp.eq.s32.totalorder %s44, 1
      %p481 = por %p479, %p480
      %p483 = scmp.ne.s32.totalorder %s466, %s482
      %p484 = scmp.eq.s32.totalorder %s44, 0
      %p485 = por %p483, %p484
      %p486 = scmp.le.s32.totalorder 1, %s38
      %p487 = scmp.lt.s32.totalorder %s38, 3
      %p488 = pnand %p486, %p487
      %p489 = pneg %p488
      // Predicated region
      $region9: #{tpu_custom_call.1} parent=5 // pred_check
        _
      $region10: #{tpu_custom_call.1} parent=5 // pred_check_branch
        %491 = sbr.rel (%p488) target = $region12
      $region11: #{tpu_custom_call.1} parent=5 // pred_region
        %s492 = ssub.s32 %s38, 1
        // Predicated region
        $region13: #{tpu_custom_call.1} parent=11 // pred_check
          %p493 = pneg %p137
        $region14: #{tpu_custom_call.1} parent=11 // pred_check_branch
          %495 = sbr.rel (%p493) target = $region16
        $region15: #{tpu_custom_call.1} parent=11 // pred_region
          %s497 = ssub.s32 48, 48
          %498 = vsyncadd [#allocation9], %s497
          %s499 = sshll.u32 [#allocation8], 4
          %s500 = int_to_ptr.vmem [resolvable:$true] %s499
          %505 = dma.hbm_to_vmem [thread:$0]  %s3, 48, %s500, [#allocation9], 16, 16, 1
        $region16: #{tpu_custom_call.1} parent=11 // pred_fallthru
          _
        // Predicated region
        $region17: #{tpu_custom_call.1} parent=11 // pred_check
          %p506 = pneg %p158
        $region18: #{tpu_custom_call.1} parent=11 // pred_check_branch
          %508 = sbr.rel (%p506) target = $region20
        $region19: #{tpu_custom_call.1} parent=11 // pred_region
          %s510 = ssub.s32 48, 48
          %511 = vsyncadd [#allocation9], %s510
          %s512 = sshll.u32 [#allocation10], 4
          %s513 = int_to_ptr.vmem [resolvable:$true] %s512
          %518 = dma.hbm_to_vmem [thread:$0]  %s4, 48, %s513, [#allocation9], 16, 16, 1
        $region20: #{tpu_custom_call.1} parent=11 // pred_fallthru
          _
        // Predicated region
        $region21: #{tpu_custom_call.1} parent=11 // pred_check
          %p519 = pneg %p179
        $region22: #{tpu_custom_call.1} parent=11 // pred_check_branch
          %521 = sbr.rel (%p519) target = $region24
        $region23: #{tpu_custom_call.1} parent=11 // pred_region
          _
        $region24: #{tpu_custom_call.1} parent=11 // pred_fallthru
          _
        // Predicated region
        $region25: #{tpu_custom_call.1} parent=11 // pred_check
          %p522 = pneg %p200
        $region26: #{tpu_custom_call.1} parent=11 // pred_check_branch
          %524 = sbr.rel (%p522) target = $region28
        $region27: #{tpu_custom_call.1} parent=11 // pred_region
          %s526 = ssub.s32 32, 32
          %527 = vsyncadd [#allocation12], %s526
          %s528 = sshll.u32 [#allocation11], 4
          %s529 = int_to_ptr.vmem [resolvable:$true] %s528
          %534 = dma.hbm_to_vmem [thread:$0]  %s6, 32, %s529, [#allocation12], 16, 16, 1
        $region28: #{tpu_custom_call.1} parent=11 // pred_fallthru
          _
        // Predicated region
        $region29: #{tpu_custom_call.1} parent=11 // pred_check
          %p535 = pneg %p221
        $region30: #{tpu_custom_call.1} parent=11 // pred_check_branch
          %537 = sbr.rel (%p535) target = $region32
        $region31: #{tpu_custom_call.1} parent=11 // pred_region
          %s539 = ssub.s32 256, 256
          %540 = vsyncadd [#allocation12], %s539
          %s541 = sshll.u32 [#allocation13], 4
          %s542 = int_to_ptr.vmem [resolvable:$true] %s541
          %547 = dma.hbm_to_vmem [thread:$0]  %s7, 256, %s542, [#allocation12], 64, 64, 4
        $region32: #{tpu_custom_call.1} parent=11 // pred_fallthru
          _
        // Predicated region
        $region33: #{tpu_custom_call.1} parent=11 // pred_check
          %p548 = pneg %p242
        $region34: #{tpu_custom_call.1} parent=11 // pred_check_branch
          %550 = sbr.rel (%p548) target = $region36
        $region35: #{tpu_custom_call.1} parent=11 // pred_region
          _
        $region36: #{tpu_custom_call.1} parent=11 // pred_fallthru
          _
        // Predicated region
        $region37: #{tpu_custom_call.1} parent=11 // pred_check
          %p551 = pneg %p263
        $region38: #{tpu_custom_call.1} parent=11 // pred_check_branch
          %553 = sbr.rel (%p551) target = $region40
        $region39: #{tpu_custom_call.1} parent=11 // pred_region
          _
        $region40: #{tpu_custom_call.1} parent=11 // pred_fallthru
          _
        // Predicated region
        $region41: #{tpu_custom_call.1} parent=11 // pred_check
          %p554 = pneg %p284
        $region42: #{tpu_custom_call.1} parent=11 // pred_check_branch
          %556 = sbr.rel (%p554) target = $region44
        $region43: #{tpu_custom_call.1} parent=11 // pred_region
          %s558 = ssub.s32 32, 32
          %559 = vsyncadd [#allocation15], %s558
          %s560 = sshll.u32 [#allocation14], 4
          %s561 = int_to_ptr.vmem [resolvable:$true] %s560
          %566 = dma.hbm_to_vmem [thread:$0]  %s10, 32, %s561, [#allocation15], 16, 16, 1
        $region44: #{tpu_custom_call.1} parent=11 // pred_fallthru
          _
        // Predicated region
        $region45: #{tpu_custom_call.1} parent=11 // pred_check
          %p567 = pneg %p305
        $region46: #{tpu_custom_call.1} parent=11 // pred_check_branch
          %569 = sbr.rel (%p567) target = $region48
        $region47: #{tpu_custom_call.1} parent=11 // pred_region
          %s571 = ssub.s32 256, 256
          %572 = vsyncadd [#allocation15], %s571
          %s573 = sshll.u32 [#allocation16], 4
          %s574 = int_to_ptr.vmem [resolvable:$true] %s573
          %579 = dma.hbm_to_vmem [thread:$0]  %s11, 256, %s574, [#allocation15], 64, 64, 4
        $region48: #{tpu_custom_call.1} parent=11 // pred_fallthru
          _
        // Predicated region
        $region49: #{tpu_custom_call.1} parent=11 // pred_check
          %p580 = pneg %p326
        $region50: #{tpu_custom_call.1} parent=11 // pred_check_branch
          %582 = sbr.rel (%p580) target = $region52
        $region51: #{tpu_custom_call.1} parent=11 // pred_region
          %s584 = ssub.s32 16, 16
          %585 = vsyncadd [#allocation18], %s584
          %s587 = sshll.u32 [#allocation17], 4
          %s588 = int_to_ptr.vmem [resolvable:$true] %s587
          %590 = dma.hbm_to_vmem [thread:$0]  %s12, 16, %s588, [#allocation18]
        $region52: #{tpu_custom_call.1} parent=11 // pred_fallthru
          _
        // Predicated region
        $region53: #{tpu_custom_call.1} parent=11 // pred_check
          %p591 = pneg %p347
        $region54: #{tpu_custom_call.1} parent=11 // pred_check_branch
          %593 = sbr.rel (%p591) target = $region56
        $region55: #{tpu_custom_call.1} parent=11 // pred_region
          %s595 = ssub.s32 256, 256
          %596 = vsyncadd [#allocation18], %s595
          %s597 = sshll.u32 [#allocation19], 4
          %s598 = int_to_ptr.vmem [resolvable:$true] %s597
          %603 = dma.hbm_to_vmem [thread:$0]  %s13, 256, %s598, [#allocation18], 64, 64, 4
        $region56: #{tpu_custom_call.1} parent=11 // pred_fallthru
          _
        // Predicated region
        $region57: #{tpu_custom_call.1} parent=11 // pred_check
          %p604 = pneg %p368
        $region58: #{tpu_custom_call.1} parent=11 // pred_check_branch
          %606 = sbr.rel (%p604) target = $region60
        $region59: #{tpu_custom_call.1} parent=11 // pred_region
          _
        $region60: #{tpu_custom_call.1} parent=11 // pred_fallthru
          _
        // Predicated region
        $region61: #{tpu_custom_call.1} parent=11 // pred_check
          %p607 = pneg %p389
        $region62: #{tpu_custom_call.1} parent=11 // pred_check_branch
          %609 = sbr.rel (%p607) target = $region64
        $region63: #{tpu_custom_call.1} parent=11 // pred_region
          _
        $region64: #{tpu_custom_call.1} parent=11 // pred_fallthru
          _
        // Predicated region
        $region65: #{tpu_custom_call.1} parent=11 // pred_check
          %p610 = pneg %p410
        $region66: #{tpu_custom_call.1} parent=11 // pred_check_branch
          %612 = sbr.rel (%p610) target = $region68
        $region67: #{tpu_custom_call.1} parent=11 // pred_region
          _
        $region68: #{tpu_custom_call.1} parent=11 // pred_fallthru
          _
        // Predicated region
        $region69: #{tpu_custom_call.1} parent=11 // pred_check
          %p613 = pneg %p431
        $region70: #{tpu_custom_call.1} parent=11 // pred_check_branch
          %615 = sbr.rel (%p613) target = $region72
        $region71: #{tpu_custom_call.1} parent=11 // pred_region
          _
        $region72: #{tpu_custom_call.1} parent=11 // pred_fallthru
          _
        // Predicated region
        $region73: #{tpu_custom_call.1} parent=11 // pred_check
          %p616 = pneg %p452
        $region74: #{tpu_custom_call.1} parent=11 // pred_check_branch
          %618 = sbr.rel (%p616) target = $region76
        $region75: #{tpu_custom_call.1} parent=11 // pred_region
          _
        $region76: #{tpu_custom_call.1} parent=11 // pred_fallthru
          _
      $region12: #{tpu_custom_call.1} parent=5 // pred_fallthru
        _
      %p619 = scmp.lt.s32.totalorder %s38, 2
      // Predicated region
      $region77: #{tpu_custom_call.1} parent=5 // pred_check
        %p620 = pneg %p619
      $region78: #{tpu_custom_call.1} parent=5 // pred_check_branch
        %622 = sbr.rel (%p620) target = $region80
      $region79: #{tpu_custom_call.1} parent=5 // pred_region
        // Predicated region
        $region81: #{tpu_custom_call.1} parent=79 // pred_check
          %p623 = pneg %p58
        $region82: #{tpu_custom_call.1} parent=79 // pred_check_branch
          %625 = sbr.rel (%p623) target = $region84
        $region83: #{tpu_custom_call.1} parent=79 // pred_region
          %s626 = sand.u32 %s48, 1
          %s627 = scalar_lea.sflag [#allocation3], %s626
          %s628 = sand.u32 %s48, 1
          %s629 = smul.addr %s628, 8
          %s630 = scalar_lea.vmem [#allocation2], %s629
          %s632 = ssub.s32 128, 128
          %633 = vsyncadd %s627, %s632
          %s634 = smul.addr %s38, 128
          %s635 = scalar_lea.hbm %s0, %s634
          %s637 = sshll.u32 %s630, 4
          %s638 = int_to_ptr.vmem [resolvable:$true] %s637
          %640 = dma.hbm_to_vmem [thread:$0]  %s635, 128, %s638, %s627
        $region84: #{tpu_custom_call.1} parent=79 // pred_fallthru
          _
        // Predicated region
        $region85: #{tpu_custom_call.1} parent=79 // pred_check
          %p641 = pneg %p84
        $region86: #{tpu_custom_call.1} parent=79 // pred_check_branch
          %643 = sbr.rel (%p641) target = $region88
        $region87: #{tpu_custom_call.1} parent=79 // pred_region
          %s644 = sand.u32 %s38, 1
          %s645 = scalar_lea.sflag [#allocation6], %s644
          %s646 = sand.u32 %s74, 1
          %s647 = smul.addr %s646, 8
          %s648 = scalar_lea.vmem [#allocation5], %s647
          %s650 = ssub.s32 128, 128
          %651 = vsyncadd %s645, %s650
          %s652 = smul.addr %s38, 128
          %s653 = scalar_lea.hbm %s1, %s652
          %s655 = sshll.u32 %s648, 4
          %s656 = int_to_ptr.vmem [resolvable:$true] %s655
          %658 = dma.hbm_to_vmem [thread:$0]  %s653, 128, %s656, %s645
        $region88: #{tpu_custom_call.1} parent=79 // pred_fallthru
          _
        // Predicated region
        $region89: #{tpu_custom_call.1} parent=79 // pred_check
          %p659 = pneg %p110
        $region90: #{tpu_custom_call.1} parent=79 // pred_check_branch
          %661 = sbr.rel (%p659) target = $region92
        $region91: #{tpu_custom_call.1} parent=79 // pred_region
          %s662 = sand.u32 %s38, 1
          %s663 = scalar_lea.sflag [#allocation6], %s662
          %s664 = sand.u32 %s100, 1
          %s665 = scalar_lea.vmem [#allocation7], %s664
          %s667 = ssub.s32 16, 16
          %668 = vsyncadd %s663, %s667
          %s669 = smul.addr %s38, 16
          %s670 = scalar_lea.hbm %s2, %s669
          %s672 = sshll.u32 %s665, 4
          %s673 = int_to_ptr.vmem [resolvable:$true] %s672
          %675 = dma.hbm_to_vmem [thread:$0]  %s670, 16, %s673, %s663
        $region92: #{tpu_custom_call.1} parent=79 // pred_fallthru
          _
      $region80: #{tpu_custom_call.1} parent=5 // pred_fallthru
        _
      %p676 = scmp.le.s32.totalorder 1, %s38
      %p677 = scmp.lt.s32.totalorder %s38, 3
      %p678 = pnand %p676, %p677
      %p679 = pneg %p678
      // Predicated region
      $region93: #{tpu_custom_call.1} parent=5 // pred_check
        _
      $region94: #{tpu_custom_call.1} parent=5 // pred_check_branch
        %681 = sbr.rel (%p678) target = $region96
      $region95: #{tpu_custom_call.1} parent=5 // pred_region
        %s682 = ssub.s32 %s38, 1
        %s683 = sand.u32 %s51, 1
        %s684 = scalar_lea.sflag [#allocation3], %s683
        %s685 = sand.u32 %s51, 1
        %s686 = smul.addr %s685, 8
        %s687 = scalar_lea.vmem [#allocation2], %s686
        // Predicated region
        $region97: #{tpu_custom_call.1} parent=95 // pred_check
          %p688 = pneg %p64
        $region98: #{tpu_custom_call.1} parent=95 // pred_check_branch
          %690 = sbr.rel (%p688) target = $region100
        $region99: #{tpu_custom_call.1} parent=95 // pred_region
          %691 = dma.done %s684, 128
        $region100: #{tpu_custom_call.1} parent=95 // pred_fallthru
          _
        %s692 = sand.u32 %s43, 1
        %s693 = scalar_lea.sflag [#allocation6], %s692
        %s694 = sand.u32 %s77, 1
        %s695 = smul.addr %s694, 8
        %s696 = scalar_lea.vmem [#allocation5], %s695
        // Predicated region
        $region101: #{tpu_custom_call.1} parent=95 // pred_check
          %p697 = pneg %p90
        $region102: #{tpu_custom_call.1} parent=95 // pred_check_branch
          %699 = sbr.rel (%p697) target = $region104
        $region103: #{tpu_custom_call.1} parent=95 // pred_region
          %700 = dma.done %s693, 128
        $region104: #{tpu_custom_call.1} parent=95 // pred_fallthru
          _
        %s701 = sand.u32 %s43, 1
        %s702 = scalar_lea.sflag [#allocation6], %s701
        %s703 = sand.u32 %s103, 1
        %s704 = scalar_lea.vmem [#allocation7], %s703
        // Predicated region
        $region105: #{tpu_custom_call.1} parent=95 // pred_check
          %p705 = pneg %p116
        $region106: #{tpu_custom_call.1} parent=95 // pred_check_branch
          %707 = sbr.rel (%p705) target = $region108
        $region107: #{tpu_custom_call.1} parent=95 // pred_region
          %708 = dma.done %s702, 16
        $region108: #{tpu_custom_call.1} parent=95 // pred_fallthru
          _
        // Predicated region
        $region109: #{tpu_custom_call.1} parent=95 // pred_check
          %p709 = pneg %p137
        $region110: #{tpu_custom_call.1} parent=95 // pred_check_branch
          %711 = sbr.rel (%p709) target = $region112
        $region111: #{tpu_custom_call.1} parent=95 // pred_region
          %712 = dma.done [#allocation9], 48
        $region112: #{tpu_custom_call.1} parent=95 // pred_fallthru
          _
        // Predicated region
        $region113: #{tpu_custom_call.1} parent=95 // pred_check
          %p713 = pneg %p158
        $region114: #{tpu_custom_call.1} parent=95 // pred_check_branch
          %715 = sbr.rel (%p713) target = $region116
        $region115: #{tpu_custom_call.1} parent=95 // pred_region
          %716 = dma.done [#allocation9], 48
        $region116: #{tpu_custom_call.1} parent=95 // pred_fallthru
          _
        // Predicated region
        $region117: #{tpu_custom_call.1} parent=95 // pred_check
          %p717 = pneg %p200
        $region118: #{tpu_custom_call.1} parent=95 // pred_check_branch
          %719 = sbr.rel (%p717) target = $region120
        $region119: #{tpu_custom_call.1} parent=95 // pred_region
          %720 = dma.done [#allocation12], 32
        $region120: #{tpu_custom_call.1} parent=95 // pred_fallthru
          _
        // Predicated region
        $region121: #{tpu_custom_call.1} parent=95 // pred_check
          %p721 = pneg %p221
        $region122: #{tpu_custom_call.1} parent=95 // pred_check_branch
          %723 = sbr.rel (%p721) target = $region124
        $region123: #{tpu_custom_call.1} parent=95 // pred_region
          %724 = dma.done [#allocation12], 256
        $region124: #{tpu_custom_call.1} parent=95 // pred_fallthru
          _
        // Predicated region
        $region125: #{tpu_custom_call.1} parent=95 // pred_check
          %p725 = pneg %p284
        $region126: #{tpu_custom_call.1} parent=95 // pred_check_branch
          %727 = sbr.rel (%p725) target = $region128
        $region127: #{tpu_custom_call.1} parent=95 // pred_region
          %728 = dma.done [#allocation15], 32
        $region128: #{tpu_custom_call.1} parent=95 // pred_fallthru
          _
        // Predicated region
        $region129: #{tpu_custom_call.1} parent=95 // pred_check
          %p729 = pneg %p305
        $region130: #{tpu_custom_call.1} parent=95 // pred_check_branch
          %731 = sbr.rel (%p729) target = $region132
        $region131: #{tpu_custom_call.1} parent=95 // pred_region
          %732 = dma.done [#allocation15], 256
        $region132: #{tpu_custom_call.1} parent=95 // pred_fallthru
          _
        // Predicated region
        $region133: #{tpu_custom_call.1} parent=95 // pred_check
          %p733 = pneg %p326
        $region134: #{tpu_custom_call.1} parent=95 // pred_check_branch
          %735 = sbr.rel (%p733) target = $region136
        $region135: #{tpu_custom_call.1} parent=95 // pred_region
          %736 = dma.done [#allocation18], 16
        $region136: #{tpu_custom_call.1} parent=95 // pred_fallthru
          _
        // Predicated region
        $region137: #{tpu_custom_call.1} parent=95 // pred_check
          %p737 = pneg %p347
        $region138: #{tpu_custom_call.1} parent=95 // pred_check_branch
          %739 = sbr.rel (%p737) target = $region140
        $region139: #{tpu_custom_call.1} parent=95 // pred_region
          %740 = dma.done [#allocation18], 256
        $region140: #{tpu_custom_call.1} parent=95 // pred_fallthru
          _
        %s741 = sand.u32 %s51, 1
        %s742 = scalar_lea.sflag [#allocation3], %s741
        %s743 = sand.u32 %s51, 1
        %s744 = smul.addr %s743, 8
        %s745 = scalar_lea.vmem [#allocation2], %s744
        %p746 = pneg %p64
        %p747 = pneg %p61
        %s748 = sand.u32 %s43, 1
        %s749 = scalar_lea.sflag [#allocation6], %s748
        %s750 = sand.u32 %s77, 1
        %s751 = smul.addr %s750, 8
        %s752 = scalar_lea.vmem [#allocation5], %s751
        %p753 = pneg %p90
        %p754 = pneg %p87
        %s755 = sand.u32 %s43, 1
        %s756 = scalar_lea.sflag [#allocation6], %s755
        %s757 = sand.u32 %s103, 1
        %s758 = scalar_lea.vmem [#allocation7], %s757
        %p759 = pneg %p116
        %p760 = pneg %p113
        %p761 = pneg %p137
        %p762 = pneg %p134
        %p763 = pneg %p158
        %p764 = pneg %p155
        %p765 = pneg %p179
        %p766 = pneg %p176
        %p767 = pneg %p200
        %p768 = pneg %p197
        %p769 = pneg %p221
        %p770 = pneg %p218
        %p771 = pneg %p242
        %p772 = pneg %p239
        %p773 = pneg %p263
        %p774 = pneg %p260
        %p775 = pneg %p284
        %p776 = pneg %p281
        %p777 = pneg %p305
        %p778 = pneg %p302
        %p779 = pneg %p326
        %p780 = pneg %p323
        %p781 = pneg %p347
        %p782 = pneg %p344
        %p783 = pneg %p368
        %p784 = pneg %p365
        %p785 = pneg %p389
        %p786 = pneg %p386
        %p787 = pneg %p410
        %p788 = pneg %p407
        %p789 = pneg %p431
        %p790 = pneg %p428
        %p791 = pneg %p452
        %p792 = pneg %p449
        %p793 = pneg %p478
        %p794 = pneg %p475
        %s795 = sand.u32 %s465, 1
        %s796 = scalar_lea.sflag [#allocation4], %s795
        %s797 = sand.u32 %s465, 1
        %s798 = smul.addr %s797, 8
        %s799 = scalar_lea.vmem [#allocation20], %s798
        %v801 = vld [vmem:[%s687] sm:$0xff]
        %v802 = vld [vmem:[%s696] sm:$0xff]
        %v803 = vpack.c.bf16 %v802, %v802
        %v804 = vld [vmem:[%s704] sm:$0x1]
        %vm805 = vcmp.gt.f32.partialorder %v804, 20.0
        %v806 = vmin.f32 %v804, 20.0
        %v807 = vmul.f32 %v806, 1.442695
        %v808 = vpow.pop %v807
        %v809 = vadd.f32 %v808, 1.0
        %v810 = vlog2.pop %v809
        %v811 = vmul.f32 %v810, 0.6931472
        %v812 = vmul.f32 -0.5, %v808
        %v813 = vadd.f32 %v812, 1.0
        %v814 = vmul.f32 %v813, %v808
        %v815 = vand.u32 2147483647, %v808
        %vm816 = vcmp.lt.f32.partialorder %v815, 0.0004427343
        %v817 = vsel %vm816, %v814, %v811
        %v818 = vsel %vm805, %v804, %v817
        %v819 = vtanh.pop %v818
        %v820 = vmul.f32 %v804, %v819
        %v821 = vpack.c.bf16 %v820, %v820
        %v822 = vld [vmem:[%s17] sm:$0xff]
        %v823 = vld [vmem:[%s17 + $0x8] sm:$0xff]
        %v824 = vld [vmem:[%s17 + $0x10] sm:$0xff]
        %v825 = vld [vmem:[%s17 + $0x18] sm:$0xff]
        %v826 = vld [vmem:[%s18] sm:$0x3]
        %v831 = vunpack.c.l.b16 %v822
        %v832 = vunpack.c.h.b16 %v822
        %v833 = vunpack.c.l.b16 %v823
        %v834 = vunpack.c.h.b16 %v823
        %v835 = vunpack.c.l.b16 %v824
        %v836 = vunpack.c.h.b16 %v824
        %v837 = vunpack.c.l.b16 %v825
        %v838 = vunpack.c.h.b16 %v825
        %v839 = vpack.c.b16 %v833, %v831
        %v840 = vpack.c.b16 %v834, %v832
        %v841 = vpack.c.b16 %v837, %v835
        %v842 = vpack.c.b16 %v838, %v836
        %v848 = vlaneseq
        %v849 = vshrl.u32 %v848, 7
        %v850 = vsub.s32 0, %v849
        %v851 = vrot.slane %v826, %v850
        %v852 = vlaneseq
        %v853 = vshrl.u32 %v852, 7
        %v854 = vsub.s32 1, %v853
        %v855 = vrot.slane %v826, %v854
        %vm858 = vcmask 261120
        %v860 = vsel %vm858, %v821, 0
        %862 = vmatprep.subr.bf16.mxu0 %v840
        %863 = vmatpush1.bf16.msra.mxu0 %v839
        %864 = vmatprep.subr.bf16.mxu0 %v842
        %865 = vmatpush1.bf16.msra.mxu0 %v841
        %866 = vmatprep.subr.bf16.mxu0 0
        %867 = vmatpush1.bf16.msra.mxu0 0
        %868 = vmatprep.subr.bf16.mxu0 0
        %869 = vmatpush1.bf16.msra.mxu0 0
        %870 = vmatprep.subr.bf16.mxu0 0
        %871 = vmatpush1.bf16.msra.mxu0 0
        %872 = vmatprep.subr.bf16.mxu0 0
        %873 = vmatpush1.bf16.msra.mxu0 0
        %874 = vmatprep.subr.bf16.mxu0 0
        %875 = vmatpush1.bf16.msra.mxu0 0
        %876 = vmatprep.subr.bf16.mxu0 0
        %877 = vmatpush1.bf16.msra.mxu0 0
        %878 = vmatprep.subr.bf16.mxu0 0
        %879 = vmatpush1.bf16.msra.mxu0 0
        %880 = vmatprep.subr.bf16.mxu0 0
        %881 = vmatpush1.bf16.msra.mxu0 0
        %882 = vmatprep.subr.bf16.mxu0 0
        %883 = vmatpush1.bf16.msra.mxu0 0
        %884 = vmatprep.subr.bf16.mxu0 0
        %885 = vmatpush1.bf16.msra.mxu0 0
        %886 = vmatprep.subr.bf16.mxu0 0
        %887 = vmatpush1.bf16.msra.mxu0 0
        %888 = vmatprep.subr.bf16.mxu0 0
        %889 = vmatpush1.bf16.msra.mxu0 0
        %890 = vmatprep.subr.bf16.mxu0 0
        %891 = vmatpush1.bf16.msra.mxu0 0
        %892 = vmatprep.subr.bf16.mxu0 0
        %893 = vmatpush1.bf16.msra.mxu0 0
        %894 = vmatprep.mubr.bf16.mxu0 0
        %895 = vmatmul.mubr.bf16.gmra.mrb[0].mxu0 %v860
        %v896 = vpop.f32.mrb[0].mxu0
        %v897 = vadd.f32 %v851, %v896
        %v898 = vpop.f32.mrb[0].mxu0
        %v899 = vadd.f32 %v855, %v898
        %v900 = vpop.f32.mrb[0].mxu0
        %v901 = vpop.f32.mrb[0].mxu0
        %902 = vdwg.mxu0
        %v903 = vld [vmem:[#allocation8] sm:$0x1]
        %v904 = vld [vmem:[#allocation10] sm:$0x1]
        %v905 = vsel %vm858, %v801, 0.0
        %906 = vadd.xlane.f32.xlu0 %v905
        %v907 = vpop.xlane.xlu0 %906
        %v908 = vrcp.pop 32.0
        %v909 = vmul.f32 %v907, %v908
        %v910 = vsub.f32 %v801, %v909
        %v911 = vmul.f32 %v910, %v910
        %v912 = vsel %vm858, %v911, 0.0
        %913 = vadd.xlane.f32.xlu0 %v912
        %v914 = vpop.xlane.xlu0 %913
        %v915 = vmul.f32 %v914, %v908
        %v916 = vadd.f32 %v915, 1e-05
        %v917 = vrsqrt.pop %v916
        %v918 = vmul.f32 %v910, %v917
        %v920 = vlaneseq
        %v921 = vshrl.u32 %v920, 7
        %v922 = vsub.s32 0, %v921
        %v923 = vrot.slane %v903, %v922
        %v925 = vmul.f32 %v918, %v923
        %v927 = vlaneseq
        %v928 = vshrl.u32 %v927, 7
        %v929 = vsub.s32 0, %v928
        %v930 = vrot.slane %v904, %v929
        %v932 = vadd.f32 %v925, %v930
        %v933 = vpack.c.bf16 %v932, %v932
        %v934 = vld [vmem:[%s5] sm:$0xf]
        %v935 = vld [vmem:[%s5 + $0x4] sm:$0xf]
        %v936 = vld [vmem:[%s5 + $0x8] sm:$0xf]
        %v937 = vld [vmem:[%s5 + $0xc] sm:$0xf]
        %v938 = vld [vmem:[#allocation11] sm:$0x1]
        %v940 = vlaneseq
        %v941 = vshrl.u32 %v940, 7
        %v942 = vsub.s32 0, %v941
        %v943 = vrot.slane %v938, %v942
        %v949 = vunpack.c.l.b16 %v934
        %v950 = vunpack.c.l.b16 %v935
        %v951 = vunpack.c.l.b16 %v936
        %v952 = vunpack.c.l.b16 %v937
        %v953 = vpack.c.b16 %v950, %v949
        %v954 = vpack.c.b16 %v952, %v951
        %v958 = vsel %vm858, %v933, 0
        %960 = vmatprep.subr.bf16.mxu0 0
        %961 = vmatpush1.bf16.msra.mxu0 %v953
        %962 = vmatprep.subr.bf16.mxu0 0
        %963 = vmatpush1.bf16.msra.mxu0 %v954
        %964 = vmatprep.subr.bf16.mxu0 0
        %965 = vmatpush1.bf16.msra.mxu0 0
        %966 = vmatprep.subr.bf16.mxu0 0
        %967 = vmatpush1.bf16.msra.mxu0 0
        %968 = vmatprep.subr.bf16.mxu0 0
        %969 = vmatpush1.bf16.msra.mxu0 0
        %970 = vmatprep.subr.bf16.mxu0 0
        %971 = vmatpush1.bf16.msra.mxu0 0
        %972 = vmatprep.subr.bf16.mxu0 0
        %973 = vmatpush1.bf16.msra.mxu0 0
        %974 = vmatprep.subr.bf16.mxu0 0
        %975 = vmatpush1.bf16.msra.mxu0 0
        %976 = vmatprep.subr.bf16.mxu0 0
        %977 = vmatpush1.bf16.msra.mxu0 0
        %978 = vmatprep.subr.bf16.mxu0 0
        %979 = vmatpush1.bf16.msra.mxu0 0
        %980 = vmatprep.subr.bf16.mxu0 0
        %981 = vmatpush1.bf16.msra.mxu0 0
        %982 = vmatprep.subr.bf16.mxu0 0
        %983 = vmatpush1.bf16.msra.mxu0 0
        %984 = vmatprep.subr.bf16.mxu0 0
        %985 = vmatpush1.bf16.msra.mxu0 0
        %986 = vmatprep.subr.bf16.mxu0 0
        %987 = vmatpush1.bf16.msra.mxu0 0
        %988 = vmatprep.subr.bf16.mxu0 0
        %989 = vmatpush1.bf16.msra.mxu0 0
        %990 = vmatprep.subr.bf16.mxu0 0
        %991 = vmatpush1.bf16.msra.mxu0 0
        %992 = vmatprep.mubr.bf16.mxu0 0
        %993 = vmatmul.mubr.bf16.gmra.mrb[0].mxu0 %v958
        %v994 = vpop.f32.mrb[0].mxu0
        %v995 = vadd.f32 %v943, %v994
        %v996 = vpop.f32.mrb[0].mxu0
        %v997 = vpop.f32.mrb[0].mxu0
        %v998 = vpop.f32.mrb[0].mxu0
        %999 = vdwg.mxu0
        %v1000 = vpack.c.bf16 %v995, %v995
        %s1001 = scalar_lea.vmem %s5, 16
        %v1002 = vld [vmem:[%s1001] sm:$0xf]
        %v1003 = vld [vmem:[%s1001 + $0x4] sm:$0xf]
        %v1004 = vld [vmem:[%s1001 + $0x8] sm:$0xf]
        %v1005 = vld [vmem:[%s1001 + $0xc] sm:$0xf]
        %s1006 = scalar_lea.vmem [#allocation11], 1
        %v1007 = vld [vmem:[%s1006] sm:$0x1]
        %v1009 = vlaneseq
        %v1010 = vshrl.u32 %v1009, 7
        %v1011 = vsub.s32 0, %v1010
        %v1012 = vrot.slane %v1007, %v1011
        %v1018 = vunpack.c.l.b16 %v1002
        %v1019 = vunpack.c.l.b16 %v1003
        %v1020 = vunpack.c.l.b16 %v1004
        %v1021 = vunpack.c.l.b16 %v1005
        %v1022 = vpack.c.b16 %v1019, %v1018
        %v1023 = vpack.c.b16 %v1021, %v1020
        %1026 = vmatprep.subr.bf16.mxu0 0
        %1027 = vmatpush1.bf16.msra.mxu0 %v1022
        %1028 = vmatprep.subr.bf16.mxu0 0
        %1029 = vmatpush1.bf16.msra.mxu0 %v1023
        %1030 = vmatprep.subr.bf16.mxu0 0
        %1031 = vmatpush1.bf16.msra.mxu0 0
        %1032 = vmatprep.subr.bf16.mxu0 0
        %1033 = vmatpush1.bf16.msra.mxu0 0
        %1034 = vmatprep.subr.bf16.mxu0 0
        %1035 = vmatpush1.bf16.msra.mxu0 0
        %1036 = vmatprep.subr.bf16.mxu0 0
        %1037 = vmatpush1.bf16.msra.mxu0 0
        %1038 = vmatprep.subr.bf16.mxu0 0
        %1039 = vmatpush1.bf16.msra.mxu0 0
        %1040 = vmatprep.subr.bf16.mxu0 0
        %1041 = vmatpush1.bf16.msra.mxu0 0
        %1042 = vmatprep.subr.bf16.mxu0 0
        %1043 = vmatpush1.bf16.msra.mxu0 0
        %1044 = vmatprep.subr.bf16.mxu0 0
        %1045 = vmatpush1.bf16.msra.mxu0 0
        %1046 = vmatprep.subr.bf16.mxu0 0
        %1047 = vmatpush1.bf16.msra.mxu0 0
        %1048 = vmatprep.subr.bf16.mxu0 0
        %1049 = vmatpush1.bf16.msra.mxu0 0
        %1050 = vmatprep.subr.bf16.mxu0 0
        %1051 = vmatpush1.bf16.msra.mxu0 0
        %1052 = vmatprep.subr.bf16.mxu0 0
        %1053 = vmatpush1.bf16.msra.mxu0 0
        %1054 = vmatprep.subr.bf16.mxu0 0
        %1055 = vmatpush1.bf16.msra.mxu0 0
        %1056 = vmatprep.subr.bf16.mxu0 0
        %1057 = vmatpush1.bf16.msra.mxu0 0
        %1058 = vmatprep.mubr.bf16.mxu0 0
        %1059 = vmatmul.mubr.bf16.gmra.mrb[0].mxu0 %v958
        %v1060 = vpop.f32.mrb[0].mxu0
        %v1061 = vadd.f32 %v1012, %v1060
        %v1062 = vpop.f32.mrb[0].mxu0
        %v1063 = vpop.f32.mrb[0].mxu0
        %v1064 = vpop.f32.mrb[0].mxu0
        %1065 = vdwg.mxu0
        %v1066 = vpack.c.bf16 %v1061, %v1061
        %v1067 = vld [vmem:[#allocation13] sm:$0xf]
        %v1068 = vld [vmem:[#allocation13 + $0x4] sm:$0xf]
        %v1069 = vld [vmem:[#allocation13 + $0x8] sm:$0xf]
        %v1070 = vld [vmem:[#allocation13 + $0xc] sm:$0xf]
        %v1075 = vunpack.c.l.b16 %v1067
        %v1076 = vunpack.c.l.b16 %v1068
        %v1077 = vunpack.c.l.b16 %v1069
        %v1078 = vunpack.c.l.b16 %v1070
        %v1079 = vpack.c.b16 %v1076, %v1075
        %v1080 = vpack.c.b16 %v1078, %v1077
        %1083 = vmatprep.subr.bf16.mxu0 0
        %1084 = vmatpush1.bf16.msra.mxu0 %v1079
        %1085 = vmatprep.subr.bf16.mxu0 0
        %1086 = vmatpush1.bf16.msra.mxu0 %v1080
        %1087 = vmatprep.subr.bf16.mxu0 0
        %1088 = vmatpush1.bf16.msra.mxu0 0
        %1089 = vmatprep.subr.bf16.mxu0 0
        %1090 = vmatpush1.bf16.msra.mxu0 0
        %1091 = vmatprep.subr.bf16.mxu0 0
        %1092 = vmatpush1.bf16.msra.mxu0 0
        %1093 = vmatprep.subr.bf16.mxu0 0
        %1094 = vmatpush1.bf16.msra.mxu0 0
        %1095 = vmatprep.subr.bf16.mxu0 0
        %1096 = vmatpush1.bf16.msra.mxu0 0
        %1097 = vmatprep.subr.bf16.mxu0 0
        %1098 = vmatpush1.bf16.msra.mxu0 0
        %1099 = vmatprep.subr.bf16.mxu0 0
        %1100 = vmatpush1.bf16.msra.mxu0 0
        %1101 = vmatprep.subr.bf16.mxu0 0
        %1102 = vmatpush1.bf16.msra.mxu0 0
        %1103 = vmatprep.subr.bf16.mxu0 0
        %1104 = vmatpush1.bf16.msra.mxu0 0
        %1105 = vmatprep.subr.bf16.mxu0 0
        %1106 = vmatpush1.bf16.msra.mxu0 0
        %1107 = vmatprep.subr.bf16.mxu0 0
        %1108 = vmatpush1.bf16.msra.mxu0 0
        %1109 = vmatprep.subr.bf16.mxu0 0
        %1110 = vmatpush1.bf16.msra.mxu0 0
        %1111 = vmatprep.subr.bf16.mxu0 0
        %1112 = vmatpush1.bf16.msra.mxu0 0
        %1113 = vmatprep.subr.bf16.mxu0 0
        %1114 = vmatpush1.bf16.msra.mxu0 0
        %1115 = vmatprep.mubr.bf16.mxu0 0
        %1116 = vmatmul.mubr.bf16.gmra.mrb[0].mxu0 %v958
        %v1117 = vpop.f32.mrb[0].mxu0
        %v1118 = vadd.f32 0.0, %v1117
        %v1119 = vpop.f32.mrb[0].mxu0
        %v1120 = vpop.f32.mrb[0].mxu0
        %v1121 = vpop.f32.mrb[0].mxu0
        %1122 = vdwg.mxu0
        %v1123 = vpack.c.bf16 %v1118, %v1118
        %vm1124 = vcmask 64512
        %v1126 = vsel %vm1124, %v1000, 0
        %v1129 = vsel %vm1124, %v1066, 0
        %1131 = vmatprep.subr.bf16.mxu0 0
        %1132 = vmatpush1.bf16.xpose.msra.mxu0 %v1129
        %1133 = vmatprep.subr.bf16.mxu0 0
        %1134 = vmatpush1.bf16.xpose.msra.mxu0 0
        %1135 = vmatprep.subr.bf16.mxu0 0
        %1136 = vmatpush1.bf16.xpose.msra.mxu0 0
        %1137 = vmatprep.subr.bf16.mxu0 0
        %1138 = vmatpush1.bf16.xpose.msra.mxu0 0
        %1139 = vmatprep.subr.bf16.mxu0 0
        %1140 = vmatpush1.bf16.xpose.msra.mxu0 0
        %1141 = vmatprep.subr.bf16.mxu0 0
        %1142 = vmatpush1.bf16.xpose.msra.mxu0 0
        %1143 = vmatprep.subr.bf16.mxu0 0
        %1144 = vmatpush1.bf16.xpose.msra.mxu0 0
        %1145 = vmatprep.subr.bf16.mxu0 0
        %1146 = vmatpush1.bf16.xpose.msra.mxu0 0
        %1147 = vmatprep.subr.bf16.mxu0 0
        %1148 = vmatpush1.bf16.xpose.msra.mxu0 0
        %1149 = vmatprep.subr.bf16.mxu0 0
        %1150 = vmatpush1.bf16.xpose.msra.mxu0 0
        %1151 = vmatprep.subr.bf16.mxu0 0
        %1152 = vmatpush1.bf16.xpose.msra.mxu0 0
        %1153 = vmatprep.subr.bf16.mxu0 0
        %1154 = vmatpush1.bf16.xpose.msra.mxu0 0
        %1155 = vmatprep.subr.bf16.mxu0 0
        %1156 = vmatpush1.bf16.xpose.msra.mxu0 0
        %1157 = vmatprep.subr.bf16.mxu0 0
        %1158 = vmatpush1.bf16.xpose.msra.mxu0 0
        %1159 = vmatprep.subr.bf16.mxu0 0
        %1160 = vmatpush1.bf16.xpose.msra.mxu0 0
        %1161 = vmatprep.subr.bf16.mxu0 0
        %1162 = vmatpush1.bf16.xpose.msra.mxu0 0
        %1163 = vmatprep.mubr.bf16.mxu0 0
        %1164 = vmatmul.mubr.bf16.gmra.mrb[0].mxu0 %v1126
        %v1165 = vpop.f32.mrb[0].mxu0
        %v1166 = vadd.f32 0.0, %v1165
        %v1167 = vpop.f32.mrb[0].mxu0
        %v1168 = vpop.f32.mrb[0].mxu0
        %v1169 = vpop.f32.mrb[0].mxu0
        %1170 = vdwg.mxu0
        %v1171 = vsel %vm1124, %v1166, -inf
        %1172 = vmax.xlane.f32.xlu0 %v1171
        %v1173 = vpop.xlane.xlu0 %1172
        %v1174 = vsub.f32 %v1166, %v1173
        %v1175 = vmul.f32 %v1174, 1.442695
        %v1176 = vpow.pop %v1175
        %v1177 = vsel %vm1124, %v1176, 0.0
        %1178 = vadd.xlane.f32.xlu0 %v1177
        %v1179 = vpop.xlane.xlu0 %1178
        %v1180 = vrcp.pop %v1179
        %v1181 = vmul.f32 %v1176, %v1180
        %v1182 = vpack.c.bf16 %v1181, %v1181
        %1184 = vrot.lane.b32.xlu0 %v1000, 120
        %v1185 = vpop.permute.xlu0 %1184
        %1187 = vrot.lane.b32.xlu0 %v1066, 120
        %v1188 = vpop.permute.xlu0 %1187
        %v1190 = vsel %vm1124, %v1185, 0
        %v1193 = vsel %vm1124, %v1188, 0
        %1195 = vmatprep.subr.bf16.mxu0 0
        %1196 = vmatpush1.bf16.xpose.msra.mxu0 %v1193
        %1197 = vmatprep.subr.bf16.mxu0 0
        %1198 = vmatpush1.bf16.xpose.msra.mxu0 0
        %1199 = vmatprep.subr.bf16.mxu0 0
        %1200 = vmatpush1.bf16.xpose.msra.mxu0 0
        %1201 = vmatprep.subr.bf16.mxu0 0
        %1202 = vmatpush1.bf16.xpose.msra.mxu0 0
        %1203 = vmatprep.subr.bf16.mxu0 0
        %1204 = vmatpush1.bf16.xpose.msra.mxu0 0
        %1205 = vmatprep.subr.bf16.mxu0 0
        %1206 = vmatpush1.bf16.xpose.msra.mxu0 0
        %1207 = vmatprep.subr.bf16.mxu0 0
        %1208 = vmatpush1.bf16.xpose.msra.mxu0 0
        %1209 = vmatprep.subr.bf16.mxu0 0
        %1210 = vmatpush1.bf16.xpose.msra.mxu0 0
        %1211 = vmatprep.subr.bf16.mxu0 0
        %1212 = vmatpush1.bf16.xpose.msra.mxu0 0
        %1213 = vmatprep.subr.bf16.mxu0 0
        %1214 = vmatpush1.bf16.xpose.msra.mxu0 0
        %1215 = vmatprep.subr.bf16.mxu0 0
        %1216 = vmatpush1.bf16.xpose.msra.mxu0 0
        %1217 = vmatprep.subr.bf16.mxu0 0
        %1218 = vmatpush1.bf16.xpose.msra.mxu0 0
        %1219 = vmatprep.subr.bf16.mxu0 0
        %1220 = vmatpush1.bf16.xpose.msra.mxu0 0
        %1221 = vmatprep.subr.bf16.mxu0 0
        %1222 = vmatpush1.bf16.xpose.msra.mxu0 0
        %1223 = vmatprep.subr.bf16.mxu0 0
        %1224 = vmatpush1.bf16.xpose.msra.mxu0 0
        %1225 = vmatprep.subr.bf16.mxu0 0
        %1226 = vmatpush1.bf16.xpose.msra.mxu0 0
        %1227 = vmatprep.mubr.bf16.mxu0 0
        %1228 = vmatmul.mubr.bf16.gmra.mrb[0].mxu0 %v1190
        %v1229 = vpop.f32.mrb[0].mxu0
        %v1230 = vadd.f32 0.0, %v1229
        %v1231 = vpop.f32.mrb[0].mxu0
        %v1232 = vpop.f32.mrb[0].mxu0
        %v1233 = vpop.f32.mrb[0].mxu0
        %1234 = vdwg.mxu0
        %v1235 = vsel %vm1124, %v1230, -inf
        %1236 = vmax.xlane.f32.xlu0 %v1235
        %v1237 = vpop.xlane.xlu0 %1236
        %v1238 = vsub.f32 %v1230, %v1237
        %v1239 = vmul.f32 %v1238, 1.442695
        %v1240 = vpow.pop %v1239
        %v1241 = vsel %vm1124, %v1240, 0.0
        %1242 = vadd.xlane.f32.xlu0 %v1241
        %v1243 = vpop.xlane.xlu0 %1242
        %v1244 = vrcp.pop %v1243
        %v1245 = vmul.f32 %v1240, %v1244
        %v1246 = vpack.c.bf16 %v1245, %v1245
        %1248 = vrot.lane.b32.xlu0 %v1123, 96
        %v1249 = vpop.permute.xlu0 %1248
        %v1251 = vsel %vm1124, %v1246, 0
        %vm1253 = vcmask 1043456
        %v1255 = vsel %vm1253, %v1249, 0
        %1257 = vmatprep.subr.bf16.mxu0 0
        %1258 = vmatpush1.bf16.msra.mxu0 %v1255
        %1259 = vmatprep.subr.bf16.mxu0 0
        %1260 = vmatpush1.bf16.msra.mxu0 0
        %1261 = vmatprep.subr.bf16.mxu0 0
        %1262 = vmatpush1.bf16.msra.mxu0 0
        %1263 = vmatprep.subr.bf16.mxu0 0
        %1264 = vmatpush1.bf16.msra.mxu0 0
        %1265 = vmatprep.subr.bf16.mxu0 0
        %1266 = vmatpush1.bf16.msra.mxu0 0
        %1267 = vmatprep.subr.bf16.mxu0 0
        %1268 = vmatpush1.bf16.msra.mxu0 0
        %1269 = vmatprep.subr.bf16.mxu0 0
        %1270 = vmatpush1.bf16.msra.mxu0 0
        %1271 = vmatprep.subr.bf16.mxu0 0
        %1272 = vmatpush1.bf16.msra.mxu0 0
        %1273 = vmatprep.subr.bf16.mxu0 0
        %1274 = vmatpush1.bf16.msra.mxu0 0
        %1275 = vmatprep.subr.bf16.mxu0 0
        %1276 = vmatpush1.bf16.msra.mxu0 0
        %1277 = vmatprep.subr.bf16.mxu0 0
        %1278 = vmatpush1.bf16.msra.mxu0 0
        %1279 = vmatprep.subr.bf16.mxu0 0
        %1280 = vmatpush1.bf16.msra.mxu0 0
        %1281 = vmatprep.subr.bf16.mxu0 0
        %1282 = vmatpush1.bf16.msra.mxu0 0
        %1283 = vmatprep.subr.bf16.mxu0 0
        %1284 = vmatpush1.bf16.msra.mxu0 0
        %1285 = vmatprep.subr.bf16.mxu0 0
        %1286 = vmatpush1.bf16.msra.mxu0 0
        %1287 = vmatprep.subr.bf16.mxu0 0
        %1288 = vmatpush1.bf16.msra.mxu0 0
        %1289 = vmatprep.mubr.bf16.mxu0 0
        %1290 = vmatmul.mubr.bf16.gmra.mrb[0].mxu0 %v1251
        %v1291 = vpop.f32.mrb[0].mxu0
        %v1292 = vadd.f32 0.0, %v1291
        %v1293 = vpop.f32.mrb[0].mxu0
        %v1294 = vpop.f32.mrb[0].mxu0
        %v1295 = vpop.f32.mrb[0].mxu0
        %1296 = vdwg.mxu0
        %v1298 = vsel %vm1124, %v1182, 0
        %v1301 = vsel %vm1253, %v1123, 0
        %1303 = vmatprep.subr.bf16.mxu0 0
        %1304 = vmatpush1.bf16.msra.mxu0 %v1301
        %1305 = vmatprep.subr.bf16.mxu0 0
        %1306 = vmatpush1.bf16.msra.mxu0 0
        %1307 = vmatprep.subr.bf16.mxu0 0
        %1308 = vmatpush1.bf16.msra.mxu0 0
        %1309 = vmatprep.subr.bf16.mxu0 0
        %1310 = vmatpush1.bf16.msra.mxu0 0
        %1311 = vmatprep.subr.bf16.mxu0 0
        %1312 = vmatpush1.bf16.msra.mxu0 0
        %1313 = vmatprep.subr.bf16.mxu0 0
        %1314 = vmatpush1.bf16.msra.mxu0 0
        %1315 = vmatprep.subr.bf16.mxu0 0
        %1316 = vmatpush1.bf16.msra.mxu0 0
        %1317 = vmatprep.subr.bf16.mxu0 0
        %1318 = vmatpush1.bf16.msra.mxu0 0
        %1319 = vmatprep.subr.bf16.mxu0 0
        %1320 = vmatpush1.bf16.msra.mxu0 0
        %1321 = vmatprep.subr.bf16.mxu0 0
        %1322 = vmatpush1.bf16.msra.mxu0 0
        %1323 = vmatprep.subr.bf16.mxu0 0
        %1324 = vmatpush1.bf16.msra.mxu0 0
        %1325 = vmatprep.subr.bf16.mxu0 0
        %1326 = vmatpush1.bf16.msra.mxu0 0
        %1327 = vmatprep.subr.bf16.mxu0 0
        %1328 = vmatpush1.bf16.msra.mxu0 0
        %1329 = vmatprep.subr.bf16.mxu0 0
        %1330 = vmatpush1.bf16.msra.mxu0 0
        %1331 = vmatprep.subr.bf16.mxu0 0
        %1332 = vmatpush1.bf16.msra.mxu0 0
        %1333 = vmatprep.subr.bf16.mxu0 0
        %1334 = vmatpush1.bf16.msra.mxu0 0
        %1335 = vmatprep.mubr.bf16.mxu0 0
        %1336 = vmatmul.mubr.bf16.gmra.mrb[0].mxu0 %v1298
        %v1337 = vpop.f32.mrb[0].mxu0
        %v1338 = vadd.f32 %v1292, %v1337
        %v1339 = vpop.f32.mrb[0].mxu0
        %v1340 = vpop.f32.mrb[0].mxu0
        %v1341 = vpop.f32.mrb[0].mxu0
        %1342 = vdwg.mxu0
        %1343 = vrot.lane.b32.xlu0 %v1000, 112
        %v1344 = vpop.permute.xlu0 %1343
        %1345 = vrot.lane.b32.xlu0 %v1066, 112
        %v1346 = vpop.permute.xlu0 %1345
        %v1348 = vsel %vm1124, %v1344, 0
        %v1351 = vsel %vm1124, %v1346, 0
        %1353 = vmatprep.subr.bf16.mxu0 0
        %1354 = vmatpush1.bf16.xpose.msra.mxu0 %v1351
        %1355 = vmatprep.subr.bf16.mxu0 0
        %1356 = vmatpush1.bf16.xpose.msra.mxu0 0
        %1357 = vmatprep.subr.bf16.mxu0 0
        %1358 = vmatpush1.bf16.xpose.msra.mxu0 0
        %1359 = vmatprep.subr.bf16.mxu0 0
        %1360 = vmatpush1.bf16.xpose.msra.mxu0 0
        %1361 = vmatprep.subr.bf16.mxu0 0
        %1362 = vmatpush1.bf16.xpose.msra.mxu0 0
        %1363 = vmatprep.subr.bf16.mxu0 0
        %1364 = vmatpush1.bf16.xpose.msra.mxu0 0
        %1365 = vmatprep.subr.bf16.mxu0 0
        %1366 = vmatpush1.bf16.xpose.msra.mxu0 0
        %1367 = vmatprep.subr.bf16.mxu0 0
        %1368 = vmatpush1.bf16.xpose.msra.mxu0 0
        %1369 = vmatprep.subr.bf16.mxu0 0
        %1370 = vmatpush1.bf16.xpose.msra.mxu0 0
        %1371 = vmatprep.subr.bf16.mxu0 0
        %1372 = vmatpush1.bf16.xpose.msra.mxu0 0
        %1373 = vmatprep.subr.bf16.mxu0 0
        %1374 = vmatpush1.bf16.xpose.msra.mxu0 0
        %1375 = vmatprep.subr.bf16.mxu0 0
        %1376 = vmatpush1.bf16.xpose.msra.mxu0 0
        %1377 = vmatprep.subr.bf16.mxu0 0
        %1378 = vmatpush1.bf16.xpose.msra.mxu0 0
        %1379 = vmatprep.subr.bf16.mxu0 0
        %1380 = vmatpush1.bf16.xpose.msra.mxu0 0
        %1381 = vmatprep.subr.bf16.mxu0 0
        %1382 = vmatpush1.bf16.xpose.msra.mxu0 0
        %1383 = vmatprep.subr.bf16.mxu0 0
        %1384 = vmatpush1.bf16.xpose.msra.mxu0 0
        %1385 = vmatprep.mubr.bf16.mxu0 0
        %1386 = vmatmul.mubr.bf16.gmra.mrb[0].mxu0 %v1348
        %v1387 = vpop.f32.mrb[0].mxu0
        %v1388 = vadd.f32 0.0, %v1387
        %v1389 = vpop.f32.mrb[0].mxu0
        %v1390 = vpop.f32.mrb[0].mxu0
        %v1391 = vpop.f32.mrb[0].mxu0
        %1392 = vdwg.mxu0
        %v1393 = vsel %vm1124, %v1388, -inf
        %1394 = vmax.xlane.f32.xlu0 %v1393
        %v1395 = vpop.xlane.xlu0 %1394
        %v1396 = vsub.f32 %v1388, %v1395
        %v1397 = vmul.f32 %v1396, 1.442695
        %v1398 = vpow.pop %v1397
        %v1399 = vsel %vm1124, %v1398, 0.0
        %1400 = vadd.xlane.f32.xlu0 %v1399
        %v1401 = vpop.xlane.xlu0 %1400
        %v1402 = vrcp.pop %v1401
        %v1403 = vmul.f32 %v1398, %v1402
        %v1404 = vpack.c.bf16 %v1403, %v1403
        %1405 = vrot.lane.b32.xlu0 %v1123, 64
        %v1406 = vpop.permute.xlu0 %1405
        %v1408 = vsel %vm1124, %v1404, 0
        %v1411 = vsel %vm1253, %v1406, 0
        %1413 = vmatprep.subr.bf16.mxu0 0
        %1414 = vmatpush1.bf16.msra.mxu0 %v1411
        %1415 = vmatprep.subr.bf16.mxu0 0
        %1416 = vmatpush1.bf16.msra.mxu0 0
        %1417 = vmatprep.subr.bf16.mxu0 0
        %1418 = vmatpush1.bf16.msra.mxu0 0
        %1419 = vmatprep.subr.bf16.mxu0 0
        %1420 = vmatpush1.bf16.msra.mxu0 0
        %1421 = vmatprep.subr.bf16.mxu0 0
        %1422 = vmatpush1.bf16.msra.mxu0 0
        %1423 = vmatprep.subr.bf16.mxu0 0
        %1424 = vmatpush1.bf16.msra.mxu0 0
        %1425 = vmatprep.subr.bf16.mxu0 0
        %1426 = vmatpush1.bf16.msra.mxu0 0
        %1427 = vmatprep.subr.bf16.mxu0 0
        %1428 = vmatpush1.bf16.msra.mxu0 0
        %1429 = vmatprep.subr.bf16.mxu0 0
        %1430 = vmatpush1.bf16.msra.mxu0 0
        %1431 = vmatprep.subr.bf16.mxu0 0
        %1432 = vmatpush1.bf16.msra.mxu0 0
        %1433 = vmatprep.subr.bf16.mxu0 0
        %1434 = vmatpush1.bf16.msra.mxu0 0
        %1435 = vmatprep.subr.bf16.mxu0 0
        %1436 = vmatpush1.bf16.msra.mxu0 0
        %1437 = vmatprep.subr.bf16.mxu0 0
        %1438 = vmatpush1.bf16.msra.mxu0 0
        %1439 = vmatprep.subr.bf16.mxu0 0
        %1440 = vmatpush1.bf16.msra.mxu0 0
        %1441 = vmatprep.subr.bf16.mxu0 0
        %1442 = vmatpush1.bf16.msra.mxu0 0
        %1443 = vmatprep.subr.bf16.mxu0 0
        %1444 = vmatpush1.bf16.msra.mxu0 0
        %1445 = vmatprep.mubr.bf16.mxu0 0
        %1446 = vmatmul.mubr.bf16.gmra.mrb[0].mxu0 %v1408
        %v1447 = vpop.f32.mrb[0].mxu0
        %v1448 = vadd.f32 0.0, %v1447
        %v1449 = vpop.f32.mrb[0].mxu0
        %v1450 = vpop.f32.mrb[0].mxu0
        %v1451 = vpop.f32.mrb[0].mxu0
        %1452 = vdwg.mxu0
        %v1453 = vadd.f32 %v1338, %v1448
        %1454 = vrot.lane.b32.xlu0 %v1000, 104
        %v1455 = vpop.permute.xlu0 %1454
        %1456 = vrot.lane.b32.xlu0 %v1066, 104
        %v1457 = vpop.permute.xlu0 %1456
        %v1459 = vsel %vm1124, %v1455, 0
        %v1462 = vsel %vm1124, %v1457, 0
        %1464 = vmatprep.subr.bf16.mxu0 0
        %1465 = vmatpush1.bf16.xpose.msra.mxu0 %v1462
        %1466 = vmatprep.subr.bf16.mxu0 0
        %1467 = vmatpush1.bf16.xpose.msra.mxu0 0
        %1468 = vmatprep.subr.bf16.mxu0 0
        %1469 = vmatpush1.bf16.xpose.msra.mxu0 0
        %1470 = vmatprep.subr.bf16.mxu0 0
        %1471 = vmatpush1.bf16.xpose.msra.mxu0 0
        %1472 = vmatprep.subr.bf16.mxu0 0
        %1473 = vmatpush1.bf16.xpose.msra.mxu0 0
        %1474 = vmatprep.subr.bf16.mxu0 0
        %1475 = vmatpush1.bf16.xpose.msra.mxu0 0
        %1476 = vmatprep.subr.bf16.mxu0 0
        %1477 = vmatpush1.bf16.xpose.msra.mxu0 0
        %1478 = vmatprep.subr.bf16.mxu0 0
        %1479 = vmatpush1.bf16.xpose.msra.mxu0 0
        %1480 = vmatprep.subr.bf16.mxu0 0
        %1481 = vmatpush1.bf16.xpose.msra.mxu0 0
        %1482 = vmatprep.subr.bf16.mxu0 0
        %1483 = vmatpush1.bf16.xpose.msra.mxu0 0
        %1484 = vmatprep.subr.bf16.mxu0 0
        %1485 = vmatpush1.bf16.xpose.msra.mxu0 0
        %1486 = vmatprep.subr.bf16.mxu0 0
        %1487 = vmatpush1.bf16.xpose.msra.mxu0 0
        %1488 = vmatprep.subr.bf16.mxu0 0
        %1489 = vmatpush1.bf16.xpose.msra.mxu0 0
        %1490 = vmatprep.subr.bf16.mxu0 0
        %1491 = vmatpush1.bf16.xpose.msra.mxu0 0
        %1492 = vmatprep.subr.bf16.mxu0 0
        %1493 = vmatpush1.bf16.xpose.msra.mxu0 0
        %1494 = vmatprep.subr.bf16.mxu0 0
        %1495 = vmatpush1.bf16.xpose.msra.mxu0 0
        %1496 = vmatprep.mubr.bf16.mxu0 0
        %1497 = vmatmul.mubr.bf16.gmra.mrb[0].mxu0 %v1459
        %v1498 = vpop.f32.mrb[0].mxu0
        %v1499 = vadd.f32 0.0, %v1498
        %v1500 = vpop.f32.mrb[0].mxu0
        %v1501 = vpop.f32.mrb[0].mxu0
        %v1502 = vpop.f32.mrb[0].mxu0
        %1503 = vdwg.mxu0
        %v1504 = vsel %vm1124, %v1499, -inf
        %1505 = vmax.xlane.f32.xlu0 %v1504
        %v1506 = vpop.xlane.xlu0 %1505
        %v1507 = vsub.f32 %v1499, %v1506
        %v1508 = vmul.f32 %v1507, 1.442695
        %v1509 = vpow.pop %v1508
        %v1510 = vsel %vm1124, %v1509, 0.0
        %1511 = vadd.xlane.f32.xlu0 %v1510
        %v1512 = vpop.xlane.xlu0 %1511
        %v1513 = vrcp.pop %v1512
        %v1514 = vmul.f32 %v1509, %v1513
        %v1515 = vpack.c.bf16 %v1514, %v1514
        %1516 = vrot.lane.b32.xlu0 %v1123, 32
        %v1517 = vpop.permute.xlu0 %1516
        %v1519 = vsel %vm1124, %v1515, 0
        %v1522 = vsel %vm1253, %v1517, 0
        %1524 = vmatprep.subr.bf16.mxu0 0
        %1525 = vmatpush1.bf16.msra.mxu0 %v1522
        %1526 = vmatprep.subr.bf16.mxu0 0
        %1527 = vmatpush1.bf16.msra.mxu0 0
        %1528 = vmatprep.subr.bf16.mxu0 0
        %1529 = vmatpush1.bf16.msra.mxu0 0
        %1530 = vmatprep.subr.bf16.mxu0 0
        %1531 = vmatpush1.bf16.msra.mxu0 0
        %1532 = vmatprep.subr.bf16.mxu0 0
        %1533 = vmatpush1.bf16.msra.mxu0 0
        %1534 = vmatprep.subr.bf16.mxu0 0
        %1535 = vmatpush1.bf16.msra.mxu0 0
        %1536 = vmatprep.subr.bf16.mxu0 0
        %1537 = vmatpush1.bf16.msra.mxu0 0
        %1538 = vmatprep.subr.bf16.mxu0 0
        %1539 = vmatpush1.bf16.msra.mxu0 0
        %1540 = vmatprep.subr.bf16.mxu0 0
        %1541 = vmatpush1.bf16.msra.mxu0 0
        %1542 = vmatprep.subr.bf16.mxu0 0
        %1543 = vmatpush1.bf16.msra.mxu0 0
        %1544 = vmatprep.subr.bf16.mxu0 0
        %1545 = vmatpush1.bf16.msra.mxu0 0
        %1546 = vmatprep.subr.bf16.mxu0 0
        %1547 = vmatpush1.bf16.msra.mxu0 0
        %1548 = vmatprep.subr.bf16.mxu0 0
        %1549 = vmatpush1.bf16.msra.mxu0 0
        %1550 = vmatprep.subr.bf16.mxu0 0
        %1551 = vmatpush1.bf16.msra.mxu0 0
        %1552 = vmatprep.subr.bf16.mxu0 0
        %1553 = vmatpush1.bf16.msra.mxu0 0
        %1554 = vmatprep.subr.bf16.mxu0 0
        %1555 = vmatpush1.bf16.msra.mxu0 0
        %1556 = vmatprep.mubr.bf16.mxu0 0
        %1557 = vmatmul.mubr.bf16.gmra.mrb[0].mxu0 %v1519
        %v1558 = vpop.f32.mrb[0].mxu0
        %v1559 = vadd.f32 0.0, %v1558
        %v1560 = vpop.f32.mrb[0].mxu0
        %v1561 = vpop.f32.mrb[0].mxu0
        %v1562 = vpop.f32.mrb[0].mxu0
        %1563 = vdwg.mxu0
        %v1564 = vadd.f32 %v1453, %v1559
        %v1565 = vld [vmem:[%s8] sm:$0x1]
        %v1567 = vlaneseq
        %v1568 = vshrl.u32 %v1567, 7
        %v1569 = vsub.s32 0, %v1568
        %v1570 = vrot.slane %v1565, %v1569
        %v1572 = vadd.f32 %v1564, %v1570
        %v1573 = vadd.f32 %v897, 1.0
        %v1574 = vlaneseq
        %v1575 = vshrl.u32 %v1574, 7
        %v1576 = vsub.s32 0, %v1575
        %v1577 = vrot.slane %v1573, %v1576
        %v1578 = vmul.f32 %v1577, %v1572
        %v1579 = vadd.f32 %v801, %v1578
        %v1580 = vlaneseq
        %v1581 = vshrl.u32 %v1580, 7
        %v1582 = vsub.s32 0, %v1581
        %v1583 = vrot.slane %v897, %v1582
        %1585 = vrot.lane.b32.xlu0 %v1583, 96
        %v1586 = vpop.permute.xlu0 %1585
        %v1588 = vadd.f32 %v1579, %v1586
        %s1589 = scalar_lea.vmem [#allocation8], 1
        %v1590 = vld [vmem:[%s1589] sm:$0x1]
        %s1591 = scalar_lea.vmem [#allocation10], 1
        %v1592 = vld [vmem:[%s1591] sm:$0x1]
        %v1593 = vsel %vm858, %v1588, 0.0
        %1594 = vadd.xlane.f32.xlu0 %v1593
        %v1595 = vpop.xlane.xlu0 %1594
        %v1596 = vmul.f32 %v1595, %v908
        %v1597 = vsub.f32 %v1588, %v1596
        %v1598 = vmul.f32 %v1597, %v1597
        %v1599 = vsel %vm858, %v1598, 0.0
        %1600 = vadd.xlane.f32.xlu0 %v1599
        %v1601 = vpop.xlane.xlu0 %1600
        %v1602 = vmul.f32 %v1601, %v908
        %v1603 = vadd.f32 %v1602, 1e-05
        %v1604 = vrsqrt.pop %v1603
        %v1605 = vmul.f32 %v1597, %v1604
        %v1607 = vlaneseq
        %v1608 = vshrl.u32 %v1607, 7
        %v1609 = vsub.s32 0, %v1608
        %v1610 = vrot.slane %v1590, %v1609
        %v1612 = vmul.f32 %v1605, %v1610
        %v1614 = vlaneseq
        %v1615 = vshrl.u32 %v1614, 7
        %v1616 = vsub.s32 0, %v1615
        %v1617 = vrot.slane %v1592, %v1616
        %v1619 = vadd.f32 %v1612, %v1617
        %v1620 = vpack.c.bf16 %v1619, %v1619
        %v1621 = vld [vmem:[%s9] sm:$0xf]
        %v1622 = vld [vmem:[%s9 + $0x4] sm:$0xf]
        %v1623 = vld [vmem:[%s9 + $0x8] sm:$0xf]
        %v1624 = vld [vmem:[%s9 + $0xc] sm:$0xf]
        %v1625 = vld [vmem:[#allocation14] sm:$0x1]
        %v1627 = vlaneseq
        %v1628 = vshrl.u32 %v1627, 7
        %v1629 = vsub.s32 0, %v1628
        %v1630 = vrot.slane %v1625, %v1629
        %v1636 = vunpack.c.l.b16 %v1621
        %v1637 = vunpack.c.l.b16 %v1622
        %v1638 = vunpack.c.l.b16 %v1623
        %v1639 = vunpack.c.l.b16 %v1624
        %v1640 = vpack.c.b16 %v1637, %v1636
        %v1641 = vpack.c.b16 %v1639, %v1638
        %v1645 = vsel %vm858, %v1620, 0
        %1647 = vmatprep.subr.bf16.mxu0 0
        %1648 = vmatpush1.bf16.msra.mxu0 %v1640
        %1649 = vmatprep.subr.bf16.mxu0 0
        %1650 = vmatpush1.bf16.msra.mxu0 %v1641
        %1651 = vmatprep.subr.bf16.mxu0 0
        %1652 = vmatpush1.bf16.msra.mxu0 0
        %1653 = vmatprep.subr.bf16.mxu0 0
        %1654 = vmatpush1.bf16.msra.mxu0 0
        %1655 = vmatprep.subr.bf16.mxu0 0
        %1656 = vmatpush1.bf16.msra.mxu0 0
        %1657 = vmatprep.subr.bf16.mxu0 0
        %1658 = vmatpush1.bf16.msra.mxu0 0
        %1659 = vmatprep.subr.bf16.mxu0 0
        %1660 = vmatpush1.bf16.msra.mxu0 0
        %1661 = vmatprep.subr.bf16.mxu0 0
        %1662 = vmatpush1.bf16.msra.mxu0 0
        %1663 = vmatprep.subr.bf16.mxu0 0
        %1664 = vmatpush1.bf16.msra.mxu0 0
        %1665 = vmatprep.subr.bf16.mxu0 0
        %1666 = vmatpush1.bf16.msra.mxu0 0
        %1667 = vmatprep.subr.bf16.mxu0 0
        %1668 = vmatpush1.bf16.msra.mxu0 0
        %1669 = vmatprep.subr.bf16.mxu0 0
        %1670 = vmatpush1.bf16.msra.mxu0 0
        %1671 = vmatprep.subr.bf16.mxu0 0
        %1672 = vmatpush1.bf16.msra.mxu0 0
        %1673 = vmatprep.subr.bf16.mxu0 0
        %1674 = vmatpush1.bf16.msra.mxu0 0
        %1675 = vmatprep.subr.bf16.mxu0 0
        %1676 = vmatpush1.bf16.msra.mxu0 0
        %1677 = vmatprep.subr.bf16.mxu0 0
        %1678 = vmatpush1.bf16.msra.mxu0 0
        %1679 = vmatprep.mubr.bf16.mxu0 0
        %1680 = vmatmul.mubr.bf16.gmra.mrb[0].mxu0 %v1645
        %v1681 = vpop.f32.mrb[0].mxu0
        %v1682 = vadd.f32 %v1630, %v1681
        %v1683 = vpop.f32.mrb[0].mxu0
        %v1684 = vpop.f32.mrb[0].mxu0
        %v1685 = vpop.f32.mrb[0].mxu0
        %1686 = vdwg.mxu0
        %v1687 = vpack.c.bf16 %v1682, %v1682
        %s1688 = scalar_lea.vmem %s9, 16
        %v1689 = vld [vmem:[%s1688] sm:$0xf]
        %v1690 = vld [vmem:[%s1688 + $0x4] sm:$0xf]
        %v1691 = vld [vmem:[%s1688 + $0x8] sm:$0xf]
        %v1692 = vld [vmem:[%s1688 + $0xc] sm:$0xf]
        %s1693 = scalar_lea.vmem [#allocation14], 1
        %v1694 = vld [vmem:[%s1693] sm:$0x1]
        %v1696 = vlaneseq
        %v1697 = vshrl.u32 %v1696, 7
        %v1698 = vsub.s32 0, %v1697
        %v1699 = vrot.slane %v1694, %v1698
        %v1705 = vunpack.c.l.b16 %v1689
        %v1706 = vunpack.c.l.b16 %v1690
        %v1707 = vunpack.c.l.b16 %v1691
        %v1708 = vunpack.c.l.b16 %v1692
        %v1709 = vpack.c.b16 %v1706, %v1705
        %v1710 = vpack.c.b16 %v1708, %v1707
        %v1714 = vsel %vm858, %v803, 0
        %1716 = vmatprep.subr.bf16.mxu0 0
        %1717 = vmatpush1.bf16.msra.mxu0 %v1709
        %1718 = vmatprep.subr.bf16.mxu0 0
        %1719 = vmatpush1.bf16.msra.mxu0 %v1710
        %1720 = vmatprep.subr.bf16.mxu0 0
        %1721 = vmatpush1.bf16.msra.mxu0 0
        %1722 = vmatprep.subr.bf16.mxu0 0
        %1723 = vmatpush1.bf16.msra.mxu0 0
        %1724 = vmatprep.subr.bf16.mxu0 0
        %1725 = vmatpush1.bf16.msra.mxu0 0
        %1726 = vmatprep.subr.bf16.mxu0 0
        %1727 = vmatpush1.bf16.msra.mxu0 0
        %1728 = vmatprep.subr.bf16.mxu0 0
        %1729 = vmatpush1.bf16.msra.mxu0 0
        %1730 = vmatprep.subr.bf16.mxu0 0
        %1731 = vmatpush1.bf16.msra.mxu0 0
        %1732 = vmatprep.subr.bf16.mxu0 0
        %1733 = vmatpush1.bf16.msra.mxu0 0
        %1734 = vmatprep.subr.bf16.mxu0 0
        %1735 = vmatpush1.bf16.msra.mxu0 0
        %1736 = vmatprep.subr.bf16.mxu0 0
        %1737 = vmatpush1.bf16.msra.mxu0 0
        %1738 = vmatprep.subr.bf16.mxu0 0
        %1739 = vmatpush1.bf16.msra.mxu0 0
        %1740 = vmatprep.subr.bf16.mxu0 0
        %1741 = vmatpush1.bf16.msra.mxu0 0
        %1742 = vmatprep.subr.bf16.mxu0 0
        %1743 = vmatpush1.bf16.msra.mxu0 0
        %1744 = vmatprep.subr.bf16.mxu0 0
        %1745 = vmatpush1.bf16.msra.mxu0 0
        %1746 = vmatprep.subr.bf16.mxu0 0
        %1747 = vmatpush1.bf16.msra.mxu0 0
        %1748 = vmatprep.mubr.bf16.mxu0 0
        %1749 = vmatmul.mubr.bf16.gmra.mrb[0].mxu0 %v1714
        %v1750 = vpop.f32.mrb[0].mxu0
        %v1751 = vadd.f32 %v1699, %v1750
        %v1752 = vpop.f32.mrb[0].mxu0
        %v1753 = vpop.f32.mrb[0].mxu0
        %v1754 = vpop.f32.mrb[0].mxu0
        %1755 = vdwg.mxu0
        %v1756 = vpack.c.bf16 %v1751, %v1751
        %v1757 = vld [vmem:[#allocation16] sm:$0xf]
        %v1758 = vld [vmem:[#allocation16 + $0x4] sm:$0xf]
        %v1759 = vld [vmem:[#allocation16 + $0x8] sm:$0xf]
        %v1760 = vld [vmem:[#allocation16 + $0xc] sm:$0xf]
        %v1765 = vunpack.c.l.b16 %v1757
        %v1766 = vunpack.c.l.b16 %v1758
        %v1767 = vunpack.c.l.b16 %v1759
        %v1768 = vunpack.c.l.b16 %v1760
        %v1769 = vpack.c.b16 %v1766, %v1765
        %v1770 = vpack.c.b16 %v1768, %v1767
        %1773 = vmatprep.subr.bf16.mxu0 0
        %1774 = vmatpush1.bf16.msra.mxu0 %v1769
        %1775 = vmatprep.subr.bf16.mxu0 0
        %1776 = vmatpush1.bf16.msra.mxu0 %v1770
        %1777 = vmatprep.subr.bf16.mxu0 0
        %1778 = vmatpush1.bf16.msra.mxu0 0
        %1779 = vmatprep.subr.bf16.mxu0 0
        %1780 = vmatpush1.bf16.msra.mxu0 0
        %1781 = vmatprep.subr.bf16.mxu0 0
        %1782 = vmatpush1.bf16.msra.mxu0 0
        %1783 = vmatprep.subr.bf16.mxu0 0
        %1784 = vmatpush1.bf16.msra.mxu0 0
        %1785 = vmatprep.subr.bf16.mxu0 0
        %1786 = vmatpush1.bf16.msra.mxu0 0
        %1787 = vmatprep.subr.bf16.mxu0 0
        %1788 = vmatpush1.bf16.msra.mxu0 0
        %1789 = vmatprep.subr.bf16.mxu0 0
        %1790 = vmatpush1.bf16.msra.mxu0 0
        %1791 = vmatprep.subr.bf16.mxu0 0
        %1792 = vmatpush1.bf16.msra.mxu0 0
        %1793 = vmatprep.subr.bf16.mxu0 0
        %1794 = vmatpush1.bf16.msra.mxu0 0
        %1795 = vmatprep.subr.bf16.mxu0 0
        %1796 = vmatpush1.bf16.msra.mxu0 0
        %1797 = vmatprep.subr.bf16.mxu0 0
        %1798 = vmatpush1.bf16.msra.mxu0 0
        %1799 = vmatprep.subr.bf16.mxu0 0
        %1800 = vmatpush1.bf16.msra.mxu0 0
        %1801 = vmatprep.subr.bf16.mxu0 0
        %1802 = vmatpush1.bf16.msra.mxu0 0
        %1803 = vmatprep.subr.bf16.mxu0 0
        %1804 = vmatpush1.bf16.msra.mxu0 0
        %1805 = vmatprep.mubr.bf16.mxu0 0
        %1806 = vmatmul.mubr.bf16.gmra.mrb[0].mxu0 %v1714
        %v1807 = vpop.f32.mrb[0].mxu0
        %v1808 = vadd.f32 0.0, %v1807
        %v1809 = vpop.f32.mrb[0].mxu0
        %v1810 = vpop.f32.mrb[0].mxu0
        %v1811 = vpop.f32.mrb[0].mxu0
        %1812 = vdwg.mxu0
        %v1813 = vpack.c.bf16 %v1808, %v1808
        %v1815 = vsel %vm1124, %v1687, 0
        %v1818 = vsel %vm1124, %v1756, 0
        %1820 = vmatprep.subr.bf16.mxu0 0
        %1821 = vmatpush1.bf16.xpose.msra.mxu0 %v1818
        %1822 = vmatprep.subr.bf16.mxu0 0
        %1823 = vmatpush1.bf16.xpose.msra.mxu0 0
        %1824 = vmatprep.subr.bf16.mxu0 0
        %1825 = vmatpush1.bf16.xpose.msra.mxu0 0
        %1826 = vmatprep.subr.bf16.mxu0 0
        %1827 = vmatpush1.bf16.xpose.msra.mxu0 0
        %1828 = vmatprep.subr.bf16.mxu0 0
        %1829 = vmatpush1.bf16.xpose.msra.mxu0 0
        %1830 = vmatprep.subr.bf16.mxu0 0
        %1831 = vmatpush1.bf16.xpose.msra.mxu0 0
        %1832 = vmatprep.subr.bf16.mxu0 0
        %1833 = vmatpush1.bf16.xpose.msra.mxu0 0
        %1834 = vmatprep.subr.bf16.mxu0 0
        %1835 = vmatpush1.bf16.xpose.msra.mxu0 0
        %1836 = vmatprep.subr.bf16.mxu0 0
        %1837 = vmatpush1.bf16.xpose.msra.mxu0 0
        %1838 = vmatprep.subr.bf16.mxu0 0
        %1839 = vmatpush1.bf16.xpose.msra.mxu0 0
        %1840 = vmatprep.subr.bf16.mxu0 0
        %1841 = vmatpush1.bf16.xpose.msra.mxu0 0
        %1842 = vmatprep.subr.bf16.mxu0 0
        %1843 = vmatpush1.bf16.xpose.msra.mxu0 0
        %1844 = vmatprep.subr.bf16.mxu0 0
        %1845 = vmatpush1.bf16.xpose.msra.mxu0 0
        %1846 = vmatprep.subr.bf16.mxu0 0
        %1847 = vmatpush1.bf16.xpose.msra.mxu0 0
        %1848 = vmatprep.subr.bf16.mxu0 0
        %1849 = vmatpush1.bf16.xpose.msra.mxu0 0
        %1850 = vmatprep.subr.bf16.mxu0 0
        %1851 = vmatpush1.bf16.xpose.msra.mxu0 0
        %1852 = vmatprep.mubr.bf16.mxu0 0
        %1853 = vmatmul.mubr.bf16.gmra.mrb[0].mxu0 %v1815
        %v1854 = vpop.f32.mrb[0].mxu0
        %v1855 = vadd.f32 0.0, %v1854
        %v1856 = vpop.f32.mrb[0].mxu0
        %v1857 = vpop.f32.mrb[0].mxu0
        %v1858 = vpop.f32.mrb[0].mxu0
        %1859 = vdwg.mxu0
        %v1860 = vsel %vm1124, %v1855, -inf
        %1861 = vmax.xlane.f32.xlu0 %v1860
        %v1862 = vpop.xlane.xlu0 %1861
        %v1863 = vsub.f32 %v1855, %v1862
        %v1864 = vmul.f32 %v1863, 1.442695
        %v1865 = vpow.pop %v1864
        %v1866 = vsel %vm1124, %v1865, 0.0
        %1867 = vadd.xlane.f32.xlu0 %v1866
        %v1868 = vpop.xlane.xlu0 %1867
        %v1869 = vrcp.pop %v1868
        %v1870 = vmul.f32 %v1865, %v1869
        %v1871 = vpack.c.bf16 %v1870, %v1870
        %1873 = vrot.lane.b32.xlu0 %v1687, 120
        %v1874 = vpop.permute.xlu0 %1873
        %1876 = vrot.lane.b32.xlu0 %v1756, 120
        %v1877 = vpop.permute.xlu0 %1876
        %v1879 = vsel %vm1124, %v1874, 0
        %v1882 = vsel %vm1124, %v1877, 0
        %1884 = vmatprep.subr.bf16.mxu0 0
        %1885 = vmatpush1.bf16.xpose.msra.mxu0 %v1882
        %1886 = vmatprep.subr.bf16.mxu0 0
        %1887 = vmatpush1.bf16.xpose.msra.mxu0 0
        %1888 = vmatprep.subr.bf16.mxu0 0
        %1889 = vmatpush1.bf16.xpose.msra.mxu0 0
        %1890 = vmatprep.subr.bf16.mxu0 0
        %1891 = vmatpush1.bf16.xpose.msra.mxu0 0
        %1892 = vmatprep.subr.bf16.mxu0 0
        %1893 = vmatpush1.bf16.xpose.msra.mxu0 0
        %1894 = vmatprep.subr.bf16.mxu0 0
        %1895 = vmatpush1.bf16.xpose.msra.mxu0 0
        %1896 = vmatprep.subr.bf16.mxu0 0
        %1897 = vmatpush1.bf16.xpose.msra.mxu0 0
        %1898 = vmatprep.subr.bf16.mxu0 0
        %1899 = vmatpush1.bf16.xpose.msra.mxu0 0
        %1900 = vmatprep.subr.bf16.mxu0 0
        %1901 = vmatpush1.bf16.xpose.msra.mxu0 0
        %1902 = vmatprep.subr.bf16.mxu0 0
        %1903 = vmatpush1.bf16.xpose.msra.mxu0 0
        %1904 = vmatprep.subr.bf16.mxu0 0
        %1905 = vmatpush1.bf16.xpose.msra.mxu0 0
        %1906 = vmatprep.subr.bf16.mxu0 0
        %1907 = vmatpush1.bf16.xpose.msra.mxu0 0
        %1908 = vmatprep.subr.bf16.mxu0 0
        %1909 = vmatpush1.bf16.xpose.msra.mxu0 0
        %1910 = vmatprep.subr.bf16.mxu0 0
        %1911 = vmatpush1.bf16.xpose.msra.mxu0 0
        %1912 = vmatprep.subr.bf16.mxu0 0
        %1913 = vmatpush1.bf16.xpose.msra.mxu0 0
        %1914 = vmatprep.subr.bf16.mxu0 0
        %1915 = vmatpush1.bf16.xpose.msra.mxu0 0
        %1916 = vmatprep.mubr.bf16.mxu0 0
        %1917 = vmatmul.mubr.bf16.gmra.mrb[0].mxu0 %v1879
        %v1918 = vpop.f32.mrb[0].mxu0
        %v1919 = vadd.f32 0.0, %v1918
        %v1920 = vpop.f32.mrb[0].mxu0
        %v1921 = vpop.f32.mrb[0].mxu0
        %v1922 = vpop.f32.mrb[0].mxu0
        %1923 = vdwg.mxu0
        %v1924 = vsel %vm1124, %v1919, -inf
        %1925 = vmax.xlane.f32.xlu0 %v1924
        %v1926 = vpop.xlane.xlu0 %1925
        %v1927 = vsub.f32 %v1919, %v1926
        %v1928 = vmul.f32 %v1927, 1.442695
        %v1929 = vpow.pop %v1928
        %v1930 = vsel %vm1124, %v1929, 0.0
        %1931 = vadd.xlane.f32.xlu0 %v1930
        %v1932 = vpop.xlane.xlu0 %1931
        %v1933 = vrcp.pop %v1932
        %v1934 = vmul.f32 %v1929, %v1933
        %v1935 = vpack.c.bf16 %v1934, %v1934
        %1937 = vrot.lane.b32.xlu0 %v1813, 96
        %v1938 = vpop.permute.xlu0 %1937
        %v1940 = vsel %vm1124, %v1935, 0
        %v1943 = vsel %vm1253, %v1938, 0
        %1945 = vmatprep.subr.bf16.mxu0 0
        %1946 = vmatpush1.bf16.msra.mxu0 %v1943
        %1947 = vmatprep.subr.bf16.mxu0 0
        %1948 = vmatpush1.bf16.msra.mxu0 0
        %1949 = vmatprep.subr.bf16.mxu0 0
        %1950 = vmatpush1.bf16.msra.mxu0 0
        %1951 = vmatprep.subr.bf16.mxu0 0
        %1952 = vmatpush1.bf16.msra.mxu0 0
        %1953 = vmatprep.subr.bf16.mxu0 0
        %1954 = vmatpush1.bf16.msra.mxu0 0
        %1955 = vmatprep.subr.bf16.mxu0 0
        %1956 = vmatpush1.bf16.msra.mxu0 0
        %1957 = vmatprep.subr.bf16.mxu0 0
        %1958 = vmatpush1.bf16.msra.mxu0 0
        %1959 = vmatprep.subr.bf16.mxu0 0
        %1960 = vmatpush1.bf16.msra.mxu0 0
        %1961 = vmatprep.subr.bf16.mxu0 0
        %1962 = vmatpush1.bf16.msra.mxu0 0
        %1963 = vmatprep.subr.bf16.mxu0 0
        %1964 = vmatpush1.bf16.msra.mxu0 0
        %1965 = vmatprep.subr.bf16.mxu0 0
        %1966 = vmatpush1.bf16.msra.mxu0 0
        %1967 = vmatprep.subr.bf16.mxu0 0
        %1968 = vmatpush1.bf16.msra.mxu0 0
        %1969 = vmatprep.subr.bf16.mxu0 0
        %1970 = vmatpush1.bf16.msra.mxu0 0
        %1971 = vmatprep.subr.bf16.mxu0 0
        %1972 = vmatpush1.bf16.msra.mxu0 0
        %1973 = vmatprep.subr.bf16.mxu0 0
        %1974 = vmatpush1.bf16.msra.mxu0 0
        %1975 = vmatprep.subr.bf16.mxu0 0
        %1976 = vmatpush1.bf16.msra.mxu0 0
        %1977 = vmatprep.mubr.bf16.mxu0 0
        %1978 = vmatmul.mubr.bf16.gmra.mrb[0].mxu0 %v1940
        %v1979 = vpop.f32.mrb[0].mxu0
        %v1980 = vadd.f32 0.0, %v1979
        %v1981 = vpop.f32.mrb[0].mxu0
        %v1982 = vpop.f32.mrb[0].mxu0
        %v1983 = vpop.f32.mrb[0].mxu0
        %1984 = vdwg.mxu0
        %v1986 = vsel %vm1124, %v1871, 0
        %v1989 = vsel %vm1253, %v1813, 0
        %1991 = vmatprep.subr.bf16.mxu0 0
        %1992 = vmatpush1.bf16.msra.mxu0 %v1989
        %1993 = vmatprep.subr.bf16.mxu0 0
        %1994 = vmatpush1.bf16.msra.mxu0 0
        %1995 = vmatprep.subr.bf16.mxu0 0
        %1996 = vmatpush1.bf16.msra.mxu0 0
        %1997 = vmatprep.subr.bf16.mxu0 0
        %1998 = vmatpush1.bf16.msra.mxu0 0
        %1999 = vmatprep.subr.bf16.mxu0 0
        %2000 = vmatpush1.bf16.msra.mxu0 0
        %2001 = vmatprep.subr.bf16.mxu0 0
        %2002 = vmatpush1.bf16.msra.mxu0 0
        %2003 = vmatprep.subr.bf16.mxu0 0
        %2004 = vmatpush1.bf16.msra.mxu0 0
        %2005 = vmatprep.subr.bf16.mxu0 0
        %2006 = vmatpush1.bf16.msra.mxu0 0
        %2007 = vmatprep.subr.bf16.mxu0 0
        %2008 = vmatpush1.bf16.msra.mxu0 0
        %2009 = vmatprep.subr.bf16.mxu0 0
        %2010 = vmatpush1.bf16.msra.mxu0 0
        %2011 = vmatprep.subr.bf16.mxu0 0
        %2012 = vmatpush1.bf16.msra.mxu0 0
        %2013 = vmatprep.subr.bf16.mxu0 0
        %2014 = vmatpush1.bf16.msra.mxu0 0
        %2015 = vmatprep.subr.bf16.mxu0 0
        %2016 = vmatpush1.bf16.msra.mxu0 0
        %2017 = vmatprep.subr.bf16.mxu0 0
        %2018 = vmatpush1.bf16.msra.mxu0 0
        %2019 = vmatprep.subr.bf16.mxu0 0
        %2020 = vmatpush1.bf16.msra.mxu0 0
        %2021 = vmatprep.subr.bf16.mxu0 0
        %2022 = vmatpush1.bf16.msra.mxu0 0
        %2023 = vmatprep.mubr.bf16.mxu0 0
        %2024 = vmatmul.mubr.bf16.gmra.mrb[0].mxu0 %v1986
        %v2025 = vpop.f32.mrb[0].mxu0
        %v2026 = vadd.f32 %v1980, %v2025
        %v2027 = vpop.f32.mrb[0].mxu0
        %v2028 = vpop.f32.mrb[0].mxu0
        %v2029 = vpop.f32.mrb[0].mxu0
        %2030 = vdwg.mxu0
        %2031 = vrot.lane.b32.xlu0 %v1687, 112
        %v2032 = vpop.permute.xlu0 %2031
        %2033 = vrot.lane.b32.xlu0 %v1756, 112
        %v2034 = vpop.permute.xlu0 %2033
        %v2036 = vsel %vm1124, %v2032, 0
        %v2039 = vsel %vm1124, %v2034, 0
        %2041 = vmatprep.subr.bf16.mxu0 0
        %2042 = vmatpush1.bf16.xpose.msra.mxu0 %v2039
        %2043 = vmatprep.subr.bf16.mxu0 0
        %2044 = vmatpush1.bf16.xpose.msra.mxu0 0
        %2045 = vmatprep.subr.bf16.mxu0 0
        %2046 = vmatpush1.bf16.xpose.msra.mxu0 0
        %2047 = vmatprep.subr.bf16.mxu0 0
        %2048 = vmatpush1.bf16.xpose.msra.mxu0 0
        %2049 = vmatprep.subr.bf16.mxu0 0
        %2050 = vmatpush1.bf16.xpose.msra.mxu0 0
        %2051 = vmatprep.subr.bf16.mxu0 0
        %2052 = vmatpush1.bf16.xpose.msra.mxu0 0
        %2053 = vmatprep.subr.bf16.mxu0 0
        %2054 = vmatpush1.bf16.xpose.msra.mxu0 0
        %2055 = vmatprep.subr.bf16.mxu0 0
        %2056 = vmatpush1.bf16.xpose.msra.mxu0 0
        %2057 = vmatprep.subr.bf16.mxu0 0
        %2058 = vmatpush1.bf16.xpose.msra.mxu0 0
        %2059 = vmatprep.subr.bf16.mxu0 0
        %2060 = vmatpush1.bf16.xpose.msra.mxu0 0
        %2061 = vmatprep.subr.bf16.mxu0 0
        %2062 = vmatpush1.bf16.xpose.msra.mxu0 0
        %2063 = vmatprep.subr.bf16.mxu0 0
        %2064 = vmatpush1.bf16.xpose.msra.mxu0 0
        %2065 = vmatprep.subr.bf16.mxu0 0
        %2066 = vmatpush1.bf16.xpose.msra.mxu0 0
        %2067 = vmatprep.subr.bf16.mxu0 0
        %2068 = vmatpush1.bf16.xpose.msra.mxu0 0
        %2069 = vmatprep.subr.bf16.mxu0 0
        %2070 = vmatpush1.bf16.xpose.msra.mxu0 0
        %2071 = vmatprep.subr.bf16.mxu0 0
        %2072 = vmatpush1.bf16.xpose.msra.mxu0 0
        %2073 = vmatprep.mubr.bf16.mxu0 0
        %2074 = vmatmul.mubr.bf16.gmra.mrb[0].mxu0 %v2036
        %v2075 = vpop.f32.mrb[0].mxu0
        %v2076 = vadd.f32 0.0, %v2075
        %v2077 = vpop.f32.mrb[0].mxu0
        %v2078 = vpop.f32.mrb[0].mxu0
        %v2079 = vpop.f32.mrb[0].mxu0
        %2080 = vdwg.mxu0
        %v2081 = vsel %vm1124, %v2076, -inf
        %2082 = vmax.xlane.f32.xlu0 %v2081
        %v2083 = vpop.xlane.xlu0 %2082
        %v2084 = vsub.f32 %v2076, %v2083
        %v2085 = vmul.f32 %v2084, 1.442695
        %v2086 = vpow.pop %v2085
        %v2087 = vsel %vm1124, %v2086, 0.0
        %2088 = vadd.xlane.f32.xlu0 %v2087
        %v2089 = vpop.xlane.xlu0 %2088
        %v2090 = vrcp.pop %v2089
        %v2091 = vmul.f32 %v2086, %v2090
        %v2092 = vpack.c.bf16 %v2091, %v2091
        %2093 = vrot.lane.b32.xlu0 %v1813, 64
        %v2094 = vpop.permute.xlu0 %2093
        %v2096 = vsel %vm1124, %v2092, 0
        %v2099 = vsel %vm1253, %v2094, 0
        %2101 = vmatprep.subr.bf16.mxu0 0
        %2102 = vmatpush1.bf16.msra.mxu0 %v2099
        %2103 = vmatprep.subr.bf16.mxu0 0
        %2104 = vmatpush1.bf16.msra.mxu0 0
        %2105 = vmatprep.subr.bf16.mxu0 0
        %2106 = vmatpush1.bf16.msra.mxu0 0
        %2107 = vmatprep.subr.bf16.mxu0 0
        %2108 = vmatpush1.bf16.msra.mxu0 0
        %2109 = vmatprep.subr.bf16.mxu0 0
        %2110 = vmatpush1.bf16.msra.mxu0 0
        %2111 = vmatprep.subr.bf16.mxu0 0
        %2112 = vmatpush1.bf16.msra.mxu0 0
        %2113 = vmatprep.subr.bf16.mxu0 0
        %2114 = vmatpush1.bf16.msra.mxu0 0
        %2115 = vmatprep.subr.bf16.mxu0 0
        %2116 = vmatpush1.bf16.msra.mxu0 0
        %2117 = vmatprep.subr.bf16.mxu0 0
        %2118 = vmatpush1.bf16.msra.mxu0 0
        %2119 = vmatprep.subr.bf16.mxu0 0
        %2120 = vmatpush1.bf16.msra.mxu0 0
        %2121 = vmatprep.subr.bf16.mxu0 0
        %2122 = vmatpush1.bf16.msra.mxu0 0
        %2123 = vmatprep.subr.bf16.mxu0 0
        %2124 = vmatpush1.bf16.msra.mxu0 0
        %2125 = vmatprep.subr.bf16.mxu0 0
        %2126 = vmatpush1.bf16.msra.mxu0 0
        %2127 = vmatprep.subr.bf16.mxu0 0
        %2128 = vmatpush1.bf16.msra.mxu0 0
        %2129 = vmatprep.subr.bf16.mxu0 0
        %2130 = vmatpush1.bf16.msra.mxu0 0
        %2131 = vmatprep.subr.bf16.mxu0 0
        %2132 = vmatpush1.bf16.msra.mxu0 0
        %2133 = vmatprep.mubr.bf16.mxu0 0
        %2134 = vmatmul.mubr.bf16.gmra.mrb[0].mxu0 %v2096
        %v2135 = vpop.f32.mrb[0].mxu0
        %v2136 = vadd.f32 0.0, %v2135
        %v2137 = vpop.f32.mrb[0].mxu0
        %v2138 = vpop.f32.mrb[0].mxu0
        %v2139 = vpop.f32.mrb[0].mxu0
        %2140 = vdwg.mxu0
        %v2141 = vadd.f32 %v2026, %v2136
        %2142 = vrot.lane.b32.xlu0 %v1687, 104
        %v2143 = vpop.permute.xlu0 %2142
        %2144 = vrot.lane.b32.xlu0 %v1756, 104
        %v2145 = vpop.permute.xlu0 %2144
        %v2147 = vsel %vm1124, %v2143, 0
        %v2150 = vsel %vm1124, %v2145, 0
        %2152 = vmatprep.subr.bf16.mxu0 0
        %2153 = vmatpush1.bf16.xpose.msra.mxu0 %v2150
        %2154 = vmatprep.subr.bf16.mxu0 0
        %2155 = vmatpush1.bf16.xpose.msra.mxu0 0
        %2156 = vmatprep.subr.bf16.mxu0 0
        %2157 = vmatpush1.bf16.xpose.msra.mxu0 0
        %2158 = vmatprep.subr.bf16.mxu0 0
        %2159 = vmatpush1.bf16.xpose.msra.mxu0 0
        %2160 = vmatprep.subr.bf16.mxu0 0
        %2161 = vmatpush1.bf16.xpose.msra.mxu0 0
        %2162 = vmatprep.subr.bf16.mxu0 0
        %2163 = vmatpush1.bf16.xpose.msra.mxu0 0
        %2164 = vmatprep.subr.bf16.mxu0 0
        %2165 = vmatpush1.bf16.xpose.msra.mxu0 0
        %2166 = vmatprep.subr.bf16.mxu0 0
        %2167 = vmatpush1.bf16.xpose.msra.mxu0 0
        %2168 = vmatprep.subr.bf16.mxu0 0
        %2169 = vmatpush1.bf16.xpose.msra.mxu0 0
        %2170 = vmatprep.subr.bf16.mxu0 0
        %2171 = vmatpush1.bf16.xpose.msra.mxu0 0
        %2172 = vmatprep.subr.bf16.mxu0 0
        %2173 = vmatpush1.bf16.xpose.msra.mxu0 0
        %2174 = vmatprep.subr.bf16.mxu0 0
        %2175 = vmatpush1.bf16.xpose.msra.mxu0 0
        %2176 = vmatprep.subr.bf16.mxu0 0
        %2177 = vmatpush1.bf16.xpose.msra.mxu0 0
        %2178 = vmatprep.subr.bf16.mxu0 0
        %2179 = vmatpush1.bf16.xpose.msra.mxu0 0
        %2180 = vmatprep.subr.bf16.mxu0 0
        %2181 = vmatpush1.bf16.xpose.msra.mxu0 0
        %2182 = vmatprep.subr.bf16.mxu0 0
        %2183 = vmatpush1.bf16.xpose.msra.mxu0 0
        %2184 = vmatprep.mubr.bf16.mxu0 0
        %2185 = vmatmul.mubr.bf16.gmra.mrb[0].mxu0 %v2147
        %v2186 = vpop.f32.mrb[0].mxu0
        %v2187 = vadd.f32 0.0, %v2186
        %v2188 = vpop.f32.mrb[0].mxu0
        %v2189 = vpop.f32.mrb[0].mxu0
        %v2190 = vpop.f32.mrb[0].mxu0
        %2191 = vdwg.mxu0
        %v2192 = vsel %vm1124, %v2187, -inf
        %2193 = vmax.xlane.f32.xlu0 %v2192
        %v2194 = vpop.xlane.xlu0 %2193
        %v2195 = vsub.f32 %v2187, %v2194
        %v2196 = vmul.f32 %v2195, 1.442695
        %v2197 = vpow.pop %v2196
        %v2198 = vsel %vm1124, %v2197, 0.0
        %2199 = vadd.xlane.f32.xlu0 %v2198
        %v2200 = vpop.xlane.xlu0 %2199
        %v2201 = vrcp.pop %v2200
        %v2202 = vmul.f32 %v2197, %v2201
        %v2203 = vpack.c.bf16 %v2202, %v2202
        %2204 = vrot.lane.b32.xlu0 %v1813, 32
        %v2205 = vpop.permute.xlu0 %2204
        %v2207 = vsel %vm1124, %v2203, 0
        %v2210 = vsel %vm1253, %v2205, 0
        %2212 = vmatprep.subr.bf16.mxu0 0
        %2213 = vmatpush1.bf16.msra.mxu0 %v2210
        %2214 = vmatprep.subr.bf16.mxu0 0
        %2215 = vmatpush1.bf16.msra.mxu0 0
        %2216 = vmatprep.subr.bf16.mxu0 0
        %2217 = vmatpush1.bf16.msra.mxu0 0
        %2218 = vmatprep.subr.bf16.mxu0 0
        %2219 = vmatpush1.bf16.msra.mxu0 0
        %2220 = vmatprep.subr.bf16.mxu0 0
        %2221 = vmatpush1.bf16.msra.mxu0 0
        %2222 = vmatprep.subr.bf16.mxu0 0
        %2223 = vmatpush1.bf16.msra.mxu0 0
        %2224 = vmatprep.subr.bf16.mxu0 0
        %2225 = vmatpush1.bf16.msra.mxu0 0
        %2226 = vmatprep.subr.bf16.mxu0 0
        %2227 = vmatpush1.bf16.msra.mxu0 0
        %2228 = vmatprep.subr.bf16.mxu0 0
        %2229 = vmatpush1.bf16.msra.mxu0 0
        %2230 = vmatprep.subr.bf16.mxu0 0
        %2231 = vmatpush1.bf16.msra.mxu0 0
        %2232 = vmatprep.subr.bf16.mxu0 0
        %2233 = vmatpush1.bf16.msra.mxu0 0
        %2234 = vmatprep.subr.bf16.mxu0 0
        %2235 = vmatpush1.bf16.msra.mxu0 0
        %2236 = vmatprep.subr.bf16.mxu0 0
        %2237 = vmatpush1.bf16.msra.mxu0 0
        %2238 = vmatprep.subr.bf16.mxu0 0
        %2239 = vmatpush1.bf16.msra.mxu0 0
        %2240 = vmatprep.subr.bf16.mxu0 0
        %2241 = vmatpush1.bf16.msra.mxu0 0
        %2242 = vmatprep.subr.bf16.mxu0 0
        %2243 = vmatpush1.bf16.msra.mxu0 0
        %2244 = vmatprep.mubr.bf16.mxu0 0
        %2245 = vmatmul.mubr.bf16.gmra.mrb[0].mxu0 %v2207
        %v2246 = vpop.f32.mrb[0].mxu0
        %v2247 = vadd.f32 0.0, %v2246
        %v2248 = vpop.f32.mrb[0].mxu0
        %v2249 = vpop.f32.mrb[0].mxu0
        %v2250 = vpop.f32.mrb[0].mxu0
        %2251 = vdwg.mxu0
        %v2252 = vadd.f32 %v2141, %v2247
        %v2253 = vld [vmem:[#allocation17] sm:$0x1]
        %v2255 = vlaneseq
        %v2256 = vshrl.u32 %v2255, 7
        %v2257 = vsub.s32 0, %v2256
        %v2258 = vrot.slane %v2253, %v2257
        %v2260 = vadd.f32 %v2252, %v2258
        %2262 = vrot.lane.b32.xlu0 %v2260, 64
        %v2263 = vpop.permute.xlu0 %2262
        %v2265 = vmul.f32 %v1577, %v2263
        %2267 = vrot.lane.b32.xlu0 %v2265, 64
        %v2268 = vpop.permute.xlu0 %2267
        %v2270 = vadd.f32 %v1588, %v2268
        %2271 = vrot.lane.b32.xlu0 %v1583, 32
        %v2272 = vpop.permute.xlu0 %2271
        %v2274 = vadd.f32 %v2270, %v2272
        %s2275 = scalar_lea.vmem [#allocation8], 2
        %v2276 = vld [vmem:[%s2275] sm:$0x1]
        %s2277 = scalar_lea.vmem [#allocation10], 2
        %v2278 = vld [vmem:[%s2277] sm:$0x1]
        %v2279 = vsel %vm858, %v2274, 0.0
        %2280 = vadd.xlane.f32.xlu0 %v2279
        %v2281 = vpop.xlane.xlu0 %2280
        %v2282 = vmul.f32 %v2281, %v908
        %v2283 = vsub.f32 %v2274, %v2282
        %v2284 = vmul.f32 %v2283, %v2283
        %v2285 = vsel %vm858, %v2284, 0.0
        %2286 = vadd.xlane.f32.xlu0 %v2285
        %v2287 = vpop.xlane.xlu0 %2286
        %v2288 = vmul.f32 %v2287, %v908
        %v2289 = vadd.f32 %v2288, 1e-05
        %v2290 = vrsqrt.pop %v2289
        %v2291 = vmul.f32 %v2283, %v2290
        %v2293 = vlaneseq
        %v2294 = vshrl.u32 %v2293, 7
        %v2295 = vsub.s32 0, %v2294
        %v2296 = vrot.slane %v2276, %v2295
        %v2298 = vmul.f32 %v2291, %v2296
        %v2300 = vlaneseq
        %v2301 = vshrl.u32 %v2300, 7
        %v2302 = vsub.s32 0, %v2301
        %v2303 = vrot.slane %v2278, %v2302
        %v2305 = vadd.f32 %v2298, %v2303
        %v2306 = vpack.c.bf16 %v2305, %v2305
        %v2307 = vld [vmem:[#allocation19] sm:$0xf]
        %v2308 = vld [vmem:[#allocation19 + $0x4] sm:$0xf]
        %v2309 = vld [vmem:[#allocation19 + $0x8] sm:$0xf]
        %v2310 = vld [vmem:[#allocation19 + $0xc] sm:$0xf]
        %v2311 = vld [vmem:[%s14] sm:$0x1]
        %v2313 = vlaneseq
        %v2314 = vshrl.u32 %v2313, 7
        %v2315 = vsub.s32 0, %v2314
        %v2316 = vrot.slane %v2311, %v2315
        %v2322 = vunpack.c.l.b16 %v2307
        %v2323 = vunpack.c.l.b16 %v2308
        %v2324 = vunpack.c.l.b16 %v2309
        %v2325 = vunpack.c.l.b16 %v2310
        %v2326 = vpack.c.b16 %v2323, %v2322
        %v2327 = vpack.c.b16 %v2325, %v2324
        %v2331 = vsel %vm858, %v2306, 0
        %2333 = vmatprep.subr.bf16.mxu0 0
        %2334 = vmatpush1.bf16.msra.mxu0 %v2326
        %2335 = vmatprep.subr.bf16.mxu0 0
        %2336 = vmatpush1.bf16.msra.mxu0 %v2327
        %2337 = vmatprep.subr.bf16.mxu0 0
        %2338 = vmatpush1.bf16.msra.mxu0 0
        %2339 = vmatprep.subr.bf16.mxu0 0
        %2340 = vmatpush1.bf16.msra.mxu0 0
        %2341 = vmatprep.subr.bf16.mxu0 0
        %2342 = vmatpush1.bf16.msra.mxu0 0
        %2343 = vmatprep.subr.bf16.mxu0 0
        %2344 = vmatpush1.bf16.msra.mxu0 0
        %2345 = vmatprep.subr.bf16.mxu0 0
        %2346 = vmatpush1.bf16.msra.mxu0 0
        %2347 = vmatprep.subr.bf16.mxu0 0
        %2348 = vmatpush1.bf16.msra.mxu0 0
        %2349 = vmatprep.subr.bf16.mxu0 0
        %2350 = vmatpush1.bf16.msra.mxu0 0
        %2351 = vmatprep.subr.bf16.mxu0 0
        %2352 = vmatpush1.bf16.msra.mxu0 0
        %2353 = vmatprep.subr.bf16.mxu0 0
        %2354 = vmatpush1.bf16.msra.mxu0 0
        %2355 = vmatprep.subr.bf16.mxu0 0
        %2356 = vmatpush1.bf16.msra.mxu0 0
        %2357 = vmatprep.subr.bf16.mxu0 0
        %2358 = vmatpush1.bf16.msra.mxu0 0
        %2359 = vmatprep.subr.bf16.mxu0 0
        %2360 = vmatpush1.bf16.msra.mxu0 0
        %2361 = vmatprep.subr.bf16.mxu0 0
        %2362 = vmatpush1.bf16.msra.mxu0 0
        %2363 = vmatprep.subr.bf16.mxu0 0
        %2364 = vmatpush1.bf16.msra.mxu0 0
        %2365 = vmatprep.mubr.bf16.mxu0 0
        %2366 = vmatmul.mubr.bf16.gmra.mrb[0].mxu0 %v2331
        %v2367 = vpop.f32.mrb[0].mxu0
        %v2368 = vadd.f32 %v2316, %v2367
        %v2369 = vpop.f32.mrb[0].mxu0
        %v2370 = vpop.f32.mrb[0].mxu0
        %v2371 = vpop.f32.mrb[0].mxu0
        %2372 = vdwg.mxu0
        %v2373 = vmax.f32 %v2368, 0.0
        %v2374 = vpack.c.bf16 %v2373, %v2373
        %v2375 = vld [vmem:[%s15] sm:$0xf]
        %v2376 = vld [vmem:[%s15 + $0x4] sm:$0xf]
        %v2377 = vld [vmem:[%s15 + $0x8] sm:$0xf]
        %v2378 = vld [vmem:[%s15 + $0xc] sm:$0xf]
        %v2379 = vld [vmem:[%s15 + $0x10] sm:$0xf]
        %v2380 = vld [vmem:[%s15 + $0x14] sm:$0xf]
        %v2381 = vld [vmem:[%s15 + $0x18] sm:$0xf]
        %v2382 = vld [vmem:[%s15 + $0x1c] sm:$0xf]
        %v2383 = vld [vmem:[%s16] sm:$0x1]
        %v2385 = vlaneseq
        %v2386 = vshrl.u32 %v2385, 7
        %v2387 = vsub.s32 0, %v2386
        %v2388 = vrot.slane %v2383, %v2387
        %v2398 = vunpack.c.l.b16 %v2375
        %v2399 = vunpack.c.l.b16 %v2376
        %v2400 = vunpack.c.l.b16 %v2377
        %v2401 = vunpack.c.l.b16 %v2378
        %v2402 = vunpack.c.l.b16 %v2379
        %v2403 = vunpack.c.l.b16 %v2380
        %v2404 = vunpack.c.l.b16 %v2381
        %v2405 = vunpack.c.l.b16 %v2382
        %v2406 = vpack.c.b16 %v2399, %v2398
        %v2407 = vpack.c.b16 %v2401, %v2400
        %v2408 = vpack.c.b16 %v2403, %v2402
        %v2409 = vpack.c.b16 %v2405, %v2404
        %vm2414 = vcmask 523264
        %v2416 = vsel %vm2414, %v2374, 0
        %2418 = vmatprep.subr.bf16.mxu0 0
        %2419 = vmatpush1.bf16.msra.mxu0 %v2406
        %2420 = vmatprep.subr.bf16.mxu0 0
        %2421 = vmatpush1.bf16.msra.mxu0 %v2407
        %2422 = vmatprep.subr.bf16.mxu0 0
        %2423 = vmatpush1.bf16.msra.mxu0 %v2408
        %2424 = vmatprep.subr.bf16.mxu0 0
        %2425 = vmatpush1.bf16.msra.mxu0 %v2409
        %2426 = vmatprep.subr.bf16.mxu0 0
        %2427 = vmatpush1.bf16.msra.mxu0 0
        %2428 = vmatprep.subr.bf16.mxu0 0
        %2429 = vmatpush1.bf16.msra.mxu0 0
        %2430 = vmatprep.subr.bf16.mxu0 0
        %2431 = vmatpush1.bf16.msra.mxu0 0
        %2432 = vmatprep.subr.bf16.mxu0 0
        %2433 = vmatpush1.bf16.msra.mxu0 0
        %2434 = vmatprep.subr.bf16.mxu0 0
        %2435 = vmatpush1.bf16.msra.mxu0 0
        %2436 = vmatprep.subr.bf16.mxu0 0
        %2437 = vmatpush1.bf16.msra.mxu0 0
        %2438 = vmatprep.subr.bf16.mxu0 0
        %2439 = vmatpush1.bf16.msra.mxu0 0
        %2440 = vmatprep.subr.bf16.mxu0 0
        %2441 = vmatpush1.bf16.msra.mxu0 0
        %2442 = vmatprep.subr.bf16.mxu0 0
        %2443 = vmatpush1.bf16.msra.mxu0 0
        %2444 = vmatprep.subr.bf16.mxu0 0
        %2445 = vmatpush1.bf16.msra.mxu0 0
        %2446 = vmatprep.subr.bf16.mxu0 0
        %2447 = vmatpush1.bf16.msra.mxu0 0
        %2448 = vmatprep.subr.bf16.mxu0 0
        %2449 = vmatpush1.bf16.msra.mxu0 0
        %2450 = vmatprep.mubr.bf16.mxu0 0
        %2451 = vmatmul.mubr.bf16.gmra.mrb[0].mxu0 %v2416
        %v2452 = vpop.f32.mrb[0].mxu0
        %v2453 = vadd.f32 %v2388, %v2452
        %v2454 = vpop.f32.mrb[0].mxu0
        %v2455 = vpop.f32.mrb[0].mxu0
        %v2456 = vpop.f32.mrb[0].mxu0
        %2457 = vdwg.mxu0
        %v2458 = vadd.f32 %v899, 1.0
        %v2459 = vlaneseq
        %v2460 = vshrl.u32 %v2459, 7
        %v2461 = vsub.s32 0, %v2460
        %v2462 = vrot.slane %v2458, %v2461
        %v2463 = vmul.f32 %v2462, %v2453
        %v2464 = vadd.f32 %v2274, %v2463
        %v2465 = vlaneseq
        %v2466 = vshrl.u32 %v2465, 7
        %v2467 = vsub.s32 0, %v2466
        %v2468 = vrot.slane %v899, %v2467
        %2470 = vrot.lane.b32.xlu0 %v2468, 96
        %v2471 = vpop.permute.xlu0 %2470
        %v2473 = vadd.f32 %v2464, %v2471
        %2474 = vst.msk [vmem:[%s799] sm:$0xff] %vm858, %v2473
        %s2475 = sand.u32 %s465, 1
        %s2476 = scalar_lea.sflag [#allocation4], %s2475
        %s2477 = sand.u32 %s465, 1
        %s2478 = smul.addr %s2477, 8
        %s2479 = scalar_lea.vmem [#allocation20], %s2478
        // Predicated region
        $region141: #{tpu_custom_call.1} parent=95 // pred_check
          %p2480 = pneg %p475
        $region142: #{tpu_custom_call.1} parent=95 // pred_check_branch
          %2482 = sbr.rel (%p2480) target = $region144
        $region143: #{tpu_custom_call.1} parent=95 // pred_region
          %s2484 = ssub.s32 128, 128
          %2485 = vsyncadd %s2476, %s2484
          %s2486 = smul.addr %s43, 128
          %s2487 = scalar_lea.hbm %s19, %s2486
          %s2489 = sshll.u32 %s2479, 4
          %s2490 = int_to_ptr.vmem [resolvable:$true] %s2489
          %2492 = dma.vmem_to_hbm [thread:$0]  %s2490, 128, %s2487, %s2476
        $region144: #{tpu_custom_call.1} parent=95 // pred_fallthru
          _
      $region96: #{tpu_custom_call.1} parent=5 // pred_fallthru
        _
      %p2493 = scmp.le.s32.totalorder 2, %s38
      // Predicated region
      $region145: #{tpu_custom_call.1} parent=5 // pred_check
        %p2494 = pneg %p2493
      $region146: #{tpu_custom_call.1} parent=5 // pred_check_branch
        %2496 = sbr.rel (%p2494) target = $region148
      $region147: #{tpu_custom_call.1} parent=5 // pred_region
        %s2497 = ssub.s32 %s38, 2
        // Predicated region
        $region149: #{tpu_custom_call.1} parent=147 // pred_check
          %p2498 = pneg %p481
        $region150: #{tpu_custom_call.1} parent=147 // pred_check_branch
          %2500 = sbr.rel (%p2498) target = $region152
        $region151: #{tpu_custom_call.1} parent=147 // pred_region
          %s2501 = sand.u32 %s466, 1
          %s2502 = scalar_lea.sflag [#allocation4], %s2501
          %s2503 = sand.u32 %s466, 1
          %s2504 = smul.addr %s2503, 8
          %s2505 = scalar_lea.vmem [#allocation20], %s2504
          %2506 = dma.done %s2502, 128
        $region152: #{tpu_custom_call.1} parent=147 // pred_fallthru
          _
      $region148: #{tpu_custom_call.1} parent=5 // pred_fallthru
        _
    $region6: #{tpu_custom_call.1} parent=1 // loop_footer
      %s42 = sadd.s32 1, %s38
    $region7: #{tpu_custom_call.1} parent=1 // loop_footer_branch
      %37 = sbr.rel target = $region3
    $region8: #{tpu_custom_call.1} parent=1 // loop_exit
      _
    %2507 = vsyncpa [#allocation3], 1
    %s2508 = scalar_lea.sflag [#allocation3], 1
    %2509 = vsyncpa %s2508, 1
    %2510 = vsyncpa [#allocation6], 1
    %s2511 = scalar_lea.sflag [#allocation6], 1
    %2512 = vsyncpa %s2511, 1
    %2513 = vsyncpa [#allocation9], 1
    %2514 = vsyncpa [#allocation12], 1
    %2515 = vsyncpa [#allocation15], 1
    %2516 = vsyncpa [#allocation18], 1
    %2517 = vsyncpa [#allocation4], 1
    %s2518 = scalar_lea.sflag [#allocation4], 1
    %2519 = vsyncpa %s2518, 1

</llo_original>
